<compile_context>
chip_gen: v6e
topology: v6e:2x2x1
jax: 0.10.0
libtpu: 0.0.40
codegen_flags: <defaults>
</compile_context>

<pallas_src>
import jax
import jax.numpy as jnp
from jax.experimental import pallas as pl
from jax.experimental.pallas import tpu as pltpu

IN_FEATURES = 2048
HIDDEN = 256
OUT_FEATURES = 1
MIN_VAL = 0.0
MAX_VAL = 46.0


def _round_up(x, m):
    return ((x + m - 1) // m) * m


def _make_kernel(use_bf16_matmul):
    def kernel(x_ref, w1_ref, b1_ref, w2_ref, b2_ref, o_ref):
        x = x_ref[...]
        w1 = w1_ref[...]
        if use_bf16_matmul:
            # Single-pass bf16 MXU matmul (f32 accumulation). Faster on the
            # compute-bound parts but exceeds 1e-4 abs after the x46 rescale;
            # opt-in only.
            x = x.astype(jnp.bfloat16)
            w1 = w1.astype(jnp.bfloat16)
        # Linear(2048 -> 256) on the MXU with f32 accumulation; b1 broadcasts.
        h = jnp.dot(x, w1, preferred_element_type=jnp.float32)
        h = jnp.maximum(h + b1_ref[...], 0.0)  # ReLU
        # Dropout(p=0.2): eval-mode identity.
        # Linear(256 -> 1): only 1 useful output column, so skip the MXU — VPU
        # multiply by the w2 row + lane reduction (XLU); both units have slack
        # while the first matmul binds the MXU/HBM. b2 is a scalar from SMEM.
        y = jnp.sum(h * w2_ref[...], axis=-1, keepdims=True) + b2_ref[0]
        # Exact sigmoid (approx EUP reciprocal would break 1e-4 after the x46
        # rescale) + output range rescale.
        y = 1.0 / (1.0 + jnp.exp(-y))
        o_ref[...] = MIN_VAL + y * (MAX_VAL - MIN_VAL)

    return kernel


def _build_call(B, tb, grid, use_bf16_matmul, single_buffer_weights,
                vmem_limit_bytes, cost):
    # Weights/biases use constant index_maps so they stay VMEM-resident across
    # grid steps; Buffered(1) drops their useless second pipeline buffer.
    wkw = dict(pipeline_mode=pl.Buffered(1)) if single_buffer_weights else {}
    in_specs = [
        # X tiled over the batch -> Pallas double-buffers HBM->VMEM against the
        # MXU work. The last block may be ragged (grid = cdiv(B, tb)).
        pl.BlockSpec((tb, IN_FEATURES), lambda i: (i, 0)),
        pl.BlockSpec((IN_FEATURES, HIDDEN), lambda i: (0, 0), **wkw),
        pl.BlockSpec((1, HIDDEN), lambda i: (0, 0), **wkw),
        pl.BlockSpec((1, HIDDEN), lambda i: (0, 0), **wkw),
        # b2 scalar lives in SMEM (free scalar slots, no vector-load pressure).
        pl.BlockSpec(memory_space=pltpu.MemorySpace.SMEM),
    ]
    return pl.pallas_call(
        _make_kernel(use_bf16_matmul),
        out_shape=jax.ShapeDtypeStruct((B, OUT_FEATURES), jnp.float32),
        grid_spec=pltpu.PrefetchScalarGridSpec(
            num_scalar_prefetch=0,
            grid=grid,
            in_specs=in_specs,
            out_specs=pl.BlockSpec((tb, OUT_FEATURES), lambda i: (i, 0)),
        ),
        compiler_params=pltpu.CompilerParams(
            # Batch tiles are independent: shard across TCs on v7x megacore.
            dimension_semantics=("parallel",),
            vmem_limit_bytes=vmem_limit_bytes,
        ),
        cost_estimate=cost,
    )


def trial_model_forward(x, w1, b1, w2, b2, *, block_b=1024, use_bf16_matmul=False):
    """Forward pass.

    x : [B, 2048] f32
    w1: [2048, 256] f32 (pre-transposed vs. PyTorch's (out, in))
    b1: [1, 256]    f32
    w2: [1, 256]    f32 (row form of the 256 -> 1 linear)
    b2: [1]         f32 (kept in SMEM)
    """
    B = x.shape[0]
    # Batch tile: multiple of 8 (f32 sublane). Default 1024: X double-buffer
    # (16 MiB) + W1 + intermediates stay under every generation's VMEM
    # (including v7x's 64 MiB).
    tb = _round_up(min(block_b, _round_up(B, 8)), 8)
    # v7x megacore: keep >= 2 grid steps when the batch allows it so both
    # TensorCores get work (negligible extra step cost on 1-TC parts).
    if pl.cdiv(B, tb) < 2 and B >= 16:
        tb = _round_up(pl.cdiv(B, 2), 8)
    grid = (pl.cdiv(B, tb),)  # ragged last block; no wrapper-side jnp.pad

    # Scoped-VMEM limit sized from the tile (conservatively assumes
    # double-buffered weights); floor 32 MiB, capped under 128 MiB parts.
    vmem_limit = min(
        max(
            2 * tb * IN_FEATURES * 4        # X double buffer
            + 2 * IN_FEATURES * HIDDEN * 4  # W1 (worst case double-buffered)
            + 4 * tb * HIDDEN * 4           # h + elementwise intermediates
            + (4 << 20),                    # headroom
            32 << 20,
        ),
        96 << 20,
    )

    cost = pl.CostEstimate(
        flops=2 * B * IN_FEATURES * HIDDEN + 3 * B * HIDDEN + 5 * B,
        transcendentals=B,
        bytes_accessed=4 * (x.size + w1.size + b1.size + w2.size + b2.size
                            + B * OUT_FEATURES),
    )

    args = (x, w1, b1, w2, b2)
    try:
        return _build_call(B, tb, grid, use_bf16_matmul, True, vmem_limit, cost)(*args)
    except Exception:
        # pl.Buffered(1) on the resident-weight specs is a pure VMEM saving; if
        # this JAX/Mosaic build rejects pipeline_mode, fall back to defaults.
        return _build_call(B, tb, grid, use_bf16_matmul, False, vmem_limit, cost)(*args)


def init_params(key):
    """Deterministic init mirroring nn.Linear's U(-1/sqrt(fan_in), 1/sqrt(fan_in))."""
    k1, k2, k3, k4 = jax.random.split(key, 4)
    bound1 = 1.0 / (IN_FEATURES ** 0.5)
    bound2 = 1.0 / (HIDDEN ** 0.5)
    # Stored pre-transposed relative to PyTorch's (out, in) layout; w2 as a row.
    w1 = jax.random.uniform(k1, (IN_FEATURES, HIDDEN), jnp.float32, -bound1, bound1)
    b1 = jax.random.uniform(k2, (1, HIDDEN), jnp.float32, -bound1, bound1)
    w2 = jax.random.uniform(k3, (1, HIDDEN), jnp.float32, -bound2, bound2)
    b2 = jax.random.uniform(k4, (1,), jnp.float32, -bound2, bound2)
    return w1, b1, w2, b2


def reference_forward(x, w1, b1, w2, b2):
    h = jnp.maximum(x @ w1 + b1, 0.0)
    y = jax.nn.sigmoid(h @ w2.T + b2)
    return MIN_VAL + y * (MAX_VAL - MIN_VAL)


if __name__ == "__main__":
    key = jax.random.PRNGKey(0)
    kx, kp = jax.random.split(key)

    # Small-batch demo: B=100 with block_b=32 exercises the tiled pipeline
    # (grid=4) and the pad-free ragged last block (100 = 3*32 + 4).
    B = 100
    x = jax.random.normal(kx, (B, IN_FEATURES), jnp.float32)
    w1, b1, w2, b2 = init_params(kp)

    out = trial_model_forward(x, w1, b1, w2, b2, block_b=32)
    out = jax.block_until_ready(out)

    ref = reference_forward(x, w1, b1, w2, b2)
    assert out.shape == (B, OUT_FEATURES)
    assert jnp.allclose(out, ref, atol=1e-4, rtol=1e-4), "mismatch vs reference"

    print("KERNEL_OK")
</pallas_src>

<mosaic_0001>
module attributes {stable_mosaic.version = 11 : i64} {
  func.func @kernel(%arg0: i32, %arg1: memref<32x2048xf32, #tpu.memory_space<vmem>>, %arg2: memref<2048x256xf32, #tpu.memory_space<vmem>>, %arg3: memref<1x256xf32, #tpu.memory_space<vmem>>, %arg4: memref<1x256xf32, #tpu.memory_space<vmem>>, %arg5: memref<1xf32, #tpu.memory_space<smem>>, %arg6: memref<32x1xf32, #tpu.memory_space<vmem>>) attributes {dimension_semantics = [#tpu.dimension_semantics<parallel>], iteration_bounds = array<i64: 4>, scalar_prefetch = 0 : i64, scratch_operands = 0 : i64, tpu.core_type = #tpu.core_type<tc>, window_params = [{transform_indices = @transform_0, window_bounds = array<i64: 32, 2048>}, {pipeline_mode = #tpu.pipeline_mode<synchronous>, transform_indices = @transform_1, window_bounds = array<i64: 2048, 256>}, {pipeline_mode = #tpu.pipeline_mode<synchronous>, transform_indices = @transform_2, window_bounds = array<i64: 1, 256>}, {pipeline_mode = #tpu.pipeline_mode<synchronous>, transform_indices = @transform_3, window_bounds = array<i64: 1, 256>}, {transform_indices = @transform_4, window_bounds = array<i64: 1>}, {transform_indices = @transform_5, window_bounds = array<i64: 32, 1>}]} {
    %c0 = arith.constant 0 : index
    %c0_0 = arith.constant 0 : index
    %0 = vector.load %arg1[%c0, %c0_0] : memref<32x2048xf32, #tpu.memory_space<vmem>>, vector<32x2048xf32>
    %c0_1 = arith.constant 0 : index
    %c0_2 = arith.constant 0 : index
    %1 = vector.load %arg2[%c0_1, %c0_2] : memref<2048x256xf32, #tpu.memory_space<vmem>>, vector<2048x256xf32>
    %cst = arith.constant dense<0.000000e+00> : vector<32x256xf32>
    %2 = tpu.matmul %0, %1, %cst {dimension_numbers = #tpu.dot_dimension_numbers<[1], [0], [0], [1], [0, 0, 1, 1], [], []>} : vector<32x2048xf32>, vector<2048x256xf32>, vector<32x256xf32> -> vector<32x256xf32>
    %c0_3 = arith.constant 0 : index
    %c0_4 = arith.constant 0 : index
    %3 = vector.load %arg3[%c0_3, %c0_4] : memref<1x256xf32, #tpu.memory_space<vmem>>, vector<1x256xf32>
    %4 = vector.broadcast %3 : vector<1x256xf32> to vector<32x256xf32>
    %5 = arith.addf %2, %4 : vector<32x256xf32>
    %cst_5 = arith.constant 0.000000e+00 : f32
    %6 = vector.broadcast %cst_5 : f32 to vector<32x256xf32>
    %7 = arith.maximumf %5, %6 : vector<32x256xf32>
    %c0_6 = arith.constant 0 : index
    %c0_7 = arith.constant 0 : index
    %8 = vector.load %arg4[%c0_6, %c0_7] : memref<1x256xf32, #tpu.memory_space<vmem>>, vector<1x256xf32>
    %9 = vector.broadcast %8 : vector<1x256xf32> to vector<32x256xf32>
    %10 = arith.mulf %7, %9 : vector<32x256xf32>
    %cst_8 = arith.constant dense<0.000000e+00> : vector<32xf32>
    %11 = vector.multi_reduction <add>, %10, %cst_8 [1] : vector<32x256xf32> to vector<32xf32>
    %12 = vector.shape_cast %11 : vector<32xf32> to vector<32x1xf32>
    %c0_9 = arith.constant 0 : index
    %13 = memref.load %arg5[%c0_9] : memref<1xf32, #tpu.memory_space<smem>>
    %14 = vector.broadcast %13 : f32 to vector<32x1xf32>
    %15 = arith.addf %12, %14 : vector<32x1xf32>
    %cst_10 = arith.constant 0.000000e+00 : f32
    %16 = vector.broadcast %cst_10 : f32 to vector<32x1xf32>
    %17 = arith.subf %16, %15 : vector<32x1xf32>
    %18 = math.exp %17 : vector<32x1xf32>
    %cst_11 = arith.constant 1.000000e+00 : f32
    %19 = vector.broadcast %cst_11 : f32 to vector<32x1xf32>
    %20 = arith.addf %19, %18 : vector<32x1xf32>
    %cst_12 = arith.constant 1.000000e+00 : f32
    %21 = vector.broadcast %cst_12 : f32 to vector<32x1xf32>
    %22 = arith.divf %21, %20 : vector<32x1xf32>
    %cst_13 = arith.constant 4.600000e+01 : f32
    %23 = vector.broadcast %cst_13 : f32 to vector<32x1xf32>
    %24 = arith.mulf %22, %23 : vector<32x1xf32>
    %cst_14 = arith.constant 0.000000e+00 : f32
    %25 = vector.broadcast %cst_14 : f32 to vector<32x1xf32>
    %26 = arith.addf %25, %24 : vector<32x1xf32>
    %c0_15 = arith.constant 0 : index
    %c0_16 = arith.constant 0 : index
    %27 = vector.load %arg6[%c0_15, %c0_16] : memref<32x1xf32, #tpu.memory_space<vmem>>, vector<32x1xf32>
    tpu.vector_store %arg6[%c0_15, %c0_16], %26 {strides = array<i32>} : memref<32x1xf32, #tpu.memory_space<vmem>>, vector<32x1xf32>,
    return
  }
  func.func @transform_0(%arg0: i32) -> (i32, i32) {
    %c0_i32 = arith.constant 0 : i32
    %c0_i32_0 = arith.constant 0 : i32
    return %arg0, %c0_i32 : i32, i32
  }
  func.func @transform_1(%arg0: i32) -> (i32, i32) {
    %c0_i32 = arith.constant 0 : i32
    %c0_i32_0 = arith.constant 0 : i32
    %c0_i32_1 = arith.constant 0 : i32
    return %c0_i32, %c0_i32_0 : i32, i32
  }
  func.func @transform_2(%arg0: i32) -> (i32, i32) {
    %c0_i32 = arith.constant 0 : i32
    %c0_i32_0 = arith.constant 0 : i32
    %c0_i32_1 = arith.constant 0 : i32
    return %c0_i32, %c0_i32_0 : i32, i32
  }
  func.func @transform_3(%arg0: i32) -> (i32, i32) {
    %c0_i32 = arith.constant 0 : i32
    %c0_i32_0 = arith.constant 0 : i32
    %c0_i32_1 = arith.constant 0 : i32
    return %c0_i32, %c0_i32_0 : i32, i32
  }
  func.func @transform_4(%arg0: i32) -> i32 {
    %c0_i32 = arith.constant 0 : i32
    %c0_i32_0 = arith.constant 0 : i32
    return %c0_i32 : i32
  }
  func.func @transform_5(%arg0: i32) -> (i32, i32) {
    %c0_i32 = arith.constant 0 : i32
    %c0_i32_0 = arith.constant 0 : i32
    return %arg0, %c0_i32 : i32, i32
  }
}

module attributes {stable_mosaic.version = 11 : i64} {
  func.func @kernel(%arg0: i32, %arg1: memref<32x2048xf32, #tpu.memory_space<vmem>>, %arg2: memref<2048x256xf32, #tpu.memory_space<vmem>>, %arg3: memref<1x256xf32, #tpu.memory_space<vmem>>, %arg4: memref<1x256xf32, #tpu.memory_space<vmem>>, %arg5: memref<1xf32, #tpu.memory_space<smem>>, %arg6: memref<32x1xf32, #tpu.memory_space<vmem>>) attributes {dimension_semantics = [#tpu.dimension_semantics<parallel>], iteration_bounds = array<i64: 4>, scalar_prefetch = 0 : i64, scratch_operands = 0 : i64, tpu.core_type = #tpu.core_type<tc>, window_params = [{transform_indices = @transform_0, window_bounds = array<i64: 32, 2048>}, {pipeline_mode = #tpu.pipeline_mode<synchronous>, transform_indices = @transform_1, window_bounds = array<i64: 2048, 256>}, {pipeline_mode = #tpu.pipeline_mode<synchronous>, transform_indices = @transform_2, window_bounds = array<i64: 1, 256>}, {pipeline_mode = #tpu.pipeline_mode<synchronous>, transform_indices = @transform_3, window_bounds = array<i64: 1, 256>}, {transform_indices = @transform_4, window_bounds = array<i64: 1>}, {transform_indices = @transform_5, window_bounds = array<i64: 32, 1>}]} {
    %c0 = arith.constant 0 : index
    %c0_0 = arith.constant 0 : index
    %0 = vector.load %arg1[%c0, %c0_0] : memref<32x2048xf32, #tpu.memory_space<vmem>>, vector<32x2048xf32>
    %c0_1 = arith.constant 0 : index
    %c0_2 = arith.constant 0 : index
    %1 = vector.load %arg2[%c0_1, %c0_2] : memref<2048x256xf32, #tpu.memory_space<vmem>>, vector<2048x256xf32>
    %cst = arith.constant dense<0.000000e+00> : vector<32x256xf32>
    %2 = tpu.matmul %0, %1, %cst {dimension_numbers = #tpu.dot_dimension_numbers<[1], [0], [0], [1], [0, 0, 1, 1], [], []>} : vector<32x2048xf32>, vector<2048x256xf32>, vector<32x256xf32> -> vector<32x256xf32>
    %c0_3 = arith.constant 0 : index
    %c0_4 = arith.constant 0 : index
    %3 = vector.load %arg3[%c0_3, %c0_4] : memref<1x256xf32, #tpu.memory_space<vmem>>, vector<1x256xf32>
    %4 = vector.broadcast %3 : vector<1x256xf32> to vector<32x256xf32>
    %5 = arith.addf %2, %4 : vector<32x256xf32>
    %cst_5 = arith.constant 0.000000e+00 : f32
    %6 = vector.broadcast %cst_5 : f32 to vector<32x256xf32>
    %7 = arith.maximumf %5, %6 : vector<32x256xf32>
    %c0_6 = arith.constant 0 : index
    %c0_7 = arith.constant 0 : index
    %8 = vector.load %arg4[%c0_6, %c0_7] : memref<1x256xf32, #tpu.memory_space<vmem>>, vector<1x256xf32>
    %9 = vector.broadcast %8 : vector<1x256xf32> to vector<32x256xf32>
    %10 = arith.mulf %7, %9 : vector<32x256xf32>
    %cst_8 = arith.constant dense<0.000000e+00> : vector<32xf32>
    %11 = vector.multi_reduction <add>, %10, %cst_8 [1] : vector<32x256xf32> to vector<32xf32>
    %12 = vector.shape_cast %11 : vector<32xf32> to vector<32x1xf32>
    %c0_9 = arith.constant 0 : index
    %13 = memref.load %arg5[%c0_9] : memref<1xf32, #tpu.memory_space<smem>>
    %14 = vector.broadcast %13 : f32 to vector<32x1xf32>
    %15 = arith.addf %12, %14 : vector<32x1xf32>
    %cst_10 = arith.constant 0.000000e+00 : f32
    %16 = vector.broadcast %cst_10 : f32 to vector<32x1xf32>
    %17 = arith.subf %16, %15 : vector<32x1xf32>
    %18 = math.exp %17 : vector<32x1xf32>
    %cst_11 = arith.constant 1.000000e+00 : f32
    %19 = vector.broadcast %cst_11 : f32 to vector<32x1xf32>
    %20 = arith.addf %19, %18 : vector<32x1xf32>
    %cst_12 = arith.constant 1.000000e+00 : f32
    %21 = vector.broadcast %cst_12 : f32 to vector<32x1xf32>
    %22 = arith.divf %21, %20 : vector<32x1xf32>
    %cst_13 = arith.constant 4.600000e+01 : f32
    %23 = vector.broadcast %cst_13 : f32 to vector<32x1xf32>
    %24 = arith.mulf %22, %23 : vector<32x1xf32>
    %cst_14 = arith.constant 0.000000e+00 : f32
    %25 = vector.broadcast %cst_14 : f32 to vector<32x1xf32>
    %26 = arith.addf %25, %24 : vector<32x1xf32>
    %c0_15 = arith.constant 0 : index
    %c0_16 = arith.constant 0 : index
    %27 = vector.load %arg6[%c0_15, %c0_16] : memref<32x1xf32, #tpu.memory_space<vmem>>, vector<32x1xf32>
    tpu.vector_store %arg6[%c0_15, %c0_16], %26 {strides = array<i32>} : memref<32x1xf32, #tpu.memory_space<vmem>>, vector<32x1xf32>,
    return
  }
  func.func @transform_0(%arg0: i32) -> (i32, i32) {
    %c0_i32 = arith.constant 0 : i32
    %c0_i32_0 = arith.constant 0 : i32
    return %arg0, %c0_i32 : i32, i32
  }
  func.func @transform_1(%arg0: i32) -> (i32, i32) {
    %c0_i32 = arith.constant 0 : i32
    %c0_i32_0 = arith.constant 0 : i32
    %c0_i32_1 = arith.constant 0 : i32
    return %c0_i32, %c0_i32_0 : i32, i32
  }
  func.func @transform_2(%arg0: i32) -> (i32, i32) {
    %c0_i32 = arith.constant 0 : i32
    %c0_i32_0 = arith.constant 0 : i32
    %c0_i32_1 = arith.constant 0 : i32
    return %c0_i32, %c0_i32_0 : i32, i32
  }
  func.func @transform_3(%arg0: i32) -> (i32, i32) {
    %c0_i32 = arith.constant 0 : i32
    %c0_i32_0 = arith.constant 0 : i32
    %c0_i32_1 = arith.constant 0 : i32
    return %c0_i32, %c0_i32_0 : i32, i32
  }
  func.func @transform_4(%arg0: i32) -> i32 {
    %c0_i32 = arith.constant 0 : i32
    %c0_i32_0 = arith.constant 0 : i32
    return %c0_i32 : i32
  }
  func.func @transform_5(%arg0: i32) -> (i32, i32) {
    %c0_i32 = arith.constant 0 : i32
    %c0_i32_0 = arith.constant 0 : i32
    return %arg0, %c0_i32 : i32, i32
  }
}

</mosaic_0001>

<llo_original>
// kernel: tpu_custom_call.1
$region0: #{tpu_custom_call.1}
  #allocation0 [shape = 'u32[]', space=smem, size = 0x4, offset = 0x4, fixed_abs, tag = 'smem constant byte address 0x4 - core index']
  #allocation1 [shape = 'u32[144,128]{1,0:T(1,128)}', space=vmem, size = 0x12000, scoped, tag = 'internal scratch']
  #allocation2 [shape = 'f32[1]{0:T(128)S(6)}', space=smem, size = 0x200, scoped, tag = 'scoped memory for tpu_custom_call.1']
  %s0 = inlined_call_operand.hbm [shape: f32[100,2048], index: 0, kind: input, shape index: {}]
  %s1 = inlined_call_operand.hbm [shape: f32[2048,256], index: 1, kind: input, shape index: {}]
  %s2 = inlined_call_operand.hbm [shape: f32[1,256], index: 2, kind: input, shape index: {}]
  %s3 = inlined_call_operand.hbm [shape: f32[1,256], index: 3, kind: input, shape index: {}]
  %s4 = inlined_call_operand.<no memory space> [shape: f32[1], index: 4, kind: input, shape index: {}]
  %s5 = inlined_call_operand.vmem [shape: f32[100,1], index: 5, kind: output, shape index: {}]
  %s6 = sld [smem:[#allocation0]]
  $region117: #{tpu_custom_call.1} parent=0
    _
  %s8 = ssub.s32 1, %s6
  %s9 = scalar_select 0, %s8, %s6
  %10 = sst [smem:[#allocation2]] %s4
  $region1: #{tpu_custom_call.1} parent=0
    #allocation3 [shape = 'u8[524288]{0}', space=vmem, size = 0x80000, scoped, tag = 'input window, operand 0']
    #allocation4 [shape = 's32[2]{0}', space=sflag, size = 0x8, scoped, tag = 'scoped memory for tpu_custom_call.1']
    #allocation5 [shape = 'u8[2097152]{0}', space=vmem, size = 0x200000, scoped, tag = 'input window, operand 1, single buffered']
    #allocation6 [shape = 's32[1]{0}', space=sflag, size = 0x4, scoped, tag = 'scoped memory for tpu_custom_call.1']
    #allocation7 [shape = 'u8[1024]{0}', space=vmem, size = 0x400, scoped, tag = 'input window, operand 2, single buffered']
    #allocation8 [shape = 'u8[1024]{0}', space=vmem, size = 0x400, scoped, tag = 'input window, operand 3, single buffered']
    #allocation9 [shape = 's32[1]{0}', space=sflag, size = 0x4, scoped, tag = 'scoped memory for tpu_custom_call.1']
    #allocation10 [shape = 'u8[32768]{0}', space=vmem, size = 0x8000, scoped, tag = 'output window, operand 0']
    %11 = vsyncpa [#allocation4], 0
    %s12 = scalar_lea.sflag [#allocation4], 1
    %13 = vsyncpa %s12, 0
    %14 = vsyncpa [#allocation6], 0
    %15 = vsyncpa [#allocation9], 0
    loop: start=0, step=1, limit=6
    $region2: #{tpu_custom_call.1} parent=1 // loop_pre_header
      _
    $region3: #{tpu_custom_call.1} parent=1 // loop_header
      %s17 = sphi 0, %s21
      %p18 = scmp.ge.s32.totalorder %s17, 6
      %s27 = sphi 0, %s29
      %s30 = sphi 0, %s27
      %s31 = sphi 0, %s30
      %s47 = sphi 0, %s31
      %s51 = sphi 0, %s51
      %s53 = sphi 0, %s51
      %s54 = sphi 0, %s53
      %s68 = sphi 0, %s54
      %s72 = sphi 0, %s72
      %s74 = sphi 0, %s72
      %s75 = sphi 0, %s74
      %s89 = sphi 0, %s75
      %s93 = sphi 0, %s93
      %s95 = sphi 0, %s93
      %s96 = sphi 0, %s95
      %s110 = sphi 0, %s96
      %s114 = sphi 0, %s114
      %s116 = sphi 0, %s114
      %s117 = sphi 0, %s116
      %s131 = sphi 0, %s117
      %s137 = sphi 0, %s139
      %s140 = sphi 0, %s137
      %s141 = sphi 0, %s140
      %s157 = sphi 0, %s141
    $region4: #{tpu_custom_call.1} parent=1 // loop_header_branch
      %20 = sbr.rel (%p18) target = $region8
    $region5: #{tpu_custom_call.1} parent=1 // loop_body
      %s22 = ssub.s32 %s17, 1
      %s23 = ssub.s32 %s17, 2
      %s24 = sadd.s32 %s17, 1
      %s25 = ssub.s32 %s17, %s24
      %p26 = scmp.eq.s32.totalorder %s25, 0
      %s28 = sadd.s32 %s27, 1
      %s29 = scalar_select %p26, %s27, %s28
      %p32 = pneg %p26
      %p33 = scmp.eq.s32.totalorder %s17, 3
      %p34 = por %p32, %p33
      %p35 = scmp.ne.s32.totalorder %s27, %s30
      %p36 = scmp.eq.s32.totalorder %s17, 0
      %p37 = por %p35, %p36
      %p38 = scmp.ne.s32.totalorder %s27, %s30
      %p39 = scmp.eq.s32.totalorder %s22, 3
      %p40 = por %p38, %p39
      %p41 = scmp.ne.s32.totalorder %s30, %s31
      %p42 = scmp.eq.s32.totalorder %s22, 0
      %p43 = por %p41, %p42
      %p44 = scmp.ne.s32.totalorder %s30, %s31
      %p45 = scmp.eq.s32.totalorder %s23, 3
      %p46 = por %p44, %p45
      %p48 = scmp.ne.s32.totalorder %s31, %s47
      %p49 = scmp.eq.s32.totalorder %s23, 0
      %p50 = por %p48, %p49
      %s52 = sadd.s32 %s51, 1
      %p55 = scmp.eq.s32.totalorder %s17, 3
      %p56 = scmp.ne.s32.totalorder %s51, %s53
      %p57 = scmp.eq.s32.totalorder %s17, 0
      %p58 = por %p56, %p57
      %p59 = scmp.ne.s32.totalorder %s51, %s53
      %p60 = scmp.eq.s32.totalorder %s22, 3
      %p61 = por %p59, %p60
      %p62 = scmp.ne.s32.totalorder %s53, %s54
      %p63 = scmp.eq.s32.totalorder %s22, 0
      %p64 = por %p62, %p63
      %p65 = scmp.ne.s32.totalorder %s53, %s54
      %p66 = scmp.eq.s32.totalorder %s23, 3
      %p67 = por %p65, %p66
      %p69 = scmp.ne.s32.totalorder %s54, %s68
      %p70 = scmp.eq.s32.totalorder %s23, 0
      %p71 = por %p69, %p70
      %s73 = sadd.s32 %s72, 1
      %p76 = scmp.eq.s32.totalorder %s17, 3
      %p77 = scmp.ne.s32.totalorder %s72, %s74
      %p78 = scmp.eq.s32.totalorder %s17, 0
      %p79 = por %p77, %p78
      %p80 = scmp.ne.s32.totalorder %s72, %s74
      %p81 = scmp.eq.s32.totalorder %s22, 3
      %p82 = por %p80, %p81
      %p83 = scmp.ne.s32.totalorder %s74, %s75
      %p84 = scmp.eq.s32.totalorder %s22, 0
      %p85 = por %p83, %p84
      %p86 = scmp.ne.s32.totalorder %s74, %s75
      %p87 = scmp.eq.s32.totalorder %s23, 3
      %p88 = por %p86, %p87
      %p90 = scmp.ne.s32.totalorder %s75, %s89
      %p91 = scmp.eq.s32.totalorder %s23, 0
      %p92 = por %p90, %p91
      %s94 = sadd.s32 %s93, 1
      %p97 = scmp.eq.s32.totalorder %s17, 3
      %p98 = scmp.ne.s32.totalorder %s93, %s95
      %p99 = scmp.eq.s32.totalorder %s17, 0
      %p100 = por %p98, %p99
      %p101 = scmp.ne.s32.totalorder %s93, %s95
      %p102 = scmp.eq.s32.totalorder %s22, 3
      %p103 = por %p101, %p102
      %p104 = scmp.ne.s32.totalorder %s95, %s96
      %p105 = scmp.eq.s32.totalorder %s22, 0
      %p106 = por %p104, %p105
      %p107 = scmp.ne.s32.totalorder %s95, %s96
      %p108 = scmp.eq.s32.totalorder %s23, 3
      %p109 = por %p107, %p108
      %p111 = scmp.ne.s32.totalorder %s96, %s110
      %p112 = scmp.eq.s32.totalorder %s23, 0
      %p113 = por %p111, %p112
      %s115 = sadd.s32 %s114, 1
      %p118 = scmp.eq.s32.totalorder %s17, 3
      %p119 = scmp.ne.s32.totalorder %s114, %s116
      %p120 = scmp.eq.s32.totalorder %s17, 0
      %p121 = por %p119, %p120
      %p122 = scmp.ne.s32.totalorder %s114, %s116
      %p123 = scmp.eq.s32.totalorder %s22, 3
      %p124 = por %p122, %p123
      %p125 = scmp.ne.s32.totalorder %s116, %s117
      %p126 = scmp.eq.s32.totalorder %s22, 0
      %p127 = por %p125, %p126
      %p128 = scmp.ne.s32.totalorder %s116, %s117
      %p129 = scmp.eq.s32.totalorder %s23, 3
      %p130 = por %p128, %p129
      %p132 = scmp.ne.s32.totalorder %s117, %s131
      %p133 = scmp.eq.s32.totalorder %s23, 0
      %p134 = por %p132, %p133
      %s135 = ssub.s32 %s17, %s24
      %p136 = scmp.eq.s32.totalorder %s135, 0
      %s138 = sadd.s32 %s137, 1
      %s139 = scalar_select %p136, %s137, %s138
      %p142 = pneg %p136
      %p143 = scmp.eq.s32.totalorder %s17, 3
      %p144 = por %p142, %p143
      %p145 = scmp.ne.s32.totalorder %s137, %s140
      %p146 = scmp.eq.s32.totalorder %s17, 0
      %p147 = por %p145, %p146
      %p148 = scmp.ne.s32.totalorder %s137, %s140
      %p149 = scmp.eq.s32.totalorder %s22, 3
      %p150 = por %p148, %p149
      %p151 = scmp.ne.s32.totalorder %s140, %s141
      %p152 = scmp.eq.s32.totalorder %s22, 0
      %p153 = por %p151, %p152
      %p154 = scmp.ne.s32.totalorder %s140, %s141
      %p155 = scmp.eq.s32.totalorder %s23, 3
      %p156 = por %p154, %p155
      %p158 = scmp.ne.s32.totalorder %s141, %s157
      %p159 = scmp.eq.s32.totalorder %s23, 0
      %p160 = por %p158, %p159
      %p161 = scmp.le.s32.totalorder 1, %s17
      %p162 = scmp.lt.s32.totalorder %s17, 5
      %p163 = pnand %p161, %p162
      %p164 = pneg %p163
      // Predicated region
      $region9: #{tpu_custom_call.1} parent=5 // pred_check
        _
      $region10: #{tpu_custom_call.1} parent=5 // pred_check_branch
        %166 = sbr.rel (%p163) target = $region12
      $region11: #{tpu_custom_call.1} parent=5 // pred_region
        %s167 = ssub.s32 %s17, 1
        // Predicated region
        $region13: #{tpu_custom_call.1} parent=11 // pred_check
          %p168 = pneg %p64
        $region14: #{tpu_custom_call.1} parent=11 // pred_check_branch
          %170 = sbr.rel (%p168) target = $region16
        $region15: #{tpu_custom_call.1} parent=11 // pred_region
          %s172 = ssub.s32 65536, 65536
          %173 = vsyncadd [#allocation6], %s172
          %s174 = sshll.u32 [#allocation5], 4
          %s175 = int_to_ptr.vmem [resolvable:$true] %s174
          %180 = dma.hbm_to_vmem [thread:$0]  %s1, 65536, %s175, [#allocation6], 256, 256, 16
        $region16: #{tpu_custom_call.1} parent=11 // pred_fallthru
          _
        // Predicated region
        $region17: #{tpu_custom_call.1} parent=11 // pred_check
          %p181 = pneg %p85
        $region18: #{tpu_custom_call.1} parent=11 // pred_check_branch
          %183 = sbr.rel (%p181) target = $region20
        $region19: #{tpu_custom_call.1} parent=11 // pred_region
          %s185 = ssub.s32 32, 32
          %186 = vsyncadd [#allocation6], %s185
          %s188 = sshll.u32 [#allocation7], 4
          %s189 = int_to_ptr.vmem [resolvable:$true] %s188
          %191 = dma.hbm_to_vmem [thread:$0]  %s2, 32, %s189, [#allocation6]
        $region20: #{tpu_custom_call.1} parent=11 // pred_fallthru
          _
        // Predicated region
        $region21: #{tpu_custom_call.1} parent=11 // pred_check
          %p192 = pneg %p106
        $region22: #{tpu_custom_call.1} parent=11 // pred_check_branch
          %194 = sbr.rel (%p192) target = $region24
        $region23: #{tpu_custom_call.1} parent=11 // pred_region
          %s196 = ssub.s32 32, 32
          %197 = vsyncadd [#allocation9], %s196
          %s199 = sshll.u32 [#allocation8], 4
          %s200 = int_to_ptr.vmem [resolvable:$true] %s199
          %202 = dma.hbm_to_vmem [thread:$0]  %s3, 32, %s200, [#allocation9]
        $region24: #{tpu_custom_call.1} parent=11 // pred_fallthru
          _
        // Predicated region
        $region25: #{tpu_custom_call.1} parent=11 // pred_check
          %p203 = pneg %p127
        $region26: #{tpu_custom_call.1} parent=11 // pred_check_branch
          %205 = sbr.rel (%p203) target = $region28
        $region27: #{tpu_custom_call.1} parent=11 // pred_region
          _
        $region28: #{tpu_custom_call.1} parent=11 // pred_fallthru
          _
      $region12: #{tpu_custom_call.1} parent=5 // pred_fallthru
        _
      %p206 = scmp.lt.s32.totalorder %s17, 4
      // Predicated region
      $region29: #{tpu_custom_call.1} parent=5 // pred_check
        %p207 = pneg %p206
      $region30: #{tpu_custom_call.1} parent=5 // pred_check_branch
        %209 = sbr.rel (%p207) target = $region32
      $region31: #{tpu_custom_call.1} parent=5 // pred_region
        // Predicated region
        $region33: #{tpu_custom_call.1} parent=31 // pred_check
          %p210 = pneg %p37
        $region34: #{tpu_custom_call.1} parent=31 // pred_check_branch
          %212 = sbr.rel (%p210) target = $region36
        $region35: #{tpu_custom_call.1} parent=31 // pred_region
          %s213 = sand.u32 %s27, 1
          %s214 = scalar_lea.sflag [#allocation4], %s213
          %s215 = sand.u32 %s27, 1
          %s216 = smul.addr %s215, 512
          %s217 = scalar_lea.vmem [#allocation3], %s216
          %s218 = smul.u32 4, %s17
          %s219 = ssub.s32 13, %s218
          %p220 = scmp.lt.s32.totalorder %s219, 4
          %s221 = scalar_select %p220, %s219, 4
          %s222 = smul.u32 128, %s221
          %s223 = smul.u32 %s222, 16
          %s225 = ssub.s32 8192, %s223
          %226 = vsyncadd %s214, %s225
          %p227 = scmp.ne.s32.totalorder 0, %s223
          %s228 = smul.addr %s218, 16
          %s229 = smul.addr %s228, 128
          %s230 = scalar_lea.hbm %s0, %s229
          %s231 = smul.u32 128, %s221
          %s232 = sshll.u32 %s217, 4
          %s233 = int_to_ptr.vmem [resolvable:$true] %s232
          %s234 = sshll.u32 %s231, 4
          %238 = dma.hbm_to_vmem [thread:$0]  (%p227), %s230, %s234, %s233, %s214, 2048, 2048, 128
        $region36: #{tpu_custom_call.1} parent=31 // pred_fallthru
          _
      $region32: #{tpu_custom_call.1} parent=5 // pred_fallthru
        _
      %p239 = scmp.le.s32.totalorder 1, %s17
      %p240 = scmp.lt.s32.totalorder %s17, 5
      %p241 = pnand %p239, %p240
      %p242 = pneg %p241
      // Predicated region
      $region37: #{tpu_custom_call.1} parent=5 // pred_check
        _
      $region38: #{tpu_custom_call.1} parent=5 // pred_check_branch
        %244 = sbr.rel (%p241) target = $region40
      $region39: #{tpu_custom_call.1} parent=5 // pred_region
        %s245 = ssub.s32 %s17, 1
        %s246 = sand.u32 %s30, 1
        %s247 = scalar_lea.sflag [#allocation4], %s246
        %s248 = sand.u32 %s30, 1
        %s249 = smul.addr %s248, 512
        %s250 = scalar_lea.vmem [#allocation3], %s249
        // Predicated region
        $region41: #{tpu_custom_call.1} parent=39 // pred_check
          %p251 = pneg %p43
        $region42: #{tpu_custom_call.1} parent=39 // pred_check_branch
          %253 = sbr.rel (%p251) target = $region44
        $region43: #{tpu_custom_call.1} parent=39 // pred_region
          %254 = dma.done %s247, 8192
        $region44: #{tpu_custom_call.1} parent=39 // pred_fallthru
          _
        // Predicated region
        $region45: #{tpu_custom_call.1} parent=39 // pred_check
          %p255 = pneg %p64
        $region46: #{tpu_custom_call.1} parent=39 // pred_check_branch
          %257 = sbr.rel (%p255) target = $region48
        $region47: #{tpu_custom_call.1} parent=39 // pred_region
          %258 = dma.done [#allocation6], 65536
        $region48: #{tpu_custom_call.1} parent=39 // pred_fallthru
          _
        // Predicated region
        $region49: #{tpu_custom_call.1} parent=39 // pred_check
          %p259 = pneg %p85
        $region50: #{tpu_custom_call.1} parent=39 // pred_check_branch
          %261 = sbr.rel (%p259) target = $region52
        $region51: #{tpu_custom_call.1} parent=39 // pred_region
          %262 = dma.done [#allocation6], 32
        $region52: #{tpu_custom_call.1} parent=39 // pred_fallthru
          _
        // Predicated region
        $region53: #{tpu_custom_call.1} parent=39 // pred_check
          %p263 = pneg %p106
        $region54: #{tpu_custom_call.1} parent=39 // pred_check_branch
          %265 = sbr.rel (%p263) target = $region56
        $region55: #{tpu_custom_call.1} parent=39 // pred_region
          %266 = dma.done [#allocation9], 32
        $region56: #{tpu_custom_call.1} parent=39 // pred_fallthru
          _
        %s267 = sand.u32 %s30, 1
        %s268 = scalar_lea.sflag [#allocation4], %s267
        %s269 = sand.u32 %s30, 1
        %s270 = smul.addr %s269, 512
        %s271 = scalar_lea.vmem [#allocation3], %s270
        %p272 = pneg %p43
        %p273 = pneg %p40
        %p274 = pneg %p64
        %p275 = pneg %p61
        %p276 = pneg %p85
        %p277 = pneg %p82
        %p278 = pneg %p106
        %p279 = pneg %p103
        %p280 = pneg %p127
        %p281 = pneg %p124
        %p282 = pneg %p153
        %p283 = pneg %p150
        %s284 = sand.u32 %s140, 1
        %s285 = sand.u32 %s140, 1
        %s286 = smul.addr %s285, 32
        %s287 = scalar_lea.vmem [#allocation10], %s286
        %s288 = smul.u32 4, %s22
        %s289 = ssub.s32 13, %s288
        %p290 = scmp.lt.s32.totalorder %s289, 4
        %s291 = scalar_select %p290, %s289, 4
        %s292 = smul.u32 128, %s291
        %s293 = smul.u32 %s292, 16
        %s294 = smul.u32 4, %s22
        %s295 = ssub.s32 13, %s294
        %p296 = scmp.lt.s32.totalorder %s295, 4
        %s297 = scalar_select %p296, %s295, 4
        %s298 = smul.u32 128, %s297
        %v299 = vld [vmem:[%s250] sm:$0xff]
        %v300 = vld [vmem:[%s250 + $0x8] sm:$0xff]
        %v301 = vld [vmem:[%s250 + $0x10] sm:$0xff]
        %v302 = vld [vmem:[%s250 + $0x18] sm:$0xff]
        %v303 = vld [vmem:[%s250 + $0x20] sm:$0xff]
        %v304 = vld [vmem:[%s250 + $0x28] sm:$0xff]
        %v305 = vld [vmem:[%s250 + $0x30] sm:$0xff]
        %v306 = vld [vmem:[%s250 + $0x38] sm:$0xff]
        %v307 = vld [vmem:[%s250 + $0x40] sm:$0xff]
        %v308 = vld [vmem:[%s250 + $0x48] sm:$0xff]
        %v309 = vld [vmem:[%s250 + $0x50] sm:$0xff]
        %v310 = vld [vmem:[%s250 + $0x58] sm:$0xff]
        %v311 = vld [vmem:[%s250 + $0x60] sm:$0xff]
        %v312 = vld [vmem:[%s250 + $0x68] sm:$0xff]
        %v313 = vld [vmem:[%s250 + $0x70] sm:$0xff]
        %v314 = vld [vmem:[%s250 + $0x78] sm:$0xff]
        %v315 = vld [vmem:[%s250 + $0x80] sm:$0xff]
        %v316 = vld [vmem:[%s250 + $0x88] sm:$0xff]
        %v317 = vld [vmem:[%s250 + $0x90] sm:$0xff]
        %v318 = vld [vmem:[%s250 + $0x98] sm:$0xff]
        %v319 = vld [vmem:[%s250 + $0xa0] sm:$0xff]
        %v320 = vld [vmem:[%s250 + $0xa8] sm:$0xff]
        %v321 = vld [vmem:[%s250 + $0xb0] sm:$0xff]
        %v322 = vld [vmem:[%s250 + $0xb8] sm:$0xff]
        %v323 = vld [vmem:[%s250 + $0xc0] sm:$0xff]
        %v324 = vld [vmem:[%s250 + $0xc8] sm:$0xff]
        %v325 = vld [vmem:[%s250 + $0xd0] sm:$0xff]
        %v326 = vld [vmem:[%s250 + $0xd8] sm:$0xff]
        %v327 = vld [vmem:[%s250 + $0xe0] sm:$0xff]
        %v328 = vld [vmem:[%s250 + $0xe8] sm:$0xff]
        %v329 = vld [vmem:[%s250 + $0xf0] sm:$0xff]
        %v330 = vld [vmem:[%s250 + $0xf8] sm:$0xff]
        %v331 = vld [vmem:[%s250 + $0x100] sm:$0xff]
        %v332 = vld [vmem:[%s250 + $0x108] sm:$0xff]
        %v333 = vld [vmem:[%s250 + $0x110] sm:$0xff]
        %v334 = vld [vmem:[%s250 + $0x118] sm:$0xff]
        %v335 = vld [vmem:[%s250 + $0x120] sm:$0xff]
        %v336 = vld [vmem:[%s250 + $0x128] sm:$0xff]
        %v337 = vld [vmem:[%s250 + $0x130] sm:$0xff]
        %v338 = vld [vmem:[%s250 + $0x138] sm:$0xff]
        %v339 = vld [vmem:[%s250 + $0x140] sm:$0xff]
        %v340 = vld [vmem:[%s250 + $0x148] sm:$0xff]
        %v341 = vld [vmem:[%s250 + $0x150] sm:$0xff]
        %v342 = vld [vmem:[%s250 + $0x158] sm:$0xff]
        %v343 = vld [vmem:[%s250 + $0x160] sm:$0xff]
        %v344 = vld [vmem:[%s250 + $0x168] sm:$0xff]
        %v345 = vld [vmem:[%s250 + $0x170] sm:$0xff]
        %v346 = vld [vmem:[%s250 + $0x178] sm:$0xff]
        %v347 = vld [vmem:[%s250 + $0x180] sm:$0xff]
        %v348 = vld [vmem:[%s250 + $0x188] sm:$0xff]
        %v349 = vld [vmem:[%s250 + $0x190] sm:$0xff]
        %v350 = vld [vmem:[%s250 + $0x198] sm:$0xff]
        %v351 = vld [vmem:[%s250 + $0x1a0] sm:$0xff]
        %v352 = vld [vmem:[%s250 + $0x1a8] sm:$0xff]
        %v353 = vld [vmem:[%s250 + $0x1b0] sm:$0xff]
        %v354 = vld [vmem:[%s250 + $0x1b8] sm:$0xff]
        %v355 = vld [vmem:[%s250 + $0x1c0] sm:$0xff]
        %v356 = vld [vmem:[%s250 + $0x1c8] sm:$0xff]
        %v357 = vld [vmem:[%s250 + $0x1d0] sm:$0xff]
        %v358 = vld [vmem:[%s250 + $0x1d8] sm:$0xff]
        %v359 = vld [vmem:[%s250 + $0x1e0] sm:$0xff]
        %v360 = vld [vmem:[%s250 + $0x1e8] sm:$0xff]
        %v361 = vld [vmem:[%s250 + $0x1f0] sm:$0xff]
        %v362 = vld [vmem:[%s250 + $0x1f8] sm:$0xff]
        %v363 = vld [vmem:[#allocation5] sm:$0xff]
        %v364 = vld [vmem:[#allocation5 + $0x8] sm:$0xff]
        %v365 = vld [vmem:[#allocation5 + $0x10] sm:$0xff]
        %v366 = vld [vmem:[#allocation5 + $0x18] sm:$0xff]
        %v367 = vld [vmem:[#allocation5 + $0x20] sm:$0xff]
        %v368 = vld [vmem:[#allocation5 + $0x28] sm:$0xff]
        %v369 = vld [vmem:[#allocation5 + $0x30] sm:$0xff]
        %v370 = vld [vmem:[#allocation5 + $0x38] sm:$0xff]
        %v371 = vld [vmem:[#allocation5 + $0x40] sm:$0xff]
        %v372 = vld [vmem:[#allocation5 + $0x48] sm:$0xff]
        %v373 = vld [vmem:[#allocation5 + $0x50] sm:$0xff]
        %v374 = vld [vmem:[#allocation5 + $0x58] sm:$0xff]
        %v375 = vld [vmem:[#allocation5 + $0x60] sm:$0xff]
        %v376 = vld [vmem:[#allocation5 + $0x68] sm:$0xff]
        %v377 = vld [vmem:[#allocation5 + $0x70] sm:$0xff]
        %v378 = vld [vmem:[#allocation5 + $0x78] sm:$0xff]
        %v379 = vld [vmem:[#allocation5 + $0x80] sm:$0xff]
        %v380 = vld [vmem:[#allocation5 + $0x88] sm:$0xff]
        %v381 = vld [vmem:[#allocation5 + $0x90] sm:$0xff]
        %v382 = vld [vmem:[#allocation5 + $0x98] sm:$0xff]
        %v383 = vld [vmem:[#allocation5 + $0xa0] sm:$0xff]
        %v384 = vld [vmem:[#allocation5 + $0xa8] sm:$0xff]
        %v385 = vld [vmem:[#allocation5 + $0xb0] sm:$0xff]
        %v386 = vld [vmem:[#allocation5 + $0xb8] sm:$0xff]
        %v387 = vld [vmem:[#allocation5 + $0xc0] sm:$0xff]
        %v388 = vld [vmem:[#allocation5 + $0xc8] sm:$0xff]
        %v389 = vld [vmem:[#allocation5 + $0xd0] sm:$0xff]
        %v390 = vld [vmem:[#allocation5 + $0xd8] sm:$0xff]
        %v391 = vld [vmem:[#allocation5 + $0xe0] sm:$0xff]
        %v392 = vld [vmem:[#allocation5 + $0xe8] sm:$0xff]
        %v393 = vld [vmem:[#allocation5 + $0xf0] sm:$0xff]
        %v394 = vld [vmem:[#allocation5 + $0xf8] sm:$0xff]
        %v395 = vld [vmem:[#allocation5 + $0x100] sm:$0xff]
        %v396 = vld [vmem:[#allocation5 + $0x108] sm:$0xff]
        %v397 = vld [vmem:[#allocation5 + $0x110] sm:$0xff]
        %v398 = vld [vmem:[#allocation5 + $0x118] sm:$0xff]
        %v399 = vld [vmem:[#allocation5 + $0x120] sm:$0xff]
        %v400 = vld [vmem:[#allocation5 + $0x128] sm:$0xff]
        %v401 = vld [vmem:[#allocation5 + $0x130] sm:$0xff]
        %v402 = vld [vmem:[#allocation5 + $0x138] sm:$0xff]
        %v403 = vld [vmem:[#allocation5 + $0x140] sm:$0xff]
        %v404 = vld [vmem:[#allocation5 + $0x148] sm:$0xff]
        %v405 = vld [vmem:[#allocation5 + $0x150] sm:$0xff]
        %v406 = vld [vmem:[#allocation5 + $0x158] sm:$0xff]
        %v407 = vld [vmem:[#allocation5 + $0x160] sm:$0xff]
        %v408 = vld [vmem:[#allocation5 + $0x168] sm:$0xff]
        %v409 = vld [vmem:[#allocation5 + $0x170] sm:$0xff]
        %v410 = vld [vmem:[#allocation5 + $0x178] sm:$0xff]
        %v411 = vld [vmem:[#allocation5 + $0x180] sm:$0xff]
        %v412 = vld [vmem:[#allocation5 + $0x188] sm:$0xff]
        %v413 = vld [vmem:[#allocation5 + $0x190] sm:$0xff]
        %v414 = vld [vmem:[#allocation5 + $0x198] sm:$0xff]
        %v415 = vld [vmem:[#allocation5 + $0x1a0] sm:$0xff]
        %v416 = vld [vmem:[#allocation5 + $0x1a8] sm:$0xff]
        %v417 = vld [vmem:[#allocation5 + $0x1b0] sm:$0xff]
        %v418 = vld [vmem:[#allocation5 + $0x1b8] sm:$0xff]
        %v419 = vld [vmem:[#allocation5 + $0x1c0] sm:$0xff]
        %v420 = vld [vmem:[#allocation5 + $0x1c8] sm:$0xff]
        %v421 = vld [vmem:[#allocation5 + $0x1d0] sm:$0xff]
        %v422 = vld [vmem:[#allocation5 + $0x1d8] sm:$0xff]
        %v423 = vld [vmem:[#allocation5 + $0x1e0] sm:$0xff]
        %v424 = vld [vmem:[#allocation5 + $0x1e8] sm:$0xff]
        %v425 = vld [vmem:[#allocation5 + $0x1f0] sm:$0xff]
        %v426 = vld [vmem:[#allocation5 + $0x1f8] sm:$0xff]
        %v427 = vld [vmem:[#allocation5 + $0x200] sm:$0xff]
        %v428 = vld [vmem:[#allocation5 + $0x208] sm:$0xff]
        %v429 = vld [vmem:[#allocation5 + $0x210] sm:$0xff]
        %v430 = vld [vmem:[#allocation5 + $0x218] sm:$0xff]
        %v431 = vld [vmem:[#allocation5 + $0x220] sm:$0xff]
        %v432 = vld [vmem:[#allocation5 + $0x228] sm:$0xff]
        %v433 = vld [vmem:[#allocation5 + $0x230] sm:$0xff]
        %v434 = vld [vmem:[#allocation5 + $0x238] sm:$0xff]
        %v435 = vld [vmem:[#allocation5 + $0x240] sm:$0xff]
        %v436 = vld [vmem:[#allocation5 + $0x248] sm:$0xff]
        %v437 = vld [vmem:[#allocation5 + $0x250] sm:$0xff]
        %v438 = vld [vmem:[#allocation5 + $0x258] sm:$0xff]
        %v439 = vld [vmem:[#allocation5 + $0x260] sm:$0xff]
        %v440 = vld [vmem:[#allocation5 + $0x268] sm:$0xff]
        %v441 = vld [vmem:[#allocation5 + $0x270] sm:$0xff]
        %v442 = vld [vmem:[#allocation5 + $0x278] sm:$0xff]
        %v443 = vld [vmem:[#allocation5 + $0x280] sm:$0xff]
        %v444 = vld [vmem:[#allocation5 + $0x288] sm:$0xff]
        %v445 = vld [vmem:[#allocation5 + $0x290] sm:$0xff]
        %v446 = vld [vmem:[#allocation5 + $0x298] sm:$0xff]
        %v447 = vld [vmem:[#allocation5 + $0x2a0] sm:$0xff]
        %v448 = vld [vmem:[#allocation5 + $0x2a8] sm:$0xff]
        %v449 = vld [vmem:[#allocation5 + $0x2b0] sm:$0xff]
        %v450 = vld [vmem:[#allocation5 + $0x2b8] sm:$0xff]
        %v451 = vld [vmem:[#allocation5 + $0x2c0] sm:$0xff]
        %v452 = vld [vmem:[#allocation5 + $0x2c8] sm:$0xff]
        %v453 = vld [vmem:[#allocation5 + $0x2d0] sm:$0xff]
        %v454 = vld [vmem:[#allocation5 + $0x2d8] sm:$0xff]
        %v455 = vld [vmem:[#allocation5 + $0x2e0] sm:$0xff]
        %v456 = vld [vmem:[#allocation5 + $0x2e8] sm:$0xff]
        %v457 = vld [vmem:[#allocation5 + $0x2f0] sm:$0xff]
        %v458 = vld [vmem:[#allocation5 + $0x2f8] sm:$0xff]
        %v459 = vld [vmem:[#allocation5 + $0x300] sm:$0xff]
        %v460 = vld [vmem:[#allocation5 + $0x308] sm:$0xff]
        %v461 = vld [vmem:[#allocation5 + $0x310] sm:$0xff]
        %v462 = vld [vmem:[#allocation5 + $0x318] sm:$0xff]
        %v463 = vld [vmem:[#allocation5 + $0x320] sm:$0xff]
        %v464 = vld [vmem:[#allocation5 + $0x328] sm:$0xff]
        %v465 = vld [vmem:[#allocation5 + $0x330] sm:$0xff]
        %v466 = vld [vmem:[#allocation5 + $0x338] sm:$0xff]
        %v467 = vld [vmem:[#allocation5 + $0x340] sm:$0xff]
        %v468 = vld [vmem:[#allocation5 + $0x348] sm:$0xff]
        %v469 = vld [vmem:[#allocation5 + $0x350] sm:$0xff]
        %v470 = vld [vmem:[#allocation5 + $0x358] sm:$0xff]
        %v471 = vld [vmem:[#allocation5 + $0x360] sm:$0xff]
        %v472 = vld [vmem:[#allocation5 + $0x368] sm:$0xff]
        %v473 = vld [vmem:[#allocation5 + $0x370] sm:$0xff]
        %v474 = vld [vmem:[#allocation5 + $0x378] sm:$0xff]
        %v475 = vld [vmem:[#allocation5 + $0x380] sm:$0xff]
        %v476 = vld [vmem:[#allocation5 + $0x388] sm:$0xff]
        %v477 = vld [vmem:[#allocation5 + $0x390] sm:$0xff]
        %v478 = vld [vmem:[#allocation5 + $0x398] sm:$0xff]
        %v479 = vld [vmem:[#allocation5 + $0x3a0] sm:$0xff]
        %v480 = vld [vmem:[#allocation5 + $0x3a8] sm:$0xff]
        %v481 = vld [vmem:[#allocation5 + $0x3b0] sm:$0xff]
        %v482 = vld [vmem:[#allocation5 + $0x3b8] sm:$0xff]
        %v483 = vld [vmem:[#allocation5 + $0x3c0] sm:$0xff]
        %v484 = vld [vmem:[#allocation5 + $0x3c8] sm:$0xff]
        %v485 = vld [vmem:[#allocation5 + $0x3d0] sm:$0xff]
        %v486 = vld [vmem:[#allocation5 + $0x3d8] sm:$0xff]
        %v487 = vld [vmem:[#allocation5 + $0x3e0] sm:$0xff]
        %v488 = vld [vmem:[#allocation5 + $0x3e8] sm:$0xff]
        %v489 = vld [vmem:[#allocation5 + $0x3f0] sm:$0xff]
        %v490 = vld [vmem:[#allocation5 + $0x3f8] sm:$0xff]
        %v491 = vld [vmem:[#allocation5 + $0x400] sm:$0xff]
        %v492 = vld [vmem:[#allocation5 + $0x408] sm:$0xff]
        %v493 = vld [vmem:[#allocation5 + $0x410] sm:$0xff]
        %v494 = vld [vmem:[#allocation5 + $0x418] sm:$0xff]
        %v495 = vld [vmem:[#allocation5 + $0x420] sm:$0xff]
        %v496 = vld [vmem:[#allocation5 + $0x428] sm:$0xff]
        %v497 = vld [vmem:[#allocation5 + $0x430] sm:$0xff]
        %v498 = vld [vmem:[#allocation5 + $0x438] sm:$0xff]
        %v499 = vld [vmem:[#allocation5 + $0x440] sm:$0xff]
        %v500 = vld [vmem:[#allocation5 + $0x448] sm:$0xff]
        %v501 = vld [vmem:[#allocation5 + $0x450] sm:$0xff]
        %v502 = vld [vmem:[#allocation5 + $0x458] sm:$0xff]
        %v503 = vld [vmem:[#allocation5 + $0x460] sm:$0xff]
        %v504 = vld [vmem:[#allocation5 + $0x468] sm:$0xff]
        %v505 = vld [vmem:[#allocation5 + $0x470] sm:$0xff]
        %v506 = vld [vmem:[#allocation5 + $0x478] sm:$0xff]
        %v507 = vld [vmem:[#allocation5 + $0x480] sm:$0xff]
        %v508 = vld [vmem:[#allocation5 + $0x488] sm:$0xff]
        %v509 = vld [vmem:[#allocation5 + $0x490] sm:$0xff]
        %v510 = vld [vmem:[#allocation5 + $0x498] sm:$0xff]
        %v511 = vld [vmem:[#allocation5 + $0x4a0] sm:$0xff]
        %v512 = vld [vmem:[#allocation5 + $0x4a8] sm:$0xff]
        %v513 = vld [vmem:[#allocation5 + $0x4b0] sm:$0xff]
        %v514 = vld [vmem:[#allocation5 + $0x4b8] sm:$0xff]
        %v515 = vld [vmem:[#allocation5 + $0x4c0] sm:$0xff]
        %v516 = vld [vmem:[#allocation5 + $0x4c8] sm:$0xff]
        %v517 = vld [vmem:[#allocation5 + $0x4d0] sm:$0xff]
        %v518 = vld [vmem:[#allocation5 + $0x4d8] sm:$0xff]
        %v519 = vld [vmem:[#allocation5 + $0x4e0] sm:$0xff]
        %v520 = vld [vmem:[#allocation5 + $0x4e8] sm:$0xff]
        %v521 = vld [vmem:[#allocation5 + $0x4f0] sm:$0xff]
        %v522 = vld [vmem:[#allocation5 + $0x4f8] sm:$0xff]
        %v523 = vld [vmem:[#allocation5 + $0x500] sm:$0xff]
        %v524 = vld [vmem:[#allocation5 + $0x508] sm:$0xff]
        %v525 = vld [vmem:[#allocation5 + $0x510] sm:$0xff]
        %v526 = vld [vmem:[#allocation5 + $0x518] sm:$0xff]
        %v527 = vld [vmem:[#allocation5 + $0x520] sm:$0xff]
        %v528 = vld [vmem:[#allocation5 + $0x528] sm:$0xff]
        %v529 = vld [vmem:[#allocation5 + $0x530] sm:$0xff]
        %v530 = vld [vmem:[#allocation5 + $0x538] sm:$0xff]
        %v531 = vld [vmem:[#allocation5 + $0x540] sm:$0xff]
        %v532 = vld [vmem:[#allocation5 + $0x548] sm:$0xff]
        %v533 = vld [vmem:[#allocation5 + $0x550] sm:$0xff]
        %v534 = vld [vmem:[#allocation5 + $0x558] sm:$0xff]
        %v535 = vld [vmem:[#allocation5 + $0x560] sm:$0xff]
        %v536 = vld [vmem:[#allocation5 + $0x568] sm:$0xff]
        %v537 = vld [vmem:[#allocation5 + $0x570] sm:$0xff]
        %v538 = vld [vmem:[#allocation5 + $0x578] sm:$0xff]
        %v539 = vld [vmem:[#allocation5 + $0x580] sm:$0xff]
        %v540 = vld [vmem:[#allocation5 + $0x588] sm:$0xff]
        %v541 = vld [vmem:[#allocation5 + $0x590] sm:$0xff]
        %v542 = vld [vmem:[#allocation5 + $0x598] sm:$0xff]
        %v543 = vld [vmem:[#allocation5 + $0x5a0] sm:$0xff]
        %v544 = vld [vmem:[#allocation5 + $0x5a8] sm:$0xff]
        %v545 = vld [vmem:[#allocation5 + $0x5b0] sm:$0xff]
        %v546 = vld [vmem:[#allocation5 + $0x5b8] sm:$0xff]
        %v547 = vld [vmem:[#allocation5 + $0x5c0] sm:$0xff]
        %v548 = vld [vmem:[#allocation5 + $0x5c8] sm:$0xff]
        %v549 = vld [vmem:[#allocation5 + $0x5d0] sm:$0xff]
        %v550 = vld [vmem:[#allocation5 + $0x5d8] sm:$0xff]
        %v551 = vld [vmem:[#allocation5 + $0x5e0] sm:$0xff]
        %v552 = vld [vmem:[#allocation5 + $0x5e8] sm:$0xff]
        %v553 = vld [vmem:[#allocation5 + $0x5f0] sm:$0xff]
        %v554 = vld [vmem:[#allocation5 + $0x5f8] sm:$0xff]
        %v555 = vld [vmem:[#allocation5 + $0x600] sm:$0xff]
        %v556 = vld [vmem:[#allocation5 + $0x608] sm:$0xff]
        %v557 = vld [vmem:[#allocation5 + $0x610] sm:$0xff]
        %v558 = vld [vmem:[#allocation5 + $0x618] sm:$0xff]
        %v559 = vld [vmem:[#allocation5 + $0x620] sm:$0xff]
        %v560 = vld [vmem:[#allocation5 + $0x628] sm:$0xff]
        %v561 = vld [vmem:[#allocation5 + $0x630] sm:$0xff]
        %v562 = vld [vmem:[#allocation5 + $0x638] sm:$0xff]
        %v563 = vld [vmem:[#allocation5 + $0x640] sm:$0xff]
        %v564 = vld [vmem:[#allocation5 + $0x648] sm:$0xff]
        %v565 = vld [vmem:[#allocation5 + $0x650] sm:$0xff]
        %v566 = vld [vmem:[#allocation5 + $0x658] sm:$0xff]
        %v567 = vld [vmem:[#allocation5 + $0x660] sm:$0xff]
        %v568 = vld [vmem:[#allocation5 + $0x668] sm:$0xff]
        %v569 = vld [vmem:[#allocation5 + $0x670] sm:$0xff]
        %v570 = vld [vmem:[#allocation5 + $0x678] sm:$0xff]
        %v571 = vld [vmem:[#allocation5 + $0x680] sm:$0xff]
        %v572 = vld [vmem:[#allocation5 + $0x688] sm:$0xff]
        %v573 = vld [vmem:[#allocation5 + $0x690] sm:$0xff]
        %v574 = vld [vmem:[#allocation5 + $0x698] sm:$0xff]
        %v575 = vld [vmem:[#allocation5 + $0x6a0] sm:$0xff]
        %v576 = vld [vmem:[#allocation5 + $0x6a8] sm:$0xff]
        %v577 = vld [vmem:[#allocation5 + $0x6b0] sm:$0xff]
        %v578 = vld [vmem:[#allocation5 + $0x6b8] sm:$0xff]
        %v579 = vld [vmem:[#allocation5 + $0x6c0] sm:$0xff]
        %v580 = vld [vmem:[#allocation5 + $0x6c8] sm:$0xff]
        %v581 = vld [vmem:[#allocation5 + $0x6d0] sm:$0xff]
        %v582 = vld [vmem:[#allocation5 + $0x6d8] sm:$0xff]
        %v583 = vld [vmem:[#allocation5 + $0x6e0] sm:$0xff]
        %v584 = vld [vmem:[#allocation5 + $0x6e8] sm:$0xff]
        %v585 = vld [vmem:[#allocation5 + $0x6f0] sm:$0xff]
        %v586 = vld [vmem:[#allocation5 + $0x6f8] sm:$0xff]
        %v587 = vld [vmem:[#allocation5 + $0x700] sm:$0xff]
        %v588 = vld [vmem:[#allocation5 + $0x708] sm:$0xff]
        %v589 = vld [vmem:[#allocation5 + $0x710] sm:$0xff]
        %v590 = vld [vmem:[#allocation5 + $0x718] sm:$0xff]
        %v591 = vld [vmem:[#allocation5 + $0x720] sm:$0xff]
        %v592 = vld [vmem:[#allocation5 + $0x728] sm:$0xff]
        %v593 = vld [vmem:[#allocation5 + $0x730] sm:$0xff]
        %v594 = vld [vmem:[#allocation5 + $0x738] sm:$0xff]
        %v595 = vld [vmem:[#allocation5 + $0x740] sm:$0xff]
        %v596 = vld [vmem:[#allocation5 + $0x748] sm:$0xff]
        %v597 = vld [vmem:[#allocation5 + $0x750] sm:$0xff]
        %v598 = vld [vmem:[#allocation5 + $0x758] sm:$0xff]
        %v599 = vld [vmem:[#allocation5 + $0x760] sm:$0xff]
        %v600 = vld [vmem:[#allocation5 + $0x768] sm:$0xff]
        %v601 = vld [vmem:[#allocation5 + $0x770] sm:$0xff]
        %v602 = vld [vmem:[#allocation5 + $0x778] sm:$0xff]
        %v603 = vld [vmem:[#allocation5 + $0x780] sm:$0xff]
        %v604 = vld [vmem:[#allocation5 + $0x788] sm:$0xff]
        %v605 = vld [vmem:[#allocation5 + $0x790] sm:$0xff]
        %v606 = vld [vmem:[#allocation5 + $0x798] sm:$0xff]
        %v607 = vld [vmem:[#allocation5 + $0x7a0] sm:$0xff]
        %v608 = vld [vmem:[#allocation5 + $0x7a8] sm:$0xff]
        %v609 = vld [vmem:[#allocation5 + $0x7b0] sm:$0xff]
        %v610 = vld [vmem:[#allocation5 + $0x7b8] sm:$0xff]
        %v611 = vld [vmem:[#allocation5 + $0x7c0] sm:$0xff]
        %v612 = vld [vmem:[#allocation5 + $0x7c8] sm:$0xff]
        %v613 = vld [vmem:[#allocation5 + $0x7d0] sm:$0xff]
        %v614 = vld [vmem:[#allocation5 + $0x7d8] sm:$0xff]
        %v615 = vld [vmem:[#allocation5 + $0x7e0] sm:$0xff]
        %v616 = vld [vmem:[#allocation5 + $0x7e8] sm:$0xff]
        %v617 = vld [vmem:[#allocation5 + $0x7f0] sm:$0xff]
        %v618 = vld [vmem:[#allocation5 + $0x7f8] sm:$0xff]
        %v619 = vld [vmem:[#allocation5 + $0x800] sm:$0xff]
        %v620 = vld [vmem:[#allocation5 + $0x808] sm:$0xff]
        %v621 = vld [vmem:[#allocation5 + $0x810] sm:$0xff]
        %v622 = vld [vmem:[#allocation5 + $0x818] sm:$0xff]
        %v623 = vld [vmem:[#allocation5 + $0x820] sm:$0xff]
        %v624 = vld [vmem:[#allocation5 + $0x828] sm:$0xff]
        %v625 = vld [vmem:[#allocation5 + $0x830] sm:$0xff]
        %v626 = vld [vmem:[#allocation5 + $0x838] sm:$0xff]
        %v627 = vld [vmem:[#allocation5 + $0x840] sm:$0xff]
        %v628 = vld [vmem:[#allocation5 + $0x848] sm:$0xff]
        %v629 = vld [vmem:[#allocation5 + $0x850] sm:$0xff]
        %v630 = vld [vmem:[#allocation5 + $0x858] sm:$0xff]
        %v631 = vld [vmem:[#allocation5 + $0x860] sm:$0xff]
        %v632 = vld [vmem:[#allocation5 + $0x868] sm:$0xff]
        %v633 = vld [vmem:[#allocation5 + $0x870] sm:$0xff]
        %v634 = vld [vmem:[#allocation5 + $0x878] sm:$0xff]
        %v635 = vld [vmem:[#allocation5 + $0x880] sm:$0xff]
        %v636 = vld [vmem:[#allocation5 + $0x888] sm:$0xff]
        %v637 = vld [vmem:[#allocation5 + $0x890] sm:$0xff]
        %v638 = vld [vmem:[#allocation5 + $0x898] sm:$0xff]
        %v639 = vld [vmem:[#allocation5 + $0x8a0] sm:$0xff]
        %v640 = vld [vmem:[#allocation5 + $0x8a8] sm:$0xff]
        %v641 = vld [vmem:[#allocation5 + $0x8b0] sm:$0xff]
        %v642 = vld [vmem:[#allocation5 + $0x8b8] sm:$0xff]
        %v643 = vld [vmem:[#allocation5 + $0x8c0] sm:$0xff]
        %v644 = vld [vmem:[#allocation5 + $0x8c8] sm:$0xff]
        %v645 = vld [vmem:[#allocation5 + $0x8d0] sm:$0xff]
        %v646 = vld [vmem:[#allocation5 + $0x8d8] sm:$0xff]
        %v647 = vld [vmem:[#allocation5 + $0x8e0] sm:$0xff]
        %v648 = vld [vmem:[#allocation5 + $0x8e8] sm:$0xff]
        %v649 = vld [vmem:[#allocation5 + $0x8f0] sm:$0xff]
        %v650 = vld [vmem:[#allocation5 + $0x8f8] sm:$0xff]
        %v651 = vld [vmem:[#allocation5 + $0x900] sm:$0xff]
        %v652 = vld [vmem:[#allocation5 + $0x908] sm:$0xff]
        %v653 = vld [vmem:[#allocation5 + $0x910] sm:$0xff]
        %v654 = vld [vmem:[#allocation5 + $0x918] sm:$0xff]
        %v655 = vld [vmem:[#allocation5 + $0x920] sm:$0xff]
        %v656 = vld [vmem:[#allocation5 + $0x928] sm:$0xff]
        %v657 = vld [vmem:[#allocation5 + $0x930] sm:$0xff]
        %v658 = vld [vmem:[#allocation5 + $0x938] sm:$0xff]
        %v659 = vld [vmem:[#allocation5 + $0x940] sm:$0xff]
        %v660 = vld [vmem:[#allocation5 + $0x948] sm:$0xff]
        %v661 = vld [vmem:[#allocation5 + $0x950] sm:$0xff]
        %v662 = vld [vmem:[#allocation5 + $0x958] sm:$0xff]
        %v663 = vld [vmem:[#allocation5 + $0x960] sm:$0xff]
        %v664 = vld [vmem:[#allocation5 + $0x968] sm:$0xff]
        %v665 = vld [vmem:[#allocation5 + $0x970] sm:$0xff]
        %v666 = vld [vmem:[#allocation5 + $0x978] sm:$0xff]
        %v667 = vld [vmem:[#allocation5 + $0x980] sm:$0xff]
        %v668 = vld [vmem:[#allocation5 + $0x988] sm:$0xff]
        %v669 = vld [vmem:[#allocation5 + $0x990] sm:$0xff]
        %v670 = vld [vmem:[#allocation5 + $0x998] sm:$0xff]
        %v671 = vld [vmem:[#allocation5 + $0x9a0] sm:$0xff]
        %v672 = vld [vmem:[#allocation5 + $0x9a8] sm:$0xff]
        %v673 = vld [vmem:[#allocation5 + $0x9b0] sm:$0xff]
        %v674 = vld [vmem:[#allocation5 + $0x9b8] sm:$0xff]
        %v675 = vld [vmem:[#allocation5 + $0x9c0] sm:$0xff]
        %v676 = vld [vmem:[#allocation5 + $0x9c8] sm:$0xff]
        %v677 = vld [vmem:[#allocation5 + $0x9d0] sm:$0xff]
        %v678 = vld [vmem:[#allocation5 + $0x9d8] sm:$0xff]
        %v679 = vld [vmem:[#allocation5 + $0x9e0] sm:$0xff]
        %v680 = vld [vmem:[#allocation5 + $0x9e8] sm:$0xff]
        %v681 = vld [vmem:[#allocation5 + $0x9f0] sm:$0xff]
        %v682 = vld [vmem:[#allocation5 + $0x9f8] sm:$0xff]
        %v683 = vld [vmem:[#allocation5 + $0xa00] sm:$0xff]
        %v684 = vld [vmem:[#allocation5 + $0xa08] sm:$0xff]
        %v685 = vld [vmem:[#allocation5 + $0xa10] sm:$0xff]
        %v686 = vld [vmem:[#allocation5 + $0xa18] sm:$0xff]
        %v687 = vld [vmem:[#allocation5 + $0xa20] sm:$0xff]
        %v688 = vld [vmem:[#allocation5 + $0xa28] sm:$0xff]
        %v689 = vld [vmem:[#allocation5 + $0xa30] sm:$0xff]
        %v690 = vld [vmem:[#allocation5 + $0xa38] sm:$0xff]
        %v691 = vld [vmem:[#allocation5 + $0xa40] sm:$0xff]
        %v692 = vld [vmem:[#allocation5 + $0xa48] sm:$0xff]
        %v693 = vld [vmem:[#allocation5 + $0xa50] sm:$0xff]
        %v694 = vld [vmem:[#allocation5 + $0xa58] sm:$0xff]
        %v695 = vld [vmem:[#allocation5 + $0xa60] sm:$0xff]
        %v696 = vld [vmem:[#allocation5 + $0xa68] sm:$0xff]
        %v697 = vld [vmem:[#allocation5 + $0xa70] sm:$0xff]
        %v698 = vld [vmem:[#allocation5 + $0xa78] sm:$0xff]
        %v699 = vld [vmem:[#allocation5 + $0xa80] sm:$0xff]
        %v700 = vld [vmem:[#allocation5 + $0xa88] sm:$0xff]
        %v701 = vld [vmem:[#allocation5 + $0xa90] sm:$0xff]
        %v702 = vld [vmem:[#allocation5 + $0xa98] sm:$0xff]
        %v703 = vld [vmem:[#allocation5 + $0xaa0] sm:$0xff]
        %v704 = vld [vmem:[#allocation5 + $0xaa8] sm:$0xff]
        %v705 = vld [vmem:[#allocation5 + $0xab0] sm:$0xff]
        %v706 = vld [vmem:[#allocation5 + $0xab8] sm:$0xff]
        %v707 = vld [vmem:[#allocation5 + $0xac0] sm:$0xff]
        %v708 = vld [vmem:[#allocation5 + $0xac8] sm:$0xff]
        %v709 = vld [vmem:[#allocation5 + $0xad0] sm:$0xff]
        %v710 = vld [vmem:[#allocation5 + $0xad8] sm:$0xff]
        %v711 = vld [vmem:[#allocation5 + $0xae0] sm:$0xff]
        %v712 = vld [vmem:[#allocation5 + $0xae8] sm:$0xff]
        %v713 = vld [vmem:[#allocation5 + $0xaf0] sm:$0xff]
        %v714 = vld [vmem:[#allocation5 + $0xaf8] sm:$0xff]
        %v715 = vld [vmem:[#allocation5 + $0xb00] sm:$0xff]
        %v716 = vld [vmem:[#allocation5 + $0xb08] sm:$0xff]
        %v717 = vld [vmem:[#allocation5 + $0xb10] sm:$0xff]
        %v718 = vld [vmem:[#allocation5 + $0xb18] sm:$0xff]
        %v719 = vld [vmem:[#allocation5 + $0xb20] sm:$0xff]
        %v720 = vld [vmem:[#allocation5 + $0xb28] sm:$0xff]
        %v721 = vld [vmem:[#allocation5 + $0xb30] sm:$0xff]
        %v722 = vld [vmem:[#allocation5 + $0xb38] sm:$0xff]
        %v723 = vld [vmem:[#allocation5 + $0xb40] sm:$0xff]
        %v724 = vld [vmem:[#allocation5 + $0xb48] sm:$0xff]
        %v725 = vld [vmem:[#allocation5 + $0xb50] sm:$0xff]
        %v726 = vld [vmem:[#allocation5 + $0xb58] sm:$0xff]
        %v727 = vld [vmem:[#allocation5 + $0xb60] sm:$0xff]
        %v728 = vld [vmem:[#allocation5 + $0xb68] sm:$0xff]
        %v729 = vld [vmem:[#allocation5 + $0xb70] sm:$0xff]
        %v730 = vld [vmem:[#allocation5 + $0xb78] sm:$0xff]
        %v731 = vld [vmem:[#allocation5 + $0xb80] sm:$0xff]
        %v732 = vld [vmem:[#allocation5 + $0xb88] sm:$0xff]
        %v733 = vld [vmem:[#allocation5 + $0xb90] sm:$0xff]
        %v734 = vld [vmem:[#allocation5 + $0xb98] sm:$0xff]
        %v735 = vld [vmem:[#allocation5 + $0xba0] sm:$0xff]
        %v736 = vld [vmem:[#allocation5 + $0xba8] sm:$0xff]
        %v737 = vld [vmem:[#allocation5 + $0xbb0] sm:$0xff]
        %v738 = vld [vmem:[#allocation5 + $0xbb8] sm:$0xff]
        %v739 = vld [vmem:[#allocation5 + $0xbc0] sm:$0xff]
        %v740 = vld [vmem:[#allocation5 + $0xbc8] sm:$0xff]
        %v741 = vld [vmem:[#allocation5 + $0xbd0] sm:$0xff]
        %v742 = vld [vmem:[#allocation5 + $0xbd8] sm:$0xff]
        %v743 = vld [vmem:[#allocation5 + $0xbe0] sm:$0xff]
        %v744 = vld [vmem:[#allocation5 + $0xbe8] sm:$0xff]
        %v745 = vld [vmem:[#allocation5 + $0xbf0] sm:$0xff]
        %v746 = vld [vmem:[#allocation5 + $0xbf8] sm:$0xff]
        %v747 = vld [vmem:[#allocation5 + $0xc00] sm:$0xff]
        %v748 = vld [vmem:[#allocation5 + $0xc08] sm:$0xff]
        %v749 = vld [vmem:[#allocation5 + $0xc10] sm:$0xff]
        %v750 = vld [vmem:[#allocation5 + $0xc18] sm:$0xff]
        %v751 = vld [vmem:[#allocation5 + $0xc20] sm:$0xff]
        %v752 = vld [vmem:[#allocation5 + $0xc28] sm:$0xff]
        %v753 = vld [vmem:[#allocation5 + $0xc30] sm:$0xff]
        %v754 = vld [vmem:[#allocation5 + $0xc38] sm:$0xff]
        %v755 = vld [vmem:[#allocation5 + $0xc40] sm:$0xff]
        %v756 = vld [vmem:[#allocation5 + $0xc48] sm:$0xff]
        %v757 = vld [vmem:[#allocation5 + $0xc50] sm:$0xff]
        %v758 = vld [vmem:[#allocation5 + $0xc58] sm:$0xff]
        %v759 = vld [vmem:[#allocation5 + $0xc60] sm:$0xff]
        %v760 = vld [vmem:[#allocation5 + $0xc68] sm:$0xff]
        %v761 = vld [vmem:[#allocation5 + $0xc70] sm:$0xff]
        %v762 = vld [vmem:[#allocation5 + $0xc78] sm:$0xff]
        %v763 = vld [vmem:[#allocation5 + $0xc80] sm:$0xff]
        %v764 = vld [vmem:[#allocation5 + $0xc88] sm:$0xff]
        %v765 = vld [vmem:[#allocation5 + $0xc90] sm:$0xff]
        %v766 = vld [vmem:[#allocation5 + $0xc98] sm:$0xff]
        %v767 = vld [vmem:[#allocation5 + $0xca0] sm:$0xff]
        %v768 = vld [vmem:[#allocation5 + $0xca8] sm:$0xff]
        %v769 = vld [vmem:[#allocation5 + $0xcb0] sm:$0xff]
        %v770 = vld [vmem:[#allocation5 + $0xcb8] sm:$0xff]
        %v771 = vld [vmem:[#allocation5 + $0xcc0] sm:$0xff]
        %v772 = vld [vmem:[#allocation5 + $0xcc8] sm:$0xff]
        %v773 = vld [vmem:[#allocation5 + $0xcd0] sm:$0xff]
        %v774 = vld [vmem:[#allocation5 + $0xcd8] sm:$0xff]
        %v775 = vld [vmem:[#allocation5 + $0xce0] sm:$0xff]
        %v776 = vld [vmem:[#allocation5 + $0xce8] sm:$0xff]
        %v777 = vld [vmem:[#allocation5 + $0xcf0] sm:$0xff]
        %v778 = vld [vmem:[#allocation5 + $0xcf8] sm:$0xff]
        %v779 = vld [vmem:[#allocation5 + $0xd00] sm:$0xff]
        %v780 = vld [vmem:[#allocation5 + $0xd08] sm:$0xff]
        %v781 = vld [vmem:[#allocation5 + $0xd10] sm:$0xff]
        %v782 = vld [vmem:[#allocation5 + $0xd18] sm:$0xff]
        %v783 = vld [vmem:[#allocation5 + $0xd20] sm:$0xff]
        %v784 = vld [vmem:[#allocation5 + $0xd28] sm:$0xff]
        %v785 = vld [vmem:[#allocation5 + $0xd30] sm:$0xff]
        %v786 = vld [vmem:[#allocation5 + $0xd38] sm:$0xff]
        %v787 = vld [vmem:[#allocation5 + $0xd40] sm:$0xff]
        %v788 = vld [vmem:[#allocation5 + $0xd48] sm:$0xff]
        %v789 = vld [vmem:[#allocation5 + $0xd50] sm:$0xff]
        %v790 = vld [vmem:[#allocation5 + $0xd58] sm:$0xff]
        %v791 = vld [vmem:[#allocation5 + $0xd60] sm:$0xff]
        %v792 = vld [vmem:[#allocation5 + $0xd68] sm:$0xff]
        %v793 = vld [vmem:[#allocation5 + $0xd70] sm:$0xff]
        %v794 = vld [vmem:[#allocation5 + $0xd78] sm:$0xff]
        %v795 = vld [vmem:[#allocation5 + $0xd80] sm:$0xff]
        %v796 = vld [vmem:[#allocation5 + $0xd88] sm:$0xff]
        %v797 = vld [vmem:[#allocation5 + $0xd90] sm:$0xff]
        %v798 = vld [vmem:[#allocation5 + $0xd98] sm:$0xff]
        %v799 = vld [vmem:[#allocation5 + $0xda0] sm:$0xff]
        %v800 = vld [vmem:[#allocation5 + $0xda8] sm:$0xff]
        %v801 = vld [vmem:[#allocation5 + $0xdb0] sm:$0xff]
        %v802 = vld [vmem:[#allocation5 + $0xdb8] sm:$0xff]
        %v803 = vld [vmem:[#allocation5 + $0xdc0] sm:$0xff]
        %v804 = vld [vmem:[#allocation5 + $0xdc8] sm:$0xff]
        %v805 = vld [vmem:[#allocation5 + $0xdd0] sm:$0xff]
        %v806 = vld [vmem:[#allocation5 + $0xdd8] sm:$0xff]
        %v807 = vld [vmem:[#allocation5 + $0xde0] sm:$0xff]
        %v808 = vld [vmem:[#allocation5 + $0xde8] sm:$0xff]
        %v809 = vld [vmem:[#allocation5 + $0xdf0] sm:$0xff]
        %v810 = vld [vmem:[#allocation5 + $0xdf8] sm:$0xff]
        %v811 = vld [vmem:[#allocation5 + $0xe00] sm:$0xff]
        %v812 = vld [vmem:[#allocation5 + $0xe08] sm:$0xff]
        %v813 = vld [vmem:[#allocation5 + $0xe10] sm:$0xff]
        %v814 = vld [vmem:[#allocation5 + $0xe18] sm:$0xff]
        %v815 = vld [vmem:[#allocation5 + $0xe20] sm:$0xff]
        %v816 = vld [vmem:[#allocation5 + $0xe28] sm:$0xff]
        %v817 = vld [vmem:[#allocation5 + $0xe30] sm:$0xff]
        %v818 = vld [vmem:[#allocation5 + $0xe38] sm:$0xff]
        %v819 = vld [vmem:[#allocation5 + $0xe40] sm:$0xff]
        %v820 = vld [vmem:[#allocation5 + $0xe48] sm:$0xff]
        %v821 = vld [vmem:[#allocation5 + $0xe50] sm:$0xff]
        %v822 = vld [vmem:[#allocation5 + $0xe58] sm:$0xff]
        %v823 = vld [vmem:[#allocation5 + $0xe60] sm:$0xff]
        %v824 = vld [vmem:[#allocation5 + $0xe68] sm:$0xff]
        %v825 = vld [vmem:[#allocation5 + $0xe70] sm:$0xff]
        %v826 = vld [vmem:[#allocation5 + $0xe78] sm:$0xff]
        %v827 = vld [vmem:[#allocation5 + $0xe80] sm:$0xff]
        %v828 = vld [vmem:[#allocation5 + $0xe88] sm:$0xff]
        %v829 = vld [vmem:[#allocation5 + $0xe90] sm:$0xff]
        %v830 = vld [vmem:[#allocation5 + $0xe98] sm:$0xff]
        %v831 = vld [vmem:[#allocation5 + $0xea0] sm:$0xff]
        %v832 = vld [vmem:[#allocation5 + $0xea8] sm:$0xff]
        %v833 = vld [vmem:[#allocation5 + $0xeb0] sm:$0xff]
        %v834 = vld [vmem:[#allocation5 + $0xeb8] sm:$0xff]
        %v835 = vld [vmem:[#allocation5 + $0xec0] sm:$0xff]
        %v836 = vld [vmem:[#allocation5 + $0xec8] sm:$0xff]
        %v837 = vld [vmem:[#allocation5 + $0xed0] sm:$0xff]
        %v838 = vld [vmem:[#allocation5 + $0xed8] sm:$0xff]
        %v839 = vld [vmem:[#allocation5 + $0xee0] sm:$0xff]
        %v840 = vld [vmem:[#allocation5 + $0xee8] sm:$0xff]
        %v841 = vld [vmem:[#allocation5 + $0xef0] sm:$0xff]
        %v842 = vld [vmem:[#allocation5 + $0xef8] sm:$0xff]
        %v843 = vld [vmem:[#allocation5 + $0xf00] sm:$0xff]
        %v844 = vld [vmem:[#allocation5 + $0xf08] sm:$0xff]
        %v845 = vld [vmem:[#allocation5 + $0xf10] sm:$0xff]
        %v846 = vld [vmem:[#allocation5 + $0xf18] sm:$0xff]
        %v847 = vld [vmem:[#allocation5 + $0xf20] sm:$0xff]
        %v848 = vld [vmem:[#allocation5 + $0xf28] sm:$0xff]
        %v849 = vld [vmem:[#allocation5 + $0xf30] sm:$0xff]
        %v850 = vld [vmem:[#allocation5 + $0xf38] sm:$0xff]
        %v851 = vld [vmem:[#allocation5 + $0xf40] sm:$0xff]
        %v852 = vld [vmem:[#allocation5 + $0xf48] sm:$0xff]
        %v853 = vld [vmem:[#allocation5 + $0xf50] sm:$0xff]
        %v854 = vld [vmem:[#allocation5 + $0xf58] sm:$0xff]
        %v855 = vld [vmem:[#allocation5 + $0xf60] sm:$0xff]
        %v856 = vld [vmem:[#allocation5 + $0xf68] sm:$0xff]
        %v857 = vld [vmem:[#allocation5 + $0xf70] sm:$0xff]
        %v858 = vld [vmem:[#allocation5 + $0xf78] sm:$0xff]
        %v859 = vld [vmem:[#allocation5 + $0xf80] sm:$0xff]
        %v860 = vld [vmem:[#allocation5 + $0xf88] sm:$0xff]
        %v861 = vld [vmem:[#allocation5 + $0xf90] sm:$0xff]
        %v862 = vld [vmem:[#allocation5 + $0xf98] sm:$0xff]
        %v863 = vld [vmem:[#allocation5 + $0xfa0] sm:$0xff]
        %v864 = vld [vmem:[#allocation5 + $0xfa8] sm:$0xff]
        %v865 = vld [vmem:[#allocation5 + $0xfb0] sm:$0xff]
        %v866 = vld [vmem:[#allocation5 + $0xfb8] sm:$0xff]
        %v867 = vld [vmem:[#allocation5 + $0xfc0] sm:$0xff]
        %v868 = vld [vmem:[#allocation5 + $0xfc8] sm:$0xff]
        %v869 = vld [vmem:[#allocation5 + $0xfd0] sm:$0xff]
        %v870 = vld [vmem:[#allocation5 + $0xfd8] sm:$0xff]
        %v871 = vld [vmem:[#allocation5 + $0xfe0] sm:$0xff]
        %v872 = vld [vmem:[#allocation5 + $0xfe8] sm:$0xff]
        %v873 = vld [vmem:[#allocation5 + $0xff0] sm:$0xff]
        %v874 = vld [vmem:[#allocation5 + $0xff8] sm:$0xff]
        %v875 = vld [vmem:[#allocation7] sm:$0x3]
        %v877 = vlaneseq
        %v878 = vshrl.u32 %v877, 7
        %v879 = vsub.s32 0, %v878
        %v880 = vrot.slane %v875, %v879
        %v881 = vlaneseq
        %v882 = vshrl.u32 %v881, 7
        %v883 = vsub.s32 1, %v882
        %v884 = vrot.slane %v875, %v883
        %887 = vmatprep.subr.mxu0 %v394
        %888 = vmatpush1.msra.mxu0 %v393
        %889 = vmatprep.subr.mxu0 %v392
        %890 = vmatpush1.msra.mxu0 %v391
        %891 = vmatprep.subr.mxu0 %v390
        %892 = vmatpush1.msra.mxu0 %v389
        %893 = vmatprep.subr.mxu0 %v388
        %894 = vmatpush1.msra.mxu0 %v387
        %895 = vmatprep.subr.mxu0 %v386
        %896 = vmatpush1.msra.mxu0 %v385
        %897 = vmatprep.subr.mxu0 %v384
        %898 = vmatpush1.msra.mxu0 %v383
        %899 = vmatprep.subr.mxu0 %v382
        %900 = vmatpush1.msra.mxu0 %v381
        %901 = vmatprep.subr.mxu0 %v380
        %902 = vmatpush1.msra.mxu0 %v379
        %903 = vmatprep.subr.mxu0 %v378
        %904 = vmatpush1.msra.mxu0 %v377
        %905 = vmatprep.subr.mxu0 %v376
        %906 = vmatpush1.msra.mxu0 %v375
        %907 = vmatprep.subr.mxu0 %v374
        %908 = vmatpush1.msra.mxu0 %v373
        %909 = vmatprep.subr.mxu0 %v372
        %910 = vmatpush1.msra.mxu0 %v371
        %911 = vmatprep.subr.mxu0 %v370
        %912 = vmatpush1.msra.mxu0 %v369
        %913 = vmatprep.subr.mxu0 %v368
        %914 = vmatpush1.msra.mxu0 %v367
        %915 = vmatprep.subr.mxu0 %v366
        %916 = vmatpush1.msra.mxu0 %v365
        %917 = vmatprep.subr.mxu0 %v364
        %918 = vmatpush1.msra.mxu0 %v363
        %919 = vmatprep.subr.mxu0 %v426
        %920 = vmatpush2.msra.mxu0 %v425
        %921 = vmatprep.subr.mxu0 %v424
        %922 = vmatpush2.msra.mxu0 %v423
        %923 = vmatprep.subr.mxu0 %v422
        %924 = vmatpush2.msra.mxu0 %v421
        %925 = vmatprep.subr.mxu0 %v420
        %926 = vmatpush2.msra.mxu0 %v419
        %927 = vmatprep.subr.mxu0 %v418
        %928 = vmatpush2.msra.mxu0 %v417
        %929 = vmatprep.subr.mxu0 %v416
        %930 = vmatpush2.msra.mxu0 %v415
        %931 = vmatprep.subr.mxu0 %v414
        %932 = vmatpush2.msra.mxu0 %v413
        %933 = vmatprep.subr.mxu0 %v412
        %934 = vmatpush2.msra.mxu0 %v411
        %935 = vmatprep.subr.mxu0 %v410
        %936 = vmatpush2.msra.mxu0 %v409
        %937 = vmatprep.subr.mxu0 %v408
        %938 = vmatpush2.msra.mxu0 %v407
        %939 = vmatprep.subr.mxu0 %v406
        %940 = vmatpush2.msra.mxu0 %v405
        %941 = vmatprep.subr.mxu0 %v404
        %942 = vmatpush2.msra.mxu0 %v403
        %943 = vmatprep.subr.mxu0 %v402
        %944 = vmatpush2.msra.mxu0 %v401
        %945 = vmatprep.subr.mxu0 %v400
        %946 = vmatpush2.msra.mxu0 %v399
        %947 = vmatprep.subr.mxu0 %v398
        %948 = vmatpush2.msra.mxu0 %v397
        %949 = vmatprep.subr.mxu0 %v396
        %950 = vmatpush2.msra.mxu0 %v395
        %951 = vmatprep.mubr.f32.mxu0 %v300
        %952 = vmatmul.mubr.f32.gmra.mxu0 %v299
        %v953 = vpop.f32.mrf.mxu0
        %v954 = vadd.f32 %v880, %v953
        %v955 = vpop.f32.mrf.mxu0
        %v956 = vadd.f32 %v884, %v955
        %957 = vmatprep.mubr.f32.mxu0 %v316
        %958 = vmatmul.mubr.f32.gmra.mxu0 %v315
        %v959 = vpop.f32.mrf.mxu0
        %v960 = vadd.f32 %v880, %v959
        %v961 = vpop.f32.mrf.mxu0
        %v962 = vadd.f32 %v884, %v961
        %963 = vmatprep.mubr.f32.mxu0 %v332
        %964 = vmatmul.mubr.f32.gmra.mxu0 %v331
        %v965 = vpop.f32.mrf.mxu0
        %v966 = vadd.f32 %v880, %v965
        %v967 = vpop.f32.mrf.mxu0
        %v968 = vadd.f32 %v884, %v967
        %969 = vmatprep.mubr.f32.mxu0 %v348
        %970 = vmatmul.mubr.f32.gmra.mxu0 %v347
        %v971 = vpop.f32.mrf.mxu0
        %v972 = vadd.f32 %v880, %v971
        %v973 = vpop.f32.mrf.mxu0
        %v974 = vadd.f32 %v884, %v973
        %975 = vdwg.mxu0
        %976 = vmatprep.subr.mxu0 %v458
        %977 = vmatpush1.msra.mxu0 %v457
        %978 = vmatprep.subr.mxu0 %v456
        %979 = vmatpush1.msra.mxu0 %v455
        %980 = vmatprep.subr.mxu0 %v454
        %981 = vmatpush1.msra.mxu0 %v453
        %982 = vmatprep.subr.mxu0 %v452
        %983 = vmatpush1.msra.mxu0 %v451
        %984 = vmatprep.subr.mxu0 %v450
        %985 = vmatpush1.msra.mxu0 %v449
        %986 = vmatprep.subr.mxu0 %v448
        %987 = vmatpush1.msra.mxu0 %v447
        %988 = vmatprep.subr.mxu0 %v446
        %989 = vmatpush1.msra.mxu0 %v445
        %990 = vmatprep.subr.mxu0 %v444
        %991 = vmatpush1.msra.mxu0 %v443
        %992 = vmatprep.subr.mxu0 %v442
        %993 = vmatpush1.msra.mxu0 %v441
        %994 = vmatprep.subr.mxu0 %v440
        %995 = vmatpush1.msra.mxu0 %v439
        %996 = vmatprep.subr.mxu0 %v438
        %997 = vmatpush1.msra.mxu0 %v437
        %998 = vmatprep.subr.mxu0 %v436
        %999 = vmatpush1.msra.mxu0 %v435
        %1000 = vmatprep.subr.mxu0 %v434
        %1001 = vmatpush1.msra.mxu0 %v433
        %1002 = vmatprep.subr.mxu0 %v432
        %1003 = vmatpush1.msra.mxu0 %v431
        %1004 = vmatprep.subr.mxu0 %v430
        %1005 = vmatpush1.msra.mxu0 %v429
        %1006 = vmatprep.subr.mxu0 %v428
        %1007 = vmatpush1.msra.mxu0 %v427
        %1008 = vmatprep.subr.mxu0 %v490
        %1009 = vmatpush2.msra.mxu0 %v489
        %1010 = vmatprep.subr.mxu0 %v488
        %1011 = vmatpush2.msra.mxu0 %v487
        %1012 = vmatprep.subr.mxu0 %v486
        %1013 = vmatpush2.msra.mxu0 %v485
        %1014 = vmatprep.subr.mxu0 %v484
        %1015 = vmatpush2.msra.mxu0 %v483
        %1016 = vmatprep.subr.mxu0 %v482
        %1017 = vmatpush2.msra.mxu0 %v481
        %1018 = vmatprep.subr.mxu0 %v480
        %1019 = vmatpush2.msra.mxu0 %v479
        %1020 = vmatprep.subr.mxu0 %v478
        %1021 = vmatpush2.msra.mxu0 %v477
        %1022 = vmatprep.subr.mxu0 %v476
        %1023 = vmatpush2.msra.mxu0 %v475
        %1024 = vmatprep.subr.mxu0 %v474
        %1025 = vmatpush2.msra.mxu0 %v473
        %1026 = vmatprep.subr.mxu0 %v472
        %1027 = vmatpush2.msra.mxu0 %v471
        %1028 = vmatprep.subr.mxu0 %v470
        %1029 = vmatpush2.msra.mxu0 %v469
        %1030 = vmatprep.subr.mxu0 %v468
        %1031 = vmatpush2.msra.mxu0 %v467
        %1032 = vmatprep.subr.mxu0 %v466
        %1033 = vmatpush2.msra.mxu0 %v465
        %1034 = vmatprep.subr.mxu0 %v464
        %1035 = vmatpush2.msra.mxu0 %v463
        %1036 = vmatprep.subr.mxu0 %v462
        %1037 = vmatpush2.msra.mxu0 %v461
        %1038 = vmatprep.subr.mxu0 %v460
        %1039 = vmatpush2.msra.mxu0 %v459
        %1040 = vmatprep.mubr.f32.mxu0 %v302
        %1041 = vmatmul.mubr.f32.gmra.mxu0 %v301
        %v1042 = vpop.f32.mrf.mxu0
        %v1043 = vadd.f32 %v954, %v1042
        %v1044 = vpop.f32.mrf.mxu0
        %v1045 = vadd.f32 %v956, %v1044
        %1046 = vmatprep.mubr.f32.mxu0 %v318
        %1047 = vmatmul.mubr.f32.gmra.mxu0 %v317
        %v1048 = vpop.f32.mrf.mxu0
        %v1049 = vadd.f32 %v960, %v1048
        %v1050 = vpop.f32.mrf.mxu0
        %v1051 = vadd.f32 %v962, %v1050
        %1052 = vmatprep.mubr.f32.mxu0 %v334
        %1053 = vmatmul.mubr.f32.gmra.mxu0 %v333
        %v1054 = vpop.f32.mrf.mxu0
        %v1055 = vadd.f32 %v966, %v1054
        %v1056 = vpop.f32.mrf.mxu0
        %v1057 = vadd.f32 %v968, %v1056
        %1058 = vmatprep.mubr.f32.mxu0 %v350
        %1059 = vmatmul.mubr.f32.gmra.mxu0 %v349
        %v1060 = vpop.f32.mrf.mxu0
        %v1061 = vadd.f32 %v972, %v1060
        %v1062 = vpop.f32.mrf.mxu0
        %v1063 = vadd.f32 %v974, %v1062
        %1064 = vdwg.mxu0
        %1065 = vmatprep.subr.mxu0 %v522
        %1066 = vmatpush1.msra.mxu0 %v521
        %1067 = vmatprep.subr.mxu0 %v520
        %1068 = vmatpush1.msra.mxu0 %v519
        %1069 = vmatprep.subr.mxu0 %v518
        %1070 = vmatpush1.msra.mxu0 %v517
        %1071 = vmatprep.subr.mxu0 %v516
        %1072 = vmatpush1.msra.mxu0 %v515
        %1073 = vmatprep.subr.mxu0 %v514
        %1074 = vmatpush1.msra.mxu0 %v513
        %1075 = vmatprep.subr.mxu0 %v512
        %1076 = vmatpush1.msra.mxu0 %v511
        %1077 = vmatprep.subr.mxu0 %v510
        %1078 = vmatpush1.msra.mxu0 %v509
        %1079 = vmatprep.subr.mxu0 %v508
        %1080 = vmatpush1.msra.mxu0 %v507
        %1081 = vmatprep.subr.mxu0 %v506
        %1082 = vmatpush1.msra.mxu0 %v505
        %1083 = vmatprep.subr.mxu0 %v504
        %1084 = vmatpush1.msra.mxu0 %v503
        %1085 = vmatprep.subr.mxu0 %v502
        %1086 = vmatpush1.msra.mxu0 %v501
        %1087 = vmatprep.subr.mxu0 %v500
        %1088 = vmatpush1.msra.mxu0 %v499
        %1089 = vmatprep.subr.mxu0 %v498
        %1090 = vmatpush1.msra.mxu0 %v497
        %1091 = vmatprep.subr.mxu0 %v496
        %1092 = vmatpush1.msra.mxu0 %v495
        %1093 = vmatprep.subr.mxu0 %v494
        %1094 = vmatpush1.msra.mxu0 %v493
        %1095 = vmatprep.subr.mxu0 %v492
        %1096 = vmatpush1.msra.mxu0 %v491
        %1097 = vmatprep.subr.mxu0 %v554
        %1098 = vmatpush2.msra.mxu0 %v553
        %1099 = vmatprep.subr.mxu0 %v552
        %1100 = vmatpush2.msra.mxu0 %v551
        %1101 = vmatprep.subr.mxu0 %v550
        %1102 = vmatpush2.msra.mxu0 %v549
        %1103 = vmatprep.subr.mxu0 %v548
        %1104 = vmatpush2.msra.mxu0 %v547
        %1105 = vmatprep.subr.mxu0 %v546
        %1106 = vmatpush2.msra.mxu0 %v545
        %1107 = vmatprep.subr.mxu0 %v544
        %1108 = vmatpush2.msra.mxu0 %v543
        %1109 = vmatprep.subr.mxu0 %v542
        %1110 = vmatpush2.msra.mxu0 %v541
        %1111 = vmatprep.subr.mxu0 %v540
        %1112 = vmatpush2.msra.mxu0 %v539
        %1113 = vmatprep.subr.mxu0 %v538
        %1114 = vmatpush2.msra.mxu0 %v537
        %1115 = vmatprep.subr.mxu0 %v536
        %1116 = vmatpush2.msra.mxu0 %v535
        %1117 = vmatprep.subr.mxu0 %v534
        %1118 = vmatpush2.msra.mxu0 %v533
        %1119 = vmatprep.subr.mxu0 %v532
        %1120 = vmatpush2.msra.mxu0 %v531
        %1121 = vmatprep.subr.mxu0 %v530
        %1122 = vmatpush2.msra.mxu0 %v529
        %1123 = vmatprep.subr.mxu0 %v528
        %1124 = vmatpush2.msra.mxu0 %v527
        %1125 = vmatprep.subr.mxu0 %v526
        %1126 = vmatpush2.msra.mxu0 %v525
        %1127 = vmatprep.subr.mxu0 %v524
        %1128 = vmatpush2.msra.mxu0 %v523
        %1129 = vmatprep.mubr.f32.mxu0 %v304
        %1130 = vmatmul.mubr.f32.gmra.mxu0 %v303
        %v1131 = vpop.f32.mrf.mxu0
        %v1132 = vadd.f32 %v1043, %v1131
        %v1133 = vpop.f32.mrf.mxu0
        %v1134 = vadd.f32 %v1045, %v1133
        %1135 = vmatprep.mubr.f32.mxu0 %v320
        %1136 = vmatmul.mubr.f32.gmra.mxu0 %v319
        %v1137 = vpop.f32.mrf.mxu0
        %v1138 = vadd.f32 %v1049, %v1137
        %v1139 = vpop.f32.mrf.mxu0
        %v1140 = vadd.f32 %v1051, %v1139
        %1141 = vmatprep.mubr.f32.mxu0 %v336
        %1142 = vmatmul.mubr.f32.gmra.mxu0 %v335
        %v1143 = vpop.f32.mrf.mxu0
        %v1144 = vadd.f32 %v1055, %v1143
        %v1145 = vpop.f32.mrf.mxu0
        %v1146 = vadd.f32 %v1057, %v1145
        %1147 = vmatprep.mubr.f32.mxu0 %v352
        %1148 = vmatmul.mubr.f32.gmra.mxu0 %v351
        %v1149 = vpop.f32.mrf.mxu0
        %v1150 = vadd.f32 %v1061, %v1149
        %v1151 = vpop.f32.mrf.mxu0
        %v1152 = vadd.f32 %v1063, %v1151
        %1153 = vdwg.mxu0
        %1154 = vmatprep.subr.mxu0 %v586
        %1155 = vmatpush1.msra.mxu0 %v585
        %1156 = vmatprep.subr.mxu0 %v584
        %1157 = vmatpush1.msra.mxu0 %v583
        %1158 = vmatprep.subr.mxu0 %v582
        %1159 = vmatpush1.msra.mxu0 %v581
        %1160 = vmatprep.subr.mxu0 %v580
        %1161 = vmatpush1.msra.mxu0 %v579
        %1162 = vmatprep.subr.mxu0 %v578
        %1163 = vmatpush1.msra.mxu0 %v577
        %1164 = vmatprep.subr.mxu0 %v576
        %1165 = vmatpush1.msra.mxu0 %v575
        %1166 = vmatprep.subr.mxu0 %v574
        %1167 = vmatpush1.msra.mxu0 %v573
        %1168 = vmatprep.subr.mxu0 %v572
        %1169 = vmatpush1.msra.mxu0 %v571
        %1170 = vmatprep.subr.mxu0 %v570
        %1171 = vmatpush1.msra.mxu0 %v569
        %1172 = vmatprep.subr.mxu0 %v568
        %1173 = vmatpush1.msra.mxu0 %v567
        %1174 = vmatprep.subr.mxu0 %v566
        %1175 = vmatpush1.msra.mxu0 %v565
        %1176 = vmatprep.subr.mxu0 %v564
        %1177 = vmatpush1.msra.mxu0 %v563
        %1178 = vmatprep.subr.mxu0 %v562
        %1179 = vmatpush1.msra.mxu0 %v561
        %1180 = vmatprep.subr.mxu0 %v560
        %1181 = vmatpush1.msra.mxu0 %v559
        %1182 = vmatprep.subr.mxu0 %v558
        %1183 = vmatpush1.msra.mxu0 %v557
        %1184 = vmatprep.subr.mxu0 %v556
        %1185 = vmatpush1.msra.mxu0 %v555
        %1186 = vmatprep.subr.mxu0 %v618
        %1187 = vmatpush2.msra.mxu0 %v617
        %1188 = vmatprep.subr.mxu0 %v616
        %1189 = vmatpush2.msra.mxu0 %v615
        %1190 = vmatprep.subr.mxu0 %v614
        %1191 = vmatpush2.msra.mxu0 %v613
        %1192 = vmatprep.subr.mxu0 %v612
        %1193 = vmatpush2.msra.mxu0 %v611
        %1194 = vmatprep.subr.mxu0 %v610
        %1195 = vmatpush2.msra.mxu0 %v609
        %1196 = vmatprep.subr.mxu0 %v608
        %1197 = vmatpush2.msra.mxu0 %v607
        %1198 = vmatprep.subr.mxu0 %v606
        %1199 = vmatpush2.msra.mxu0 %v605
        %1200 = vmatprep.subr.mxu0 %v604
        %1201 = vmatpush2.msra.mxu0 %v603
        %1202 = vmatprep.subr.mxu0 %v602
        %1203 = vmatpush2.msra.mxu0 %v601
        %1204 = vmatprep.subr.mxu0 %v600
        %1205 = vmatpush2.msra.mxu0 %v599
        %1206 = vmatprep.subr.mxu0 %v598
        %1207 = vmatpush2.msra.mxu0 %v597
        %1208 = vmatprep.subr.mxu0 %v596
        %1209 = vmatpush2.msra.mxu0 %v595
        %1210 = vmatprep.subr.mxu0 %v594
        %1211 = vmatpush2.msra.mxu0 %v593
        %1212 = vmatprep.subr.mxu0 %v592
        %1213 = vmatpush2.msra.mxu0 %v591
        %1214 = vmatprep.subr.mxu0 %v590
        %1215 = vmatpush2.msra.mxu0 %v589
        %1216 = vmatprep.subr.mxu0 %v588
        %1217 = vmatpush2.msra.mxu0 %v587
        %1218 = vmatprep.mubr.f32.mxu0 %v306
        %1219 = vmatmul.mubr.f32.gmra.mxu0 %v305
        %v1220 = vpop.f32.mrf.mxu0
        %v1221 = vadd.f32 %v1132, %v1220
        %v1222 = vpop.f32.mrf.mxu0
        %v1223 = vadd.f32 %v1134, %v1222
        %1224 = vmatprep.mubr.f32.mxu0 %v322
        %1225 = vmatmul.mubr.f32.gmra.mxu0 %v321
        %v1226 = vpop.f32.mrf.mxu0
        %v1227 = vadd.f32 %v1138, %v1226
        %v1228 = vpop.f32.mrf.mxu0
        %v1229 = vadd.f32 %v1140, %v1228
        %1230 = vmatprep.mubr.f32.mxu0 %v338
        %1231 = vmatmul.mubr.f32.gmra.mxu0 %v337
        %v1232 = vpop.f32.mrf.mxu0
        %v1233 = vadd.f32 %v1144, %v1232
        %v1234 = vpop.f32.mrf.mxu0
        %v1235 = vadd.f32 %v1146, %v1234
        %1236 = vmatprep.mubr.f32.mxu0 %v354
        %1237 = vmatmul.mubr.f32.gmra.mxu0 %v353
        %v1238 = vpop.f32.mrf.mxu0
        %v1239 = vadd.f32 %v1150, %v1238
        %v1240 = vpop.f32.mrf.mxu0
        %v1241 = vadd.f32 %v1152, %v1240
        %1242 = vdwg.mxu0
        %1243 = vmatprep.subr.mxu0 %v650
        %1244 = vmatpush1.msra.mxu0 %v649
        %1245 = vmatprep.subr.mxu0 %v648
        %1246 = vmatpush1.msra.mxu0 %v647
        %1247 = vmatprep.subr.mxu0 %v646
        %1248 = vmatpush1.msra.mxu0 %v645
        %1249 = vmatprep.subr.mxu0 %v644
        %1250 = vmatpush1.msra.mxu0 %v643
        %1251 = vmatprep.subr.mxu0 %v642
        %1252 = vmatpush1.msra.mxu0 %v641
        %1253 = vmatprep.subr.mxu0 %v640
        %1254 = vmatpush1.msra.mxu0 %v639
        %1255 = vmatprep.subr.mxu0 %v638
        %1256 = vmatpush1.msra.mxu0 %v637
        %1257 = vmatprep.subr.mxu0 %v636
        %1258 = vmatpush1.msra.mxu0 %v635
        %1259 = vmatprep.subr.mxu0 %v634
        %1260 = vmatpush1.msra.mxu0 %v633
        %1261 = vmatprep.subr.mxu0 %v632
        %1262 = vmatpush1.msra.mxu0 %v631
        %1263 = vmatprep.subr.mxu0 %v630
        %1264 = vmatpush1.msra.mxu0 %v629
        %1265 = vmatprep.subr.mxu0 %v628
        %1266 = vmatpush1.msra.mxu0 %v627
        %1267 = vmatprep.subr.mxu0 %v626
        %1268 = vmatpush1.msra.mxu0 %v625
        %1269 = vmatprep.subr.mxu0 %v624
        %1270 = vmatpush1.msra.mxu0 %v623
        %1271 = vmatprep.subr.mxu0 %v622
        %1272 = vmatpush1.msra.mxu0 %v621
        %1273 = vmatprep.subr.mxu0 %v620
        %1274 = vmatpush1.msra.mxu0 %v619
        %1275 = vmatprep.subr.mxu0 %v682
        %1276 = vmatpush2.msra.mxu0 %v681
        %1277 = vmatprep.subr.mxu0 %v680
        %1278 = vmatpush2.msra.mxu0 %v679
        %1279 = vmatprep.subr.mxu0 %v678
        %1280 = vmatpush2.msra.mxu0 %v677
        %1281 = vmatprep.subr.mxu0 %v676
        %1282 = vmatpush2.msra.mxu0 %v675
        %1283 = vmatprep.subr.mxu0 %v674
        %1284 = vmatpush2.msra.mxu0 %v673
        %1285 = vmatprep.subr.mxu0 %v672
        %1286 = vmatpush2.msra.mxu0 %v671
        %1287 = vmatprep.subr.mxu0 %v670
        %1288 = vmatpush2.msra.mxu0 %v669
        %1289 = vmatprep.subr.mxu0 %v668
        %1290 = vmatpush2.msra.mxu0 %v667
        %1291 = vmatprep.subr.mxu0 %v666
        %1292 = vmatpush2.msra.mxu0 %v665
        %1293 = vmatprep.subr.mxu0 %v664
        %1294 = vmatpush2.msra.mxu0 %v663
        %1295 = vmatprep.subr.mxu0 %v662
        %1296 = vmatpush2.msra.mxu0 %v661
        %1297 = vmatprep.subr.mxu0 %v660
        %1298 = vmatpush2.msra.mxu0 %v659
        %1299 = vmatprep.subr.mxu0 %v658
        %1300 = vmatpush2.msra.mxu0 %v657
        %1301 = vmatprep.subr.mxu0 %v656
        %1302 = vmatpush2.msra.mxu0 %v655
        %1303 = vmatprep.subr.mxu0 %v654
        %1304 = vmatpush2.msra.mxu0 %v653
        %1305 = vmatprep.subr.mxu0 %v652
        %1306 = vmatpush2.msra.mxu0 %v651
        %1307 = vmatprep.mubr.f32.mxu0 %v308
        %1308 = vmatmul.mubr.f32.gmra.mxu0 %v307
        %v1309 = vpop.f32.mrf.mxu0
        %v1310 = vadd.f32 %v1221, %v1309
        %v1311 = vpop.f32.mrf.mxu0
        %v1312 = vadd.f32 %v1223, %v1311
        %1313 = vmatprep.mubr.f32.mxu0 %v324
        %1314 = vmatmul.mubr.f32.gmra.mxu0 %v323
        %v1315 = vpop.f32.mrf.mxu0
        %v1316 = vadd.f32 %v1227, %v1315
        %v1317 = vpop.f32.mrf.mxu0
        %v1318 = vadd.f32 %v1229, %v1317
        %1319 = vmatprep.mubr.f32.mxu0 %v340
        %1320 = vmatmul.mubr.f32.gmra.mxu0 %v339
        %v1321 = vpop.f32.mrf.mxu0
        %v1322 = vadd.f32 %v1233, %v1321
        %v1323 = vpop.f32.mrf.mxu0
        %v1324 = vadd.f32 %v1235, %v1323
        %1325 = vmatprep.mubr.f32.mxu0 %v356
        %1326 = vmatmul.mubr.f32.gmra.mxu0 %v355
        %v1327 = vpop.f32.mrf.mxu0
        %v1328 = vadd.f32 %v1239, %v1327
        %v1329 = vpop.f32.mrf.mxu0
        %v1330 = vadd.f32 %v1241, %v1329
        %1331 = vdwg.mxu0
        %1332 = vmatprep.subr.mxu0 %v714
        %1333 = vmatpush1.msra.mxu0 %v713
        %1334 = vmatprep.subr.mxu0 %v712
        %1335 = vmatpush1.msra.mxu0 %v711
        %1336 = vmatprep.subr.mxu0 %v710
        %1337 = vmatpush1.msra.mxu0 %v709
        %1338 = vmatprep.subr.mxu0 %v708
        %1339 = vmatpush1.msra.mxu0 %v707
        %1340 = vmatprep.subr.mxu0 %v706
        %1341 = vmatpush1.msra.mxu0 %v705
        %1342 = vmatprep.subr.mxu0 %v704
        %1343 = vmatpush1.msra.mxu0 %v703
        %1344 = vmatprep.subr.mxu0 %v702
        %1345 = vmatpush1.msra.mxu0 %v701
        %1346 = vmatprep.subr.mxu0 %v700
        %1347 = vmatpush1.msra.mxu0 %v699
        %1348 = vmatprep.subr.mxu0 %v698
        %1349 = vmatpush1.msra.mxu0 %v697
        %1350 = vmatprep.subr.mxu0 %v696
        %1351 = vmatpush1.msra.mxu0 %v695
        %1352 = vmatprep.subr.mxu0 %v694
        %1353 = vmatpush1.msra.mxu0 %v693
        %1354 = vmatprep.subr.mxu0 %v692
        %1355 = vmatpush1.msra.mxu0 %v691
        %1356 = vmatprep.subr.mxu0 %v690
        %1357 = vmatpush1.msra.mxu0 %v689
        %1358 = vmatprep.subr.mxu0 %v688
        %1359 = vmatpush1.msra.mxu0 %v687
        %1360 = vmatprep.subr.mxu0 %v686
        %1361 = vmatpush1.msra.mxu0 %v685
        %1362 = vmatprep.subr.mxu0 %v684
        %1363 = vmatpush1.msra.mxu0 %v683
        %1364 = vmatprep.subr.mxu0 %v746
        %1365 = vmatpush2.msra.mxu0 %v745
        %1366 = vmatprep.subr.mxu0 %v744
        %1367 = vmatpush2.msra.mxu0 %v743
        %1368 = vmatprep.subr.mxu0 %v742
        %1369 = vmatpush2.msra.mxu0 %v741
        %1370 = vmatprep.subr.mxu0 %v740
        %1371 = vmatpush2.msra.mxu0 %v739
        %1372 = vmatprep.subr.mxu0 %v738
        %1373 = vmatpush2.msra.mxu0 %v737
        %1374 = vmatprep.subr.mxu0 %v736
        %1375 = vmatpush2.msra.mxu0 %v735
        %1376 = vmatprep.subr.mxu0 %v734
        %1377 = vmatpush2.msra.mxu0 %v733
        %1378 = vmatprep.subr.mxu0 %v732
        %1379 = vmatpush2.msra.mxu0 %v731
        %1380 = vmatprep.subr.mxu0 %v730
        %1381 = vmatpush2.msra.mxu0 %v729
        %1382 = vmatprep.subr.mxu0 %v728
        %1383 = vmatpush2.msra.mxu0 %v727
        %1384 = vmatprep.subr.mxu0 %v726
        %1385 = vmatpush2.msra.mxu0 %v725
        %1386 = vmatprep.subr.mxu0 %v724
        %1387 = vmatpush2.msra.mxu0 %v723
        %1388 = vmatprep.subr.mxu0 %v722
        %1389 = vmatpush2.msra.mxu0 %v721
        %1390 = vmatprep.subr.mxu0 %v720
        %1391 = vmatpush2.msra.mxu0 %v719
        %1392 = vmatprep.subr.mxu0 %v718
        %1393 = vmatpush2.msra.mxu0 %v717
        %1394 = vmatprep.subr.mxu0 %v716
        %1395 = vmatpush2.msra.mxu0 %v715
        %1396 = vmatprep.mubr.f32.mxu0 %v310
        %1397 = vmatmul.mubr.f32.gmra.mxu0 %v309
        %v1398 = vpop.f32.mrf.mxu0
        %v1399 = vadd.f32 %v1310, %v1398
        %v1400 = vpop.f32.mrf.mxu0
        %v1401 = vadd.f32 %v1312, %v1400
        %1402 = vmatprep.mubr.f32.mxu0 %v326
        %1403 = vmatmul.mubr.f32.gmra.mxu0 %v325
        %v1404 = vpop.f32.mrf.mxu0
        %v1405 = vadd.f32 %v1316, %v1404
        %v1406 = vpop.f32.mrf.mxu0
        %v1407 = vadd.f32 %v1318, %v1406
        %1408 = vmatprep.mubr.f32.mxu0 %v342
        %1409 = vmatmul.mubr.f32.gmra.mxu0 %v341
        %v1410 = vpop.f32.mrf.mxu0
        %v1411 = vadd.f32 %v1322, %v1410
        %v1412 = vpop.f32.mrf.mxu0
        %v1413 = vadd.f32 %v1324, %v1412
        %1414 = vmatprep.mubr.f32.mxu0 %v358
        %1415 = vmatmul.mubr.f32.gmra.mxu0 %v357
        %v1416 = vpop.f32.mrf.mxu0
        %v1417 = vadd.f32 %v1328, %v1416
        %v1418 = vpop.f32.mrf.mxu0
        %v1419 = vadd.f32 %v1330, %v1418
        %1420 = vdwg.mxu0
        %1421 = vmatprep.subr.mxu0 %v778
        %1422 = vmatpush1.msra.mxu0 %v777
        %1423 = vmatprep.subr.mxu0 %v776
        %1424 = vmatpush1.msra.mxu0 %v775
        %1425 = vmatprep.subr.mxu0 %v774
        %1426 = vmatpush1.msra.mxu0 %v773
        %1427 = vmatprep.subr.mxu0 %v772
        %1428 = vmatpush1.msra.mxu0 %v771
        %1429 = vmatprep.subr.mxu0 %v770
        %1430 = vmatpush1.msra.mxu0 %v769
        %1431 = vmatprep.subr.mxu0 %v768
        %1432 = vmatpush1.msra.mxu0 %v767
        %1433 = vmatprep.subr.mxu0 %v766
        %1434 = vmatpush1.msra.mxu0 %v765
        %1435 = vmatprep.subr.mxu0 %v764
        %1436 = vmatpush1.msra.mxu0 %v763
        %1437 = vmatprep.subr.mxu0 %v762
        %1438 = vmatpush1.msra.mxu0 %v761
        %1439 = vmatprep.subr.mxu0 %v760
        %1440 = vmatpush1.msra.mxu0 %v759
        %1441 = vmatprep.subr.mxu0 %v758
        %1442 = vmatpush1.msra.mxu0 %v757
        %1443 = vmatprep.subr.mxu0 %v756
        %1444 = vmatpush1.msra.mxu0 %v755
        %1445 = vmatprep.subr.mxu0 %v754
        %1446 = vmatpush1.msra.mxu0 %v753
        %1447 = vmatprep.subr.mxu0 %v752
        %1448 = vmatpush1.msra.mxu0 %v751
        %1449 = vmatprep.subr.mxu0 %v750
        %1450 = vmatpush1.msra.mxu0 %v749
        %1451 = vmatprep.subr.mxu0 %v748
        %1452 = vmatpush1.msra.mxu0 %v747
        %1453 = vmatprep.subr.mxu0 %v810
        %1454 = vmatpush2.msra.mxu0 %v809
        %1455 = vmatprep.subr.mxu0 %v808
        %1456 = vmatpush2.msra.mxu0 %v807
        %1457 = vmatprep.subr.mxu0 %v806
        %1458 = vmatpush2.msra.mxu0 %v805
        %1459 = vmatprep.subr.mxu0 %v804
        %1460 = vmatpush2.msra.mxu0 %v803
        %1461 = vmatprep.subr.mxu0 %v802
        %1462 = vmatpush2.msra.mxu0 %v801
        %1463 = vmatprep.subr.mxu0 %v800
        %1464 = vmatpush2.msra.mxu0 %v799
        %1465 = vmatprep.subr.mxu0 %v798
        %1466 = vmatpush2.msra.mxu0 %v797
        %1467 = vmatprep.subr.mxu0 %v796
        %1468 = vmatpush2.msra.mxu0 %v795
        %1469 = vmatprep.subr.mxu0 %v794
        %1470 = vmatpush2.msra.mxu0 %v793
        %1471 = vmatprep.subr.mxu0 %v792
        %1472 = vmatpush2.msra.mxu0 %v791
        %1473 = vmatprep.subr.mxu0 %v790
        %1474 = vmatpush2.msra.mxu0 %v789
        %1475 = vmatprep.subr.mxu0 %v788
        %1476 = vmatpush2.msra.mxu0 %v787
        %1477 = vmatprep.subr.mxu0 %v786
        %1478 = vmatpush2.msra.mxu0 %v785
        %1479 = vmatprep.subr.mxu0 %v784
        %1480 = vmatpush2.msra.mxu0 %v783
        %1481 = vmatprep.subr.mxu0 %v782
        %1482 = vmatpush2.msra.mxu0 %v781
        %1483 = vmatprep.subr.mxu0 %v780
        %1484 = vmatpush2.msra.mxu0 %v779
        %1485 = vmatprep.mubr.f32.mxu0 %v312
        %1486 = vmatmul.mubr.f32.gmra.mxu0 %v311
        %v1487 = vpop.f32.mrf.mxu0
        %v1488 = vadd.f32 %v1399, %v1487
        %v1489 = vpop.f32.mrf.mxu0
        %v1490 = vadd.f32 %v1401, %v1489
        %1491 = vmatprep.mubr.f32.mxu0 %v328
        %1492 = vmatmul.mubr.f32.gmra.mxu0 %v327
        %v1493 = vpop.f32.mrf.mxu0
        %v1494 = vadd.f32 %v1405, %v1493
        %v1495 = vpop.f32.mrf.mxu0
        %v1496 = vadd.f32 %v1407, %v1495
        %1497 = vmatprep.mubr.f32.mxu0 %v344
        %1498 = vmatmul.mubr.f32.gmra.mxu0 %v343
        %v1499 = vpop.f32.mrf.mxu0
        %v1500 = vadd.f32 %v1411, %v1499
        %v1501 = vpop.f32.mrf.mxu0
        %v1502 = vadd.f32 %v1413, %v1501
        %1503 = vmatprep.mubr.f32.mxu0 %v360
        %1504 = vmatmul.mubr.f32.gmra.mxu0 %v359
        %v1505 = vpop.f32.mrf.mxu0
        %v1506 = vadd.f32 %v1417, %v1505
        %v1507 = vpop.f32.mrf.mxu0
        %v1508 = vadd.f32 %v1419, %v1507
        %1509 = vdwg.mxu0
        %1510 = vmatprep.subr.mxu0 %v842
        %1511 = vmatpush1.msra.mxu0 %v841
        %1512 = vmatprep.subr.mxu0 %v840
        %1513 = vmatpush1.msra.mxu0 %v839
        %1514 = vmatprep.subr.mxu0 %v838
        %1515 = vmatpush1.msra.mxu0 %v837
        %1516 = vmatprep.subr.mxu0 %v836
        %1517 = vmatpush1.msra.mxu0 %v835
        %1518 = vmatprep.subr.mxu0 %v834
        %1519 = vmatpush1.msra.mxu0 %v833
        %1520 = vmatprep.subr.mxu0 %v832
        %1521 = vmatpush1.msra.mxu0 %v831
        %1522 = vmatprep.subr.mxu0 %v830
        %1523 = vmatpush1.msra.mxu0 %v829
        %1524 = vmatprep.subr.mxu0 %v828
        %1525 = vmatpush1.msra.mxu0 %v827
        %1526 = vmatprep.subr.mxu0 %v826
        %1527 = vmatpush1.msra.mxu0 %v825
        %1528 = vmatprep.subr.mxu0 %v824
        %1529 = vmatpush1.msra.mxu0 %v823
        %1530 = vmatprep.subr.mxu0 %v822
        %1531 = vmatpush1.msra.mxu0 %v821
        %1532 = vmatprep.subr.mxu0 %v820
        %1533 = vmatpush1.msra.mxu0 %v819
        %1534 = vmatprep.subr.mxu0 %v818
        %1535 = vmatpush1.msra.mxu0 %v817
        %1536 = vmatprep.subr.mxu0 %v816
        %1537 = vmatpush1.msra.mxu0 %v815
        %1538 = vmatprep.subr.mxu0 %v814
        %1539 = vmatpush1.msra.mxu0 %v813
        %1540 = vmatprep.subr.mxu0 %v812
        %1541 = vmatpush1.msra.mxu0 %v811
        %1542 = vmatprep.subr.mxu0 %v874
        %1543 = vmatpush2.msra.mxu0 %v873
        %1544 = vmatprep.subr.mxu0 %v872
        %1545 = vmatpush2.msra.mxu0 %v871
        %1546 = vmatprep.subr.mxu0 %v870
        %1547 = vmatpush2.msra.mxu0 %v869
        %1548 = vmatprep.subr.mxu0 %v868
        %1549 = vmatpush2.msra.mxu0 %v867
        %1550 = vmatprep.subr.mxu0 %v866
        %1551 = vmatpush2.msra.mxu0 %v865
        %1552 = vmatprep.subr.mxu0 %v864
        %1553 = vmatpush2.msra.mxu0 %v863
        %1554 = vmatprep.subr.mxu0 %v862
        %1555 = vmatpush2.msra.mxu0 %v861
        %1556 = vmatprep.subr.mxu0 %v860
        %1557 = vmatpush2.msra.mxu0 %v859
        %1558 = vmatprep.subr.mxu0 %v858
        %1559 = vmatpush2.msra.mxu0 %v857
        %1560 = vmatprep.subr.mxu0 %v856
        %1561 = vmatpush2.msra.mxu0 %v855
        %1562 = vmatprep.subr.mxu0 %v854
        %1563 = vmatpush2.msra.mxu0 %v853
        %1564 = vmatprep.subr.mxu0 %v852
        %1565 = vmatpush2.msra.mxu0 %v851
        %1566 = vmatprep.subr.mxu0 %v850
        %1567 = vmatpush2.msra.mxu0 %v849
        %1568 = vmatprep.subr.mxu0 %v848
        %1569 = vmatpush2.msra.mxu0 %v847
        %1570 = vmatprep.subr.mxu0 %v846
        %1571 = vmatpush2.msra.mxu0 %v845
        %1572 = vmatprep.subr.mxu0 %v844
        %1573 = vmatpush2.msra.mxu0 %v843
        %1574 = vmatprep.mubr.f32.mxu0 %v314
        %1575 = vmatmul.mubr.f32.gmra.mxu0 %v313
        %v1576 = vpop.f32.mrf.mxu0
        %v1577 = vadd.f32 %v1488, %v1576
        %v1578 = vpop.f32.mrf.mxu0
        %v1579 = vadd.f32 %v1490, %v1578
        %1580 = vmatprep.mubr.f32.mxu0 %v330
        %1581 = vmatmul.mubr.f32.gmra.mxu0 %v329
        %v1582 = vpop.f32.mrf.mxu0
        %v1583 = vadd.f32 %v1494, %v1582
        %v1584 = vpop.f32.mrf.mxu0
        %v1585 = vadd.f32 %v1496, %v1584
        %1586 = vmatprep.mubr.f32.mxu0 %v346
        %1587 = vmatmul.mubr.f32.gmra.mxu0 %v345
        %v1588 = vpop.f32.mrf.mxu0
        %v1589 = vadd.f32 %v1500, %v1588
        %v1590 = vpop.f32.mrf.mxu0
        %v1591 = vadd.f32 %v1502, %v1590
        %1592 = vmatprep.mubr.f32.mxu0 %v362
        %1593 = vmatmul.mubr.f32.gmra.mxu0 %v361
        %v1594 = vpop.f32.mrf.mxu0
        %v1595 = vadd.f32 %v1506, %v1594
        %v1596 = vpop.f32.mrf.mxu0
        %v1597 = vadd.f32 %v1508, %v1596
        %1598 = vdwg.mxu0
        %v1599 = vmax.f32 %v1577, 0.0
        %v1600 = vmax.f32 %v1579, 0.0
        %v1601 = vmax.f32 %v1583, 0.0
        %v1602 = vmax.f32 %v1585, 0.0
        %v1603 = vmax.f32 %v1589, 0.0
        %v1604 = vmax.f32 %v1591, 0.0
        %v1605 = vmax.f32 %v1595, 0.0
        %v1606 = vmax.f32 %v1597, 0.0
        %v1607 = vld [vmem:[#allocation8] sm:$0x3]
        %v1609 = vlaneseq
        %v1610 = vshrl.u32 %v1609, 7
        %v1611 = vsub.s32 0, %v1610
        %v1612 = vrot.slane %v1607, %v1611
        %v1613 = vlaneseq
        %v1614 = vshrl.u32 %v1613, 7
        %v1615 = vsub.s32 1, %v1614
        %v1616 = vrot.slane %v1607, %v1615
        %v1619 = vmul.f32 %v1599, %v1612
        %v1620 = vmul.f32 %v1600, %v1616
        %v1621 = vmul.f32 %v1601, %v1612
        %v1622 = vmul.f32 %v1602, %v1616
        %v1623 = vmul.f32 %v1603, %v1612
        %v1624 = vmul.f32 %v1604, %v1616
        %v1625 = vmul.f32 %v1605, %v1612
        %v1626 = vmul.f32 %v1606, %v1616
        %v1627 = vadd.f32 %v1619, %v1620
        %1628 = vadd.xlane.f32.xlu0 %v1627
        %v1629 = vpop.xlane.xlu0 %1628
        %v1630 = vadd.f32 %v1621, %v1622
        %1631 = vadd.xlane.f32.xlu0 %v1630
        %v1632 = vpop.xlane.xlu0 %1631
        %v1633 = vadd.f32 %v1623, %v1624
        %1634 = vadd.xlane.f32.xlu0 %v1633
        %v1635 = vpop.xlane.xlu0 %1634
        %v1636 = vadd.f32 %v1625, %v1626
        %1637 = vadd.xlane.f32.xlu0 %v1636
        %v1638 = vpop.xlane.xlu0 %1637
        %s1639 = sld [smem:[#allocation2]]
        %v1640 = vstv %s1639
        %v1641 = vadd.f32 %v1629, %v1640
        %v1642 = vadd.f32 %v1632, %v1640
        %v1643 = vadd.f32 %v1635, %v1640
        %v1644 = vadd.f32 %v1638, %v1640
        %v1645 = vsub.f32 0.0, %v1641
        %v1646 = vsub.f32 0.0, %v1642
        %v1647 = vsub.f32 0.0, %v1643
        %v1648 = vsub.f32 0.0, %v1644
        %v1649 = vmul.f32 %v1645, 1.442695
        %v1650 = vpow.pop %v1649
        %v1651 = vmul.f32 %v1646, 1.442695
        %v1652 = vpow.pop %v1651
        %v1653 = vmul.f32 %v1647, 1.442695
        %v1654 = vpow.pop %v1653
        %v1655 = vmul.f32 %v1648, 1.442695
        %v1656 = vpow.pop %v1655
        %v1657 = vadd.f32 %v1650, 1.0
        %v1658 = vadd.f32 %v1652, 1.0
        %v1659 = vadd.f32 %v1654, 1.0
        %v1660 = vadd.f32 %v1656, 1.0
        %v1661 = vrcp.pop %v1657
        %v1662 = vmul.f32 1.0, %v1661
        %v1663 = vrcp.pop %v1658
        %v1664 = vmul.f32 1.0, %v1663
        %v1665 = vrcp.pop %v1659
        %v1666 = vmul.f32 1.0, %v1665
        %v1667 = vrcp.pop %v1660
        %v1668 = vmul.f32 1.0, %v1667
        %v1669 = vmul.f32 %v1662, 46.0
        %v1670 = vmul.f32 %v1664, 46.0
        %v1671 = vmul.f32 %v1666, 46.0
        %v1672 = vmul.f32 %v1668, 46.0
        %v1673 = vadd.f32 %v1669, 0.0
        %v1674 = vadd.f32 %v1670, 0.0
        %v1675 = vadd.f32 %v1671, 0.0
        %v1676 = vadd.f32 %v1672, 0.0
        %vm1677 = vcmask 7168
        %1678 = vst.msk [vmem:[%s287] sm:$0xff] %vm1677, %v1673
        %1679 = vst.msk [vmem:[%s287 + $0x8] sm:$0xff] %vm1677, %v1674
        %1680 = vst.msk [vmem:[%s287 + $0x10] sm:$0xff] %vm1677, %v1675
        %1681 = vst.msk [vmem:[%s287 + $0x18] sm:$0xff] %vm1677, %v1676
        %s1682 = sand.u32 %s140, 1
        %s1683 = sand.u32 %s140, 1
        %s1684 = smul.addr %s1683, 32
        %s1685 = scalar_lea.vmem [#allocation10], %s1684
        // Predicated region
        $region57: #{tpu_custom_call.1} parent=39 // pred_check
          %p1686 = pneg %p150
        $region58: #{tpu_custom_call.1} parent=39 // pred_check_branch
          %1688 = sbr.rel (%p1686) target = $region60
        $region59: #{tpu_custom_call.1} parent=39 // pred_region
          %s1689 = smul.u32 4, %s22
          %s1690 = ssub.s32 13, %s1689
          %p1691 = scmp.lt.s32.totalorder %s1690, 4
          %s1692 = scalar_select %p1691, %s1690, 4
          %s1693 = smul.u32 128, %s1692
          %p1694 = scmp.ne.s32.totalorder 0, %s1693
          %s1695 = smul.addr %s1689, 8
          %s1696 = scalar_lea.vmem %s5, %s1695
          // Predicated region
          $region61: #{tpu_custom_call.1} parent=59 // pred_check
            %p1697 = pneg %p1694
          $region62: #{tpu_custom_call.1} parent=59 // pred_check_branch
            %1699 = sbr.rel (%p1697) target = $region64
          $region63: #{tpu_custom_call.1} parent=59 // pred_region
            // Predicated region
            $region65: #{tpu_custom_call.1} parent=63 // pred_check
              _
            $region66: #{tpu_custom_call.1} parent=63 // pred_check_branch
              %1701 = sbr.rel (0) target = $region68
            $region67: #{tpu_custom_call.1} parent=63 // pred_region
              // Predicated region
              $region87: #{tpu_custom_call.1} parent=67 // pred_check
                _
              $region88: #{tpu_custom_call.1} parent=67 // pred_check_branch
                %1757 = sbr.rel (0) target = $region90
              $region89: #{tpu_custom_call.1} parent=67 // pred_region
                %s1758 = sshrl.u32 %s1692, 2
                // While loop
                $region91: #{tpu_custom_call.1} parent=89 // loop_pre_header
                  _
                $region92: #{tpu_custom_call.1} parent=89 // loop_header
                  %s1760 = sphi 0, %s1762
                  %p1761 = scmp.ge.s32.totalorder %s1760, %s1758
                  %s1765 = sphi 0, %s1778
                  %s1766 = sphi %s1685, %s1781
                  %s1767 = sphi %s1696, %s1782
                $region93: #{tpu_custom_call.1} parent=89 // loop_header_branch
                  %1764 = sbr.rel (%p1761) target = $region97
                $region94: #{tpu_custom_call.1} parent=89 // loop_body
                  %v1768 = vld [vmem:[%s1766] sm:$0xff]
                  %1769 = vst [vmem:[%s1767] sm:$0xff] %v1768
                  %v1770 = vld [vmem:[%s1766 + $0x8] sm:$0xff]
                  %1771 = vst [vmem:[%s1767 + $0x8] sm:$0xff] %v1770
                  %v1772 = vld [vmem:[%s1766 + $0x10] sm:$0xff]
                  %1773 = vst [vmem:[%s1767 + $0x10] sm:$0xff] %v1772
                  %v1774 = vld [vmem:[%s1766 + $0x18] sm:$0xff]
                  %1775 = vst [vmem:[%s1767 + $0x18] sm:$0xff] %v1774
                  %s1776 = sadd.s32 1, %s1765
                  %p1777 = scmp.ge.s32.totalorder %s1776, %s1758
                  %s1778 = scalar_select %p1777, 0, %s1776
                  %s1779 = smul.u32 %s1778, 32
                  %s1780 = smul.u32 %s1778, 32
                  %s1781 = scalar_lea.vmem %s1685, %s1779 [#allocation10]
                  %s1782 = scalar_lea.vmem %s1696, %s1780
                $region95: #{tpu_custom_call.1} parent=89 // loop_footer
                  %s1762 = sadd.s32 %s1760, 1
                $region96: #{tpu_custom_call.1} parent=89 // loop_footer_branch
                  %1759 = sbr.rel target = $region92
                $region97: #{tpu_custom_call.1} parent=89 // loop_exit
                  _
                %s1783 = sshrl.u32 %s1692, 2
                %s1784 = sand.u32 %s1692, 3
                %s1785 = smul.u32 %s1783, 4
                %s1786 = smul.u32 8, %s1785
                %s1787 = scalar_lea.vmem %s1685, %s1786 [#allocation10]
                %s1788 = smul.u32 8, %s1785
                %s1789 = scalar_lea.vmem %s1696, %s1788
                // While loop
                $region98: #{tpu_custom_call.1} parent=89 // loop_pre_header
                  _
                $region99: #{tpu_custom_call.1} parent=89 // loop_header
                  %s1791 = sphi 0, %s1793
                  %p1792 = scmp.ge.s32.totalorder %s1791, %s1784
                  %s1796 = sphi 0, %s1803
                  %s1797 = sphi %s1787, %s1806
                  %s1798 = sphi %s1789, %s1807
                $region100: #{tpu_custom_call.1} parent=89 // loop_header_branch
                  %1795 = sbr.rel (%p1792) target = $region104
                $region101: #{tpu_custom_call.1} parent=89 // loop_body
                  %v1799 = vld [vmem:[%s1797] sm:$0xff]
                  %1800 = vst [vmem:[%s1798] sm:$0xff] %v1799
                  %s1801 = sadd.s32 1, %s1796
                  %p1802 = scmp.ge.s32.totalorder %s1801, %s1784
                  %s1803 = scalar_select %p1802, 0, %s1801
                  %s1804 = smul.u32 %s1803, 8
                  %s1805 = smul.u32 %s1803, 8
                  %s1806 = scalar_lea.vmem %s1787, %s1804 [#allocation10]
                  %s1807 = scalar_lea.vmem %s1789, %s1805
                $region102: #{tpu_custom_call.1} parent=89 // loop_footer
                  %s1793 = sadd.s32 %s1791, 1
                $region103: #{tpu_custom_call.1} parent=89 // loop_footer_branch
                  %1790 = sbr.rel target = $region99
                $region104: #{tpu_custom_call.1} parent=89 // loop_exit
                  _
              $region90: #{tpu_custom_call.1} parent=67 // pred_fallthru
                _
              // Predicated region
              $region105: #{tpu_custom_call.1} parent=67 // pred_check
                _
              $region106: #{tpu_custom_call.1} parent=67 // pred_check_branch
                %1809 = sbr.rel target = $region108
              $region107: #{tpu_custom_call.1} parent=67 // pred_region
                _
              $region108: #{tpu_custom_call.1} parent=67 // pred_fallthru
                _
            $region68: #{tpu_custom_call.1} parent=63 // pred_fallthru
              _
            // Predicated region
            $region69: #{tpu_custom_call.1} parent=63 // pred_check
              _
            $region70: #{tpu_custom_call.1} parent=63 // pred_check_branch
              %1703 = sbr.rel target = $region72
            $region71: #{tpu_custom_call.1} parent=63 // pred_region
              %s1705 = ssub.s32 256, 1
              %s1706 = sshrl.u32 %s1692, 2
              // While loop
              $region73: #{tpu_custom_call.1} parent=71 // loop_pre_header
                _
              $region74: #{tpu_custom_call.1} parent=71 // loop_header
                %s1708 = sphi 0, %s1710
                %p1709 = scmp.ge.s32.totalorder %s1708, %s1706
                %s1713 = sphi 0, %s1726
                %s1714 = sphi %s1685, %s1729
                %s1715 = sphi %s1696, %s1730
              $region75: #{tpu_custom_call.1} parent=71 // loop_header_branch
                %1712 = sbr.rel (%p1709) target = $region79
              $region76: #{tpu_custom_call.1} parent=71 // loop_body
                %v1716 = vld [vmem:[%s1714] sm:%s1705]
                %1717 = vst [vmem:[%s1715] sm:%s1705] %v1716
                %v1718 = vld [vmem:[%s1714 + $0x8] sm:%s1705]
                %1719 = vst [vmem:[%s1715 + $0x8] sm:%s1705] %v1718
                %v1720 = vld [vmem:[%s1714 + $0x10] sm:%s1705]
                %1721 = vst [vmem:[%s1715 + $0x10] sm:%s1705] %v1720
                %v1722 = vld [vmem:[%s1714 + $0x18] sm:%s1705]
                %1723 = vst [vmem:[%s1715 + $0x18] sm:%s1705] %v1722
                %s1724 = sadd.s32 1, %s1713
                %p1725 = scmp.ge.s32.totalorder %s1724, %s1706
                %s1726 = scalar_select %p1725, 0, %s1724
                %s1727 = smul.u32 %s1726, 32
                %s1728 = smul.u32 %s1726, 32
                %s1729 = scalar_lea.vmem %s1685, %s1727 [#allocation10]
                %s1730 = scalar_lea.vmem %s1696, %s1728
              $region77: #{tpu_custom_call.1} parent=71 // loop_footer
                %s1710 = sadd.s32 %s1708, 1
              $region78: #{tpu_custom_call.1} parent=71 // loop_footer_branch
                %1707 = sbr.rel target = $region74
              $region79: #{tpu_custom_call.1} parent=71 // loop_exit
                _
              %s1731 = sshrl.u32 %s1692, 2
              %s1732 = sand.u32 %s1692, 3
              %s1733 = smul.u32 %s1731, 4
              %s1734 = smul.u32 8, %s1733
              %s1735 = scalar_lea.vmem %s1685, %s1734 [#allocation10]
              %s1736 = smul.u32 8, %s1733
              %s1737 = scalar_lea.vmem %s1696, %s1736
              // While loop
              $region80: #{tpu_custom_call.1} parent=71 // loop_pre_header
                _
              $region81: #{tpu_custom_call.1} parent=71 // loop_header
                %s1739 = sphi 0, %s1741
                %p1740 = scmp.ge.s32.totalorder %s1739, %s1732
                %s1744 = sphi 0, %s1751
                %s1745 = sphi %s1735, %s1754
                %s1746 = sphi %s1737, %s1755
              $region82: #{tpu_custom_call.1} parent=71 // loop_header_branch
                %1743 = sbr.rel (%p1740) target = $region86
              $region83: #{tpu_custom_call.1} parent=71 // loop_body
                %v1747 = vld [vmem:[%s1745] sm:%s1705]
                %1748 = vst [vmem:[%s1746] sm:%s1705] %v1747
                %s1749 = sadd.s32 1, %s1744
                %p1750 = scmp.ge.s32.totalorder %s1749, %s1732
                %s1751 = scalar_select %p1750, 0, %s1749
                %s1752 = smul.u32 %s1751, 8
                %s1753 = smul.u32 %s1751, 8
                %s1754 = scalar_lea.vmem %s1735, %s1752 [#allocation10]
                %s1755 = scalar_lea.vmem %s1737, %s1753
              $region84: #{tpu_custom_call.1} parent=71 // loop_footer
                %s1741 = sadd.s32 %s1739, 1
              $region85: #{tpu_custom_call.1} parent=71 // loop_footer_branch
                %1738 = sbr.rel target = $region81
              $region86: #{tpu_custom_call.1} parent=71 // loop_exit
                _
            $region72: #{tpu_custom_call.1} parent=63 // pred_fallthru
              _
          $region64: #{tpu_custom_call.1} parent=59 // pred_fallthru
            _
          %1810 = vnop
        $region60: #{tpu_custom_call.1} parent=39 // pred_fallthru
          _
      $region40: #{tpu_custom_call.1} parent=5 // pred_fallthru
        _
      %p1811 = scmp.le.s32.totalorder 2, %s17
      // Predicated region
      $region109: #{tpu_custom_call.1} parent=5 // pred_check
        %p1812 = pneg %p1811
      $region110: #{tpu_custom_call.1} parent=5 // pred_check_branch
        %1814 = sbr.rel (%p1812) target = $region112
      $region111: #{tpu_custom_call.1} parent=5 // pred_region
        %s1815 = ssub.s32 %s17, 2
        // Predicated region
        $region113: #{tpu_custom_call.1} parent=111 // pred_check
          %p1816 = pneg %p156
        $region114: #{tpu_custom_call.1} parent=111 // pred_check_branch
          %1818 = sbr.rel (%p1816) target = $region116
        $region115: #{tpu_custom_call.1} parent=111 // pred_region
          %s1819 = sand.u32 %s141, 1
          %s1820 = sand.u32 %s141, 1
          %s1821 = smul.addr %s1820, 32
          %s1822 = scalar_lea.vmem [#allocation10], %s1821
        $region116: #{tpu_custom_call.1} parent=111 // pred_fallthru
          _
      $region112: #{tpu_custom_call.1} parent=5 // pred_fallthru
        _
    $region6: #{tpu_custom_call.1} parent=1 // loop_footer
      %s21 = sadd.s32 1, %s17
    $region7: #{tpu_custom_call.1} parent=1 // loop_footer_branch
      %16 = sbr.rel target = $region3
    $region8: #{tpu_custom_call.1} parent=1 // loop_exit
      _
    %1823 = vsyncpa [#allocation4], 1
    %s1824 = scalar_lea.sflag [#allocation4], 1
    %1825 = vsyncpa %s1824, 1
    %1826 = vsyncpa [#allocation6], 1
    %1827 = vsyncpa [#allocation9], 1

// kernel: tpu_custom_call.1
$region0: #{tpu_custom_call.1}
  #allocation0 [shape = 'u32[]', space=smem, size = 0x4, offset = 0x4, fixed_abs, tag = 'smem constant byte address 0x4 - core index']
  #allocation1 [shape = 'u32[144,128]{1,0:T(1,128)}', space=vmem, size = 0x12000, scoped, tag = 'internal scratch']
  #allocation2 [shape = 'f32[1]{0:T(128)S(6)}', space=smem, size = 0x200, scoped, tag = 'scoped memory for tpu_custom_call.1']
  %s0 = inlined_call_operand.hbm [shape: f32[100,2048], index: 0, kind: input, shape index: {}]
  %s1 = inlined_call_operand.hbm [shape: f32[2048,256], index: 1, kind: input, shape index: {}]
  %s2 = inlined_call_operand.hbm [shape: f32[1,256], index: 2, kind: input, shape index: {}]
  %s3 = inlined_call_operand.hbm [shape: f32[1,256], index: 3, kind: input, shape index: {}]
  %s4 = inlined_call_operand.<no memory space> [shape: f32[1], index: 4, kind: input, shape index: {}]
  %s5 = inlined_call_operand.vmem [shape: f32[100,1], index: 5, kind: output, shape index: {}]
  %s6 = sld [smem:[#allocation0]]
  $region117: #{tpu_custom_call.1} parent=0
    _
  %s8 = ssub.s32 1, %s6
  %s9 = scalar_select 0, %s8, %s6
  %10 = sst [smem:[#allocation2]] %s4
  $region1: #{tpu_custom_call.1} parent=0
    #allocation3 [shape = 'u8[524288]{0}', space=vmem, size = 0x80000, scoped, tag = 'input window, operand 0']
    #allocation4 [shape = 's32[2]{0}', space=sflag, size = 0x8, scoped, tag = 'scoped memory for tpu_custom_call.1']
    #allocation5 [shape = 'u8[2097152]{0}', space=vmem, size = 0x200000, scoped, tag = 'input window, operand 1, single buffered']
    #allocation6 [shape = 's32[1]{0}', space=sflag, size = 0x4, scoped, tag = 'scoped memory for tpu_custom_call.1']
    #allocation7 [shape = 'u8[1024]{0}', space=vmem, size = 0x400, scoped, tag = 'input window, operand 2, single buffered']
    #allocation8 [shape = 'u8[1024]{0}', space=vmem, size = 0x400, scoped, tag = 'input window, operand 3, single buffered']
    #allocation9 [shape = 's32[1]{0}', space=sflag, size = 0x4, scoped, tag = 'scoped memory for tpu_custom_call.1']
    #allocation10 [shape = 'u8[32768]{0}', space=vmem, size = 0x8000, scoped, tag = 'output window, operand 0']
    %11 = vsyncpa [#allocation4], 0
    %s12 = scalar_lea.sflag [#allocation4], 1
    %13 = vsyncpa %s12, 0
    %14 = vsyncpa [#allocation6], 0
    %15 = vsyncpa [#allocation9], 0
    loop: start=0, step=1, limit=6
    $region2: #{tpu_custom_call.1} parent=1 // loop_pre_header
      _
    $region3: #{tpu_custom_call.1} parent=1 // loop_header
      %s17 = sphi 0, %s21
      %p18 = scmp.ge.s32.totalorder %s17, 6
      %s27 = sphi 0, %s29
      %s30 = sphi 0, %s27
      %s31 = sphi 0, %s30
      %s47 = sphi 0, %s31
      %s51 = sphi 0, %s51
      %s53 = sphi 0, %s51
      %s54 = sphi 0, %s53
      %s68 = sphi 0, %s54
      %s72 = sphi 0, %s72
      %s74 = sphi 0, %s72
      %s75 = sphi 0, %s74
      %s89 = sphi 0, %s75
      %s93 = sphi 0, %s93
      %s95 = sphi 0, %s93
      %s96 = sphi 0, %s95
      %s110 = sphi 0, %s96
      %s114 = sphi 0, %s114
      %s116 = sphi 0, %s114
      %s117 = sphi 0, %s116
      %s131 = sphi 0, %s117
      %s137 = sphi 0, %s139
      %s140 = sphi 0, %s137
      %s141 = sphi 0, %s140
      %s157 = sphi 0, %s141
    $region4: #{tpu_custom_call.1} parent=1 // loop_header_branch
      %20 = sbr.rel (%p18) target = $region8
    $region5: #{tpu_custom_call.1} parent=1 // loop_body
      %s22 = ssub.s32 %s17, 1
      %s23 = ssub.s32 %s17, 2
      %s24 = sadd.s32 %s17, 1
      %s25 = ssub.s32 %s17, %s24
      %p26 = scmp.eq.s32.totalorder %s25, 0
      %s28 = sadd.s32 %s27, 1
      %s29 = scalar_select %p26, %s27, %s28
      %p32 = pneg %p26
      %p33 = scmp.eq.s32.totalorder %s17, 3
      %p34 = por %p32, %p33
      %p35 = scmp.ne.s32.totalorder %s27, %s30
      %p36 = scmp.eq.s32.totalorder %s17, 0
      %p37 = por %p35, %p36
      %p38 = scmp.ne.s32.totalorder %s27, %s30
      %p39 = scmp.eq.s32.totalorder %s22, 3
      %p40 = por %p38, %p39
      %p41 = scmp.ne.s32.totalorder %s30, %s31
      %p42 = scmp.eq.s32.totalorder %s22, 0
      %p43 = por %p41, %p42
      %p44 = scmp.ne.s32.totalorder %s30, %s31
      %p45 = scmp.eq.s32.totalorder %s23, 3
      %p46 = por %p44, %p45
      %p48 = scmp.ne.s32.totalorder %s31, %s47
      %p49 = scmp.eq.s32.totalorder %s23, 0
      %p50 = por %p48, %p49
      %s52 = sadd.s32 %s51, 1
      %p55 = scmp.eq.s32.totalorder %s17, 3
      %p56 = scmp.ne.s32.totalorder %s51, %s53
      %p57 = scmp.eq.s32.totalorder %s17, 0
      %p58 = por %p56, %p57
      %p59 = scmp.ne.s32.totalorder %s51, %s53
      %p60 = scmp.eq.s32.totalorder %s22, 3
      %p61 = por %p59, %p60
      %p62 = scmp.ne.s32.totalorder %s53, %s54
      %p63 = scmp.eq.s32.totalorder %s22, 0
      %p64 = por %p62, %p63
      %p65 = scmp.ne.s32.totalorder %s53, %s54
      %p66 = scmp.eq.s32.totalorder %s23, 3
      %p67 = por %p65, %p66
      %p69 = scmp.ne.s32.totalorder %s54, %s68
      %p70 = scmp.eq.s32.totalorder %s23, 0
      %p71 = por %p69, %p70
      %s73 = sadd.s32 %s72, 1
      %p76 = scmp.eq.s32.totalorder %s17, 3
      %p77 = scmp.ne.s32.totalorder %s72, %s74
      %p78 = scmp.eq.s32.totalorder %s17, 0
      %p79 = por %p77, %p78
      %p80 = scmp.ne.s32.totalorder %s72, %s74
      %p81 = scmp.eq.s32.totalorder %s22, 3
      %p82 = por %p80, %p81
      %p83 = scmp.ne.s32.totalorder %s74, %s75
      %p84 = scmp.eq.s32.totalorder %s22, 0
      %p85 = por %p83, %p84
      %p86 = scmp.ne.s32.totalorder %s74, %s75
      %p87 = scmp.eq.s32.totalorder %s23, 3
      %p88 = por %p86, %p87
      %p90 = scmp.ne.s32.totalorder %s75, %s89
      %p91 = scmp.eq.s32.totalorder %s23, 0
      %p92 = por %p90, %p91
      %s94 = sadd.s32 %s93, 1
      %p97 = scmp.eq.s32.totalorder %s17, 3
      %p98 = scmp.ne.s32.totalorder %s93, %s95
      %p99 = scmp.eq.s32.totalorder %s17, 0
      %p100 = por %p98, %p99
      %p101 = scmp.ne.s32.totalorder %s93, %s95
      %p102 = scmp.eq.s32.totalorder %s22, 3
      %p103 = por %p101, %p102
      %p104 = scmp.ne.s32.totalorder %s95, %s96
      %p105 = scmp.eq.s32.totalorder %s22, 0
      %p106 = por %p104, %p105
      %p107 = scmp.ne.s32.totalorder %s95, %s96
      %p108 = scmp.eq.s32.totalorder %s23, 3
      %p109 = por %p107, %p108
      %p111 = scmp.ne.s32.totalorder %s96, %s110
      %p112 = scmp.eq.s32.totalorder %s23, 0
      %p113 = por %p111, %p112
      %s115 = sadd.s32 %s114, 1
      %p118 = scmp.eq.s32.totalorder %s17, 3
      %p119 = scmp.ne.s32.totalorder %s114, %s116
      %p120 = scmp.eq.s32.totalorder %s17, 0
      %p121 = por %p119, %p120
      %p122 = scmp.ne.s32.totalorder %s114, %s116
      %p123 = scmp.eq.s32.totalorder %s22, 3
      %p124 = por %p122, %p123
      %p125 = scmp.ne.s32.totalorder %s116, %s117
      %p126 = scmp.eq.s32.totalorder %s22, 0
      %p127 = por %p125, %p126
      %p128 = scmp.ne.s32.totalorder %s116, %s117
      %p129 = scmp.eq.s32.totalorder %s23, 3
      %p130 = por %p128, %p129
      %p132 = scmp.ne.s32.totalorder %s117, %s131
      %p133 = scmp.eq.s32.totalorder %s23, 0
      %p134 = por %p132, %p133
      %s135 = ssub.s32 %s17, %s24
      %p136 = scmp.eq.s32.totalorder %s135, 0
      %s138 = sadd.s32 %s137, 1
      %s139 = scalar_select %p136, %s137, %s138
      %p142 = pneg %p136
      %p143 = scmp.eq.s32.totalorder %s17, 3
      %p144 = por %p142, %p143
      %p145 = scmp.ne.s32.totalorder %s137, %s140
      %p146 = scmp.eq.s32.totalorder %s17, 0
      %p147 = por %p145, %p146
      %p148 = scmp.ne.s32.totalorder %s137, %s140
      %p149 = scmp.eq.s32.totalorder %s22, 3
      %p150 = por %p148, %p149
      %p151 = scmp.ne.s32.totalorder %s140, %s141
      %p152 = scmp.eq.s32.totalorder %s22, 0
      %p153 = por %p151, %p152
      %p154 = scmp.ne.s32.totalorder %s140, %s141
      %p155 = scmp.eq.s32.totalorder %s23, 3
      %p156 = por %p154, %p155
      %p158 = scmp.ne.s32.totalorder %s141, %s157
      %p159 = scmp.eq.s32.totalorder %s23, 0
      %p160 = por %p158, %p159
      %p161 = scmp.le.s32.totalorder 1, %s17
      %p162 = scmp.lt.s32.totalorder %s17, 5
      %p163 = pnand %p161, %p162
      %p164 = pneg %p163
      // Predicated region
      $region9: #{tpu_custom_call.1} parent=5 // pred_check
        _
      $region10: #{tpu_custom_call.1} parent=5 // pred_check_branch
        %166 = sbr.rel (%p163) target = $region12
      $region11: #{tpu_custom_call.1} parent=5 // pred_region
        %s167 = ssub.s32 %s17, 1
        // Predicated region
        $region13: #{tpu_custom_call.1} parent=11 // pred_check
          %p168 = pneg %p64
        $region14: #{tpu_custom_call.1} parent=11 // pred_check_branch
          %170 = sbr.rel (%p168) target = $region16
        $region15: #{tpu_custom_call.1} parent=11 // pred_region
          %s172 = ssub.s32 65536, 65536
          %173 = vsyncadd [#allocation6], %s172
          %s174 = sshll.u32 [#allocation5], 4
          %s175 = int_to_ptr.vmem [resolvable:$true] %s174
          %180 = dma.hbm_to_vmem [thread:$0]  %s1, 65536, %s175, [#allocation6], 256, 256, 16
        $region16: #{tpu_custom_call.1} parent=11 // pred_fallthru
          _
        // Predicated region
        $region17: #{tpu_custom_call.1} parent=11 // pred_check
          %p181 = pneg %p85
        $region18: #{tpu_custom_call.1} parent=11 // pred_check_branch
          %183 = sbr.rel (%p181) target = $region20
        $region19: #{tpu_custom_call.1} parent=11 // pred_region
          %s185 = ssub.s32 32, 32
          %186 = vsyncadd [#allocation6], %s185
          %s188 = sshll.u32 [#allocation7], 4
          %s189 = int_to_ptr.vmem [resolvable:$true] %s188
          %191 = dma.hbm_to_vmem [thread:$0]  %s2, 32, %s189, [#allocation6]
        $region20: #{tpu_custom_call.1} parent=11 // pred_fallthru
          _
        // Predicated region
        $region21: #{tpu_custom_call.1} parent=11 // pred_check
          %p192 = pneg %p106
        $region22: #{tpu_custom_call.1} parent=11 // pred_check_branch
          %194 = sbr.rel (%p192) target = $region24
        $region23: #{tpu_custom_call.1} parent=11 // pred_region
          %s196 = ssub.s32 32, 32
          %197 = vsyncadd [#allocation9], %s196
          %s199 = sshll.u32 [#allocation8], 4
          %s200 = int_to_ptr.vmem [resolvable:$true] %s199
          %202 = dma.hbm_to_vmem [thread:$0]  %s3, 32, %s200, [#allocation9]
        $region24: #{tpu_custom_call.1} parent=11 // pred_fallthru
          _
        // Predicated region
        $region25: #{tpu_custom_call.1} parent=11 // pred_check
          %p203 = pneg %p127
        $region26: #{tpu_custom_call.1} parent=11 // pred_check_branch
          %205 = sbr.rel (%p203) target = $region28
        $region27: #{tpu_custom_call.1} parent=11 // pred_region
          _
        $region28: #{tpu_custom_call.1} parent=11 // pred_fallthru
          _
      $region12: #{tpu_custom_call.1} parent=5 // pred_fallthru
        _
      %p206 = scmp.lt.s32.totalorder %s17, 4
      // Predicated region
      $region29: #{tpu_custom_call.1} parent=5 // pred_check
        %p207 = pneg %p206
      $region30: #{tpu_custom_call.1} parent=5 // pred_check_branch
        %209 = sbr.rel (%p207) target = $region32
      $region31: #{tpu_custom_call.1} parent=5 // pred_region
        // Predicated region
        $region33: #{tpu_custom_call.1} parent=31 // pred_check
          %p210 = pneg %p37
        $region34: #{tpu_custom_call.1} parent=31 // pred_check_branch
          %212 = sbr.rel (%p210) target = $region36
        $region35: #{tpu_custom_call.1} parent=31 // pred_region
          %s213 = sand.u32 %s27, 1
          %s214 = scalar_lea.sflag [#allocation4], %s213
          %s215 = sand.u32 %s27, 1
          %s216 = smul.addr %s215, 512
          %s217 = scalar_lea.vmem [#allocation3], %s216
          %s218 = smul.u32 4, %s17
          %s219 = ssub.s32 13, %s218
          %p220 = scmp.lt.s32.totalorder %s219, 4
          %s221 = scalar_select %p220, %s219, 4
          %s222 = smul.u32 128, %s221
          %s223 = smul.u32 %s222, 16
          %s225 = ssub.s32 8192, %s223
          %226 = vsyncadd %s214, %s225
          %p227 = scmp.ne.s32.totalorder 0, %s223
          %s228 = smul.addr %s218, 16
          %s229 = smul.addr %s228, 128
          %s230 = scalar_lea.hbm %s0, %s229
          %s231 = smul.u32 128, %s221
          %s232 = sshll.u32 %s217, 4
          %s233 = int_to_ptr.vmem [resolvable:$true] %s232
          %s234 = sshll.u32 %s231, 4
          %238 = dma.hbm_to_vmem [thread:$0]  (%p227), %s230, %s234, %s233, %s214, 2048, 2048, 128
        $region36: #{tpu_custom_call.1} parent=31 // pred_fallthru
          _
      $region32: #{tpu_custom_call.1} parent=5 // pred_fallthru
        _
      %p239 = scmp.le.s32.totalorder 1, %s17
      %p240 = scmp.lt.s32.totalorder %s17, 5
      %p241 = pnand %p239, %p240
      %p242 = pneg %p241
      // Predicated region
      $region37: #{tpu_custom_call.1} parent=5 // pred_check
        _
      $region38: #{tpu_custom_call.1} parent=5 // pred_check_branch
        %244 = sbr.rel (%p241) target = $region40
      $region39: #{tpu_custom_call.1} parent=5 // pred_region
        %s245 = ssub.s32 %s17, 1
        %s246 = sand.u32 %s30, 1
        %s247 = scalar_lea.sflag [#allocation4], %s246
        %s248 = sand.u32 %s30, 1
        %s249 = smul.addr %s248, 512
        %s250 = scalar_lea.vmem [#allocation3], %s249
        // Predicated region
        $region41: #{tpu_custom_call.1} parent=39 // pred_check
          %p251 = pneg %p43
        $region42: #{tpu_custom_call.1} parent=39 // pred_check_branch
          %253 = sbr.rel (%p251) target = $region44
        $region43: #{tpu_custom_call.1} parent=39 // pred_region
          %254 = dma.done %s247, 8192
        $region44: #{tpu_custom_call.1} parent=39 // pred_fallthru
          _
        // Predicated region
        $region45: #{tpu_custom_call.1} parent=39 // pred_check
          %p255 = pneg %p64
        $region46: #{tpu_custom_call.1} parent=39 // pred_check_branch
          %257 = sbr.rel (%p255) target = $region48
        $region47: #{tpu_custom_call.1} parent=39 // pred_region
          %258 = dma.done [#allocation6], 65536
        $region48: #{tpu_custom_call.1} parent=39 // pred_fallthru
          _
        // Predicated region
        $region49: #{tpu_custom_call.1} parent=39 // pred_check
          %p259 = pneg %p85
        $region50: #{tpu_custom_call.1} parent=39 // pred_check_branch
          %261 = sbr.rel (%p259) target = $region52
        $region51: #{tpu_custom_call.1} parent=39 // pred_region
          %262 = dma.done [#allocation6], 32
        $region52: #{tpu_custom_call.1} parent=39 // pred_fallthru
          _
        // Predicated region
        $region53: #{tpu_custom_call.1} parent=39 // pred_check
          %p263 = pneg %p106
        $region54: #{tpu_custom_call.1} parent=39 // pred_check_branch
          %265 = sbr.rel (%p263) target = $region56
        $region55: #{tpu_custom_call.1} parent=39 // pred_region
          %266 = dma.done [#allocation9], 32
        $region56: #{tpu_custom_call.1} parent=39 // pred_fallthru
          _
        %s267 = sand.u32 %s30, 1
        %s268 = scalar_lea.sflag [#allocation4], %s267
        %s269 = sand.u32 %s30, 1
        %s270 = smul.addr %s269, 512
        %s271 = scalar_lea.vmem [#allocation3], %s270
        %p272 = pneg %p43
        %p273 = pneg %p40
        %p274 = pneg %p64
        %p275 = pneg %p61
        %p276 = pneg %p85
        %p277 = pneg %p82
        %p278 = pneg %p106
        %p279 = pneg %p103
        %p280 = pneg %p127
        %p281 = pneg %p124
        %p282 = pneg %p153
        %p283 = pneg %p150
        %s284 = sand.u32 %s140, 1
        %s285 = sand.u32 %s140, 1
        %s286 = smul.addr %s285, 32
        %s287 = scalar_lea.vmem [#allocation10], %s286
        %s288 = smul.u32 4, %s22
        %s289 = ssub.s32 13, %s288
        %p290 = scmp.lt.s32.totalorder %s289, 4
        %s291 = scalar_select %p290, %s289, 4
        %s292 = smul.u32 128, %s291
        %s293 = smul.u32 %s292, 16
        %s294 = smul.u32 4, %s22
        %s295 = ssub.s32 13, %s294
        %p296 = scmp.lt.s32.totalorder %s295, 4
        %s297 = scalar_select %p296, %s295, 4
        %s298 = smul.u32 128, %s297
        %v299 = vld [vmem:[%s250] sm:$0xff]
        %v300 = vld [vmem:[%s250 + $0x8] sm:$0xff]
        %v301 = vld [vmem:[%s250 + $0x10] sm:$0xff]
        %v302 = vld [vmem:[%s250 + $0x18] sm:$0xff]
        %v303 = vld [vmem:[%s250 + $0x20] sm:$0xff]
        %v304 = vld [vmem:[%s250 + $0x28] sm:$0xff]
        %v305 = vld [vmem:[%s250 + $0x30] sm:$0xff]
        %v306 = vld [vmem:[%s250 + $0x38] sm:$0xff]
        %v307 = vld [vmem:[%s250 + $0x40] sm:$0xff]
        %v308 = vld [vmem:[%s250 + $0x48] sm:$0xff]
        %v309 = vld [vmem:[%s250 + $0x50] sm:$0xff]
        %v310 = vld [vmem:[%s250 + $0x58] sm:$0xff]
        %v311 = vld [vmem:[%s250 + $0x60] sm:$0xff]
        %v312 = vld [vmem:[%s250 + $0x68] sm:$0xff]
        %v313 = vld [vmem:[%s250 + $0x70] sm:$0xff]
        %v314 = vld [vmem:[%s250 + $0x78] sm:$0xff]
        %v315 = vld [vmem:[%s250 + $0x80] sm:$0xff]
        %v316 = vld [vmem:[%s250 + $0x88] sm:$0xff]
        %v317 = vld [vmem:[%s250 + $0x90] sm:$0xff]
        %v318 = vld [vmem:[%s250 + $0x98] sm:$0xff]
        %v319 = vld [vmem:[%s250 + $0xa0] sm:$0xff]
        %v320 = vld [vmem:[%s250 + $0xa8] sm:$0xff]
        %v321 = vld [vmem:[%s250 + $0xb0] sm:$0xff]
        %v322 = vld [vmem:[%s250 + $0xb8] sm:$0xff]
        %v323 = vld [vmem:[%s250 + $0xc0] sm:$0xff]
        %v324 = vld [vmem:[%s250 + $0xc8] sm:$0xff]
        %v325 = vld [vmem:[%s250 + $0xd0] sm:$0xff]
        %v326 = vld [vmem:[%s250 + $0xd8] sm:$0xff]
        %v327 = vld [vmem:[%s250 + $0xe0] sm:$0xff]
        %v328 = vld [vmem:[%s250 + $0xe8] sm:$0xff]
        %v329 = vld [vmem:[%s250 + $0xf0] sm:$0xff]
        %v330 = vld [vmem:[%s250 + $0xf8] sm:$0xff]
        %v331 = vld [vmem:[%s250 + $0x100] sm:$0xff]
        %v332 = vld [vmem:[%s250 + $0x108] sm:$0xff]
        %v333 = vld [vmem:[%s250 + $0x110] sm:$0xff]
        %v334 = vld [vmem:[%s250 + $0x118] sm:$0xff]
        %v335 = vld [vmem:[%s250 + $0x120] sm:$0xff]
        %v336 = vld [vmem:[%s250 + $0x128] sm:$0xff]
        %v337 = vld [vmem:[%s250 + $0x130] sm:$0xff]
        %v338 = vld [vmem:[%s250 + $0x138] sm:$0xff]
        %v339 = vld [vmem:[%s250 + $0x140] sm:$0xff]
        %v340 = vld [vmem:[%s250 + $0x148] sm:$0xff]
        %v341 = vld [vmem:[%s250 + $0x150] sm:$0xff]
        %v342 = vld [vmem:[%s250 + $0x158] sm:$0xff]
        %v343 = vld [vmem:[%s250 + $0x160] sm:$0xff]
        %v344 = vld [vmem:[%s250 + $0x168] sm:$0xff]
        %v345 = vld [vmem:[%s250 + $0x170] sm:$0xff]
        %v346 = vld [vmem:[%s250 + $0x178] sm:$0xff]
        %v347 = vld [vmem:[%s250 + $0x180] sm:$0xff]
        %v348 = vld [vmem:[%s250 + $0x188] sm:$0xff]
        %v349 = vld [vmem:[%s250 + $0x190] sm:$0xff]
        %v350 = vld [vmem:[%s250 + $0x198] sm:$0xff]
        %v351 = vld [vmem:[%s250 + $0x1a0] sm:$0xff]
        %v352 = vld [vmem:[%s250 + $0x1a8] sm:$0xff]
        %v353 = vld [vmem:[%s250 + $0x1b0] sm:$0xff]
        %v354 = vld [vmem:[%s250 + $0x1b8] sm:$0xff]
        %v355 = vld [vmem:[%s250 + $0x1c0] sm:$0xff]
        %v356 = vld [vmem:[%s250 + $0x1c8] sm:$0xff]
        %v357 = vld [vmem:[%s250 + $0x1d0] sm:$0xff]
        %v358 = vld [vmem:[%s250 + $0x1d8] sm:$0xff]
        %v359 = vld [vmem:[%s250 + $0x1e0] sm:$0xff]
        %v360 = vld [vmem:[%s250 + $0x1e8] sm:$0xff]
        %v361 = vld [vmem:[%s250 + $0x1f0] sm:$0xff]
        %v362 = vld [vmem:[%s250 + $0x1f8] sm:$0xff]
        %v363 = vld [vmem:[#allocation5] sm:$0xff]
        %v364 = vld [vmem:[#allocation5 + $0x8] sm:$0xff]
        %v365 = vld [vmem:[#allocation5 + $0x10] sm:$0xff]
        %v366 = vld [vmem:[#allocation5 + $0x18] sm:$0xff]
        %v367 = vld [vmem:[#allocation5 + $0x20] sm:$0xff]
        %v368 = vld [vmem:[#allocation5 + $0x28] sm:$0xff]
        %v369 = vld [vmem:[#allocation5 + $0x30] sm:$0xff]
        %v370 = vld [vmem:[#allocation5 + $0x38] sm:$0xff]
        %v371 = vld [vmem:[#allocation5 + $0x40] sm:$0xff]
        %v372 = vld [vmem:[#allocation5 + $0x48] sm:$0xff]
        %v373 = vld [vmem:[#allocation5 + $0x50] sm:$0xff]
        %v374 = vld [vmem:[#allocation5 + $0x58] sm:$0xff]
        %v375 = vld [vmem:[#allocation5 + $0x60] sm:$0xff]
        %v376 = vld [vmem:[#allocation5 + $0x68] sm:$0xff]
        %v377 = vld [vmem:[#allocation5 + $0x70] sm:$0xff]
        %v378 = vld [vmem:[#allocation5 + $0x78] sm:$0xff]
        %v379 = vld [vmem:[#allocation5 + $0x80] sm:$0xff]
        %v380 = vld [vmem:[#allocation5 + $0x88] sm:$0xff]
        %v381 = vld [vmem:[#allocation5 + $0x90] sm:$0xff]
        %v382 = vld [vmem:[#allocation5 + $0x98] sm:$0xff]
        %v383 = vld [vmem:[#allocation5 + $0xa0] sm:$0xff]
        %v384 = vld [vmem:[#allocation5 + $0xa8] sm:$0xff]
        %v385 = vld [vmem:[#allocation5 + $0xb0] sm:$0xff]
        %v386 = vld [vmem:[#allocation5 + $0xb8] sm:$0xff]
        %v387 = vld [vmem:[#allocation5 + $0xc0] sm:$0xff]
        %v388 = vld [vmem:[#allocation5 + $0xc8] sm:$0xff]
        %v389 = vld [vmem:[#allocation5 + $0xd0] sm:$0xff]
        %v390 = vld [vmem:[#allocation5 + $0xd8] sm:$0xff]
        %v391 = vld [vmem:[#allocation5 + $0xe0] sm:$0xff]
        %v392 = vld [vmem:[#allocation5 + $0xe8] sm:$0xff]
        %v393 = vld [vmem:[#allocation5 + $0xf0] sm:$0xff]
        %v394 = vld [vmem:[#allocation5 + $0xf8] sm:$0xff]
        %v395 = vld [vmem:[#allocation5 + $0x100] sm:$0xff]
        %v396 = vld [vmem:[#allocation5 + $0x108] sm:$0xff]
        %v397 = vld [vmem:[#allocation5 + $0x110] sm:$0xff]
        %v398 = vld [vmem:[#allocation5 + $0x118] sm:$0xff]
        %v399 = vld [vmem:[#allocation5 + $0x120] sm:$0xff]
        %v400 = vld [vmem:[#allocation5 + $0x128] sm:$0xff]
        %v401 = vld [vmem:[#allocation5 + $0x130] sm:$0xff]
        %v402 = vld [vmem:[#allocation5 + $0x138] sm:$0xff]
        %v403 = vld [vmem:[#allocation5 + $0x140] sm:$0xff]
        %v404 = vld [vmem:[#allocation5 + $0x148] sm:$0xff]
        %v405 = vld [vmem:[#allocation5 + $0x150] sm:$0xff]
        %v406 = vld [vmem:[#allocation5 + $0x158] sm:$0xff]
        %v407 = vld [vmem:[#allocation5 + $0x160] sm:$0xff]
        %v408 = vld [vmem:[#allocation5 + $0x168] sm:$0xff]
        %v409 = vld [vmem:[#allocation5 + $0x170] sm:$0xff]
        %v410 = vld [vmem:[#allocation5 + $0x178] sm:$0xff]
        %v411 = vld [vmem:[#allocation5 + $0x180] sm:$0xff]
        %v412 = vld [vmem:[#allocation5 + $0x188] sm:$0xff]
        %v413 = vld [vmem:[#allocation5 + $0x190] sm:$0xff]
        %v414 = vld [vmem:[#allocation5 + $0x198] sm:$0xff]
        %v415 = vld [vmem:[#allocation5 + $0x1a0] sm:$0xff]
        %v416 = vld [vmem:[#allocation5 + $0x1a8] sm:$0xff]
        %v417 = vld [vmem:[#allocation5 + $0x1b0] sm:$0xff]
        %v418 = vld [vmem:[#allocation5 + $0x1b8] sm:$0xff]
        %v419 = vld [vmem:[#allocation5 + $0x1c0] sm:$0xff]
        %v420 = vld [vmem:[#allocation5 + $0x1c8] sm:$0xff]
        %v421 = vld [vmem:[#allocation5 + $0x1d0] sm:$0xff]
        %v422 = vld [vmem:[#allocation5 + $0x1d8] sm:$0xff]
        %v423 = vld [vmem:[#allocation5 + $0x1e0] sm:$0xff]
        %v424 = vld [vmem:[#allocation5 + $0x1e8] sm:$0xff]
        %v425 = vld [vmem:[#allocation5 + $0x1f0] sm:$0xff]
        %v426 = vld [vmem:[#allocation5 + $0x1f8] sm:$0xff]
        %v427 = vld [vmem:[#allocation5 + $0x200] sm:$0xff]
        %v428 = vld [vmem:[#allocation5 + $0x208] sm:$0xff]
        %v429 = vld [vmem:[#allocation5 + $0x210] sm:$0xff]
        %v430 = vld [vmem:[#allocation5 + $0x218] sm:$0xff]
        %v431 = vld [vmem:[#allocation5 + $0x220] sm:$0xff]
        %v432 = vld [vmem:[#allocation5 + $0x228] sm:$0xff]
        %v433 = vld [vmem:[#allocation5 + $0x230] sm:$0xff]
        %v434 = vld [vmem:[#allocation5 + $0x238] sm:$0xff]
        %v435 = vld [vmem:[#allocation5 + $0x240] sm:$0xff]
        %v436 = vld [vmem:[#allocation5 + $0x248] sm:$0xff]
        %v437 = vld [vmem:[#allocation5 + $0x250] sm:$0xff]
        %v438 = vld [vmem:[#allocation5 + $0x258] sm:$0xff]
        %v439 = vld [vmem:[#allocation5 + $0x260] sm:$0xff]
        %v440 = vld [vmem:[#allocation5 + $0x268] sm:$0xff]
        %v441 = vld [vmem:[#allocation5 + $0x270] sm:$0xff]
        %v442 = vld [vmem:[#allocation5 + $0x278] sm:$0xff]
        %v443 = vld [vmem:[#allocation5 + $0x280] sm:$0xff]
        %v444 = vld [vmem:[#allocation5 + $0x288] sm:$0xff]
        %v445 = vld [vmem:[#allocation5 + $0x290] sm:$0xff]
        %v446 = vld [vmem:[#allocation5 + $0x298] sm:$0xff]
        %v447 = vld [vmem:[#allocation5 + $0x2a0] sm:$0xff]
        %v448 = vld [vmem:[#allocation5 + $0x2a8] sm:$0xff]
        %v449 = vld [vmem:[#allocation5 + $0x2b0] sm:$0xff]
        %v450 = vld [vmem:[#allocation5 + $0x2b8] sm:$0xff]
        %v451 = vld [vmem:[#allocation5 + $0x2c0] sm:$0xff]
        %v452 = vld [vmem:[#allocation5 + $0x2c8] sm:$0xff]
        %v453 = vld [vmem:[#allocation5 + $0x2d0] sm:$0xff]
        %v454 = vld [vmem:[#allocation5 + $0x2d8] sm:$0xff]
        %v455 = vld [vmem:[#allocation5 + $0x2e0] sm:$0xff]
        %v456 = vld [vmem:[#allocation5 + $0x2e8] sm:$0xff]
        %v457 = vld [vmem:[#allocation5 + $0x2f0] sm:$0xff]
        %v458 = vld [vmem:[#allocation5 + $0x2f8] sm:$0xff]
        %v459 = vld [vmem:[#allocation5 + $0x300] sm:$0xff]
        %v460 = vld [vmem:[#allocation5 + $0x308] sm:$0xff]
        %v461 = vld [vmem:[#allocation5 + $0x310] sm:$0xff]
        %v462 = vld [vmem:[#allocation5 + $0x318] sm:$0xff]
        %v463 = vld [vmem:[#allocation5 + $0x320] sm:$0xff]
        %v464 = vld [vmem:[#allocation5 + $0x328] sm:$0xff]
        %v465 = vld [vmem:[#allocation5 + $0x330] sm:$0xff]
        %v466 = vld [vmem:[#allocation5 + $0x338] sm:$0xff]
        %v467 = vld [vmem:[#allocation5 + $0x340] sm:$0xff]
        %v468 = vld [vmem:[#allocation5 + $0x348] sm:$0xff]
        %v469 = vld [vmem:[#allocation5 + $0x350] sm:$0xff]
        %v470 = vld [vmem:[#allocation5 + $0x358] sm:$0xff]
        %v471 = vld [vmem:[#allocation5 + $0x360] sm:$0xff]
        %v472 = vld [vmem:[#allocation5 + $0x368] sm:$0xff]
        %v473 = vld [vmem:[#allocation5 + $0x370] sm:$0xff]
        %v474 = vld [vmem:[#allocation5 + $0x378] sm:$0xff]
        %v475 = vld [vmem:[#allocation5 + $0x380] sm:$0xff]
        %v476 = vld [vmem:[#allocation5 + $0x388] sm:$0xff]
        %v477 = vld [vmem:[#allocation5 + $0x390] sm:$0xff]
        %v478 = vld [vmem:[#allocation5 + $0x398] sm:$0xff]
        %v479 = vld [vmem:[#allocation5 + $0x3a0] sm:$0xff]
        %v480 = vld [vmem:[#allocation5 + $0x3a8] sm:$0xff]
        %v481 = vld [vmem:[#allocation5 + $0x3b0] sm:$0xff]
        %v482 = vld [vmem:[#allocation5 + $0x3b8] sm:$0xff]
        %v483 = vld [vmem:[#allocation5 + $0x3c0] sm:$0xff]
        %v484 = vld [vmem:[#allocation5 + $0x3c8] sm:$0xff]
        %v485 = vld [vmem:[#allocation5 + $0x3d0] sm:$0xff]
        %v486 = vld [vmem:[#allocation5 + $0x3d8] sm:$0xff]
        %v487 = vld [vmem:[#allocation5 + $0x3e0] sm:$0xff]
        %v488 = vld [vmem:[#allocation5 + $0x3e8] sm:$0xff]
        %v489 = vld [vmem:[#allocation5 + $0x3f0] sm:$0xff]
        %v490 = vld [vmem:[#allocation5 + $0x3f8] sm:$0xff]
        %v491 = vld [vmem:[#allocation5 + $0x400] sm:$0xff]
        %v492 = vld [vmem:[#allocation5 + $0x408] sm:$0xff]
        %v493 = vld [vmem:[#allocation5 + $0x410] sm:$0xff]
        %v494 = vld [vmem:[#allocation5 + $0x418] sm:$0xff]
        %v495 = vld [vmem:[#allocation5 + $0x420] sm:$0xff]
        %v496 = vld [vmem:[#allocation5 + $0x428] sm:$0xff]
        %v497 = vld [vmem:[#allocation5 + $0x430] sm:$0xff]
        %v498 = vld [vmem:[#allocation5 + $0x438] sm:$0xff]
        %v499 = vld [vmem:[#allocation5 + $0x440] sm:$0xff]
        %v500 = vld [vmem:[#allocation5 + $0x448] sm:$0xff]
        %v501 = vld [vmem:[#allocation5 + $0x450] sm:$0xff]
        %v502 = vld [vmem:[#allocation5 + $0x458] sm:$0xff]
        %v503 = vld [vmem:[#allocation5 + $0x460] sm:$0xff]
        %v504 = vld [vmem:[#allocation5 + $0x468] sm:$0xff]
        %v505 = vld [vmem:[#allocation5 + $0x470] sm:$0xff]
        %v506 = vld [vmem:[#allocation5 + $0x478] sm:$0xff]
        %v507 = vld [vmem:[#allocation5 + $0x480] sm:$0xff]
        %v508 = vld [vmem:[#allocation5 + $0x488] sm:$0xff]
        %v509 = vld [vmem:[#allocation5 + $0x490] sm:$0xff]
        %v510 = vld [vmem:[#allocation5 + $0x498] sm:$0xff]
        %v511 = vld [vmem:[#allocation5 + $0x4a0] sm:$0xff]
        %v512 = vld [vmem:[#allocation5 + $0x4a8] sm:$0xff]
        %v513 = vld [vmem:[#allocation5 + $0x4b0] sm:$0xff]
        %v514 = vld [vmem:[#allocation5 + $0x4b8] sm:$0xff]
        %v515 = vld [vmem:[#allocation5 + $0x4c0] sm:$0xff]
        %v516 = vld [vmem:[#allocation5 + $0x4c8] sm:$0xff]
        %v517 = vld [vmem:[#allocation5 + $0x4d0] sm:$0xff]
        %v518 = vld [vmem:[#allocation5 + $0x4d8] sm:$0xff]
        %v519 = vld [vmem:[#allocation5 + $0x4e0] sm:$0xff]
        %v520 = vld [vmem:[#allocation5 + $0x4e8] sm:$0xff]
        %v521 = vld [vmem:[#allocation5 + $0x4f0] sm:$0xff]
        %v522 = vld [vmem:[#allocation5 + $0x4f8] sm:$0xff]
        %v523 = vld [vmem:[#allocation5 + $0x500] sm:$0xff]
        %v524 = vld [vmem:[#allocation5 + $0x508] sm:$0xff]
        %v525 = vld [vmem:[#allocation5 + $0x510] sm:$0xff]
        %v526 = vld [vmem:[#allocation5 + $0x518] sm:$0xff]
        %v527 = vld [vmem:[#allocation5 + $0x520] sm:$0xff]
        %v528 = vld [vmem:[#allocation5 + $0x528] sm:$0xff]
        %v529 = vld [vmem:[#allocation5 + $0x530] sm:$0xff]
        %v530 = vld [vmem:[#allocation5 + $0x538] sm:$0xff]
        %v531 = vld [vmem:[#allocation5 + $0x540] sm:$0xff]
        %v532 = vld [vmem:[#allocation5 + $0x548] sm:$0xff]
        %v533 = vld [vmem:[#allocation5 + $0x550] sm:$0xff]
        %v534 = vld [vmem:[#allocation5 + $0x558] sm:$0xff]
        %v535 = vld [vmem:[#allocation5 + $0x560] sm:$0xff]
        %v536 = vld [vmem:[#allocation5 + $0x568] sm:$0xff]
        %v537 = vld [vmem:[#allocation5 + $0x570] sm:$0xff]
        %v538 = vld [vmem:[#allocation5 + $0x578] sm:$0xff]
        %v539 = vld [vmem:[#allocation5 + $0x580] sm:$0xff]
        %v540 = vld [vmem:[#allocation5 + $0x588] sm:$0xff]
        %v541 = vld [vmem:[#allocation5 + $0x590] sm:$0xff]
        %v542 = vld [vmem:[#allocation5 + $0x598] sm:$0xff]
        %v543 = vld [vmem:[#allocation5 + $0x5a0] sm:$0xff]
        %v544 = vld [vmem:[#allocation5 + $0x5a8] sm:$0xff]
        %v545 = vld [vmem:[#allocation5 + $0x5b0] sm:$0xff]
        %v546 = vld [vmem:[#allocation5 + $0x5b8] sm:$0xff]
        %v547 = vld [vmem:[#allocation5 + $0x5c0] sm:$0xff]
        %v548 = vld [vmem:[#allocation5 + $0x5c8] sm:$0xff]
        %v549 = vld [vmem:[#allocation5 + $0x5d0] sm:$0xff]
        %v550 = vld [vmem:[#allocation5 + $0x5d8] sm:$0xff]
        %v551 = vld [vmem:[#allocation5 + $0x5e0] sm:$0xff]
        %v552 = vld [vmem:[#allocation5 + $0x5e8] sm:$0xff]
        %v553 = vld [vmem:[#allocation5 + $0x5f0] sm:$0xff]
        %v554 = vld [vmem:[#allocation5 + $0x5f8] sm:$0xff]
        %v555 = vld [vmem:[#allocation5 + $0x600] sm:$0xff]
        %v556 = vld [vmem:[#allocation5 + $0x608] sm:$0xff]
        %v557 = vld [vmem:[#allocation5 + $0x610] sm:$0xff]
        %v558 = vld [vmem:[#allocation5 + $0x618] sm:$0xff]
        %v559 = vld [vmem:[#allocation5 + $0x620] sm:$0xff]
        %v560 = vld [vmem:[#allocation5 + $0x628] sm:$0xff]
        %v561 = vld [vmem:[#allocation5 + $0x630] sm:$0xff]
        %v562 = vld [vmem:[#allocation5 + $0x638] sm:$0xff]
        %v563 = vld [vmem:[#allocation5 + $0x640] sm:$0xff]
        %v564 = vld [vmem:[#allocation5 + $0x648] sm:$0xff]
        %v565 = vld [vmem:[#allocation5 + $0x650] sm:$0xff]
        %v566 = vld [vmem:[#allocation5 + $0x658] sm:$0xff]
        %v567 = vld [vmem:[#allocation5 + $0x660] sm:$0xff]
        %v568 = vld [vmem:[#allocation5 + $0x668] sm:$0xff]
        %v569 = vld [vmem:[#allocation5 + $0x670] sm:$0xff]
        %v570 = vld [vmem:[#allocation5 + $0x678] sm:$0xff]
        %v571 = vld [vmem:[#allocation5 + $0x680] sm:$0xff]
        %v572 = vld [vmem:[#allocation5 + $0x688] sm:$0xff]
        %v573 = vld [vmem:[#allocation5 + $0x690] sm:$0xff]
        %v574 = vld [vmem:[#allocation5 + $0x698] sm:$0xff]
        %v575 = vld [vmem:[#allocation5 + $0x6a0] sm:$0xff]
        %v576 = vld [vmem:[#allocation5 + $0x6a8] sm:$0xff]
        %v577 = vld [vmem:[#allocation5 + $0x6b0] sm:$0xff]
        %v578 = vld [vmem:[#allocation5 + $0x6b8] sm:$0xff]
        %v579 = vld [vmem:[#allocation5 + $0x6c0] sm:$0xff]
        %v580 = vld [vmem:[#allocation5 + $0x6c8] sm:$0xff]
        %v581 = vld [vmem:[#allocation5 + $0x6d0] sm:$0xff]
        %v582 = vld [vmem:[#allocation5 + $0x6d8] sm:$0xff]
        %v583 = vld [vmem:[#allocation5 + $0x6e0] sm:$0xff]
        %v584 = vld [vmem:[#allocation5 + $0x6e8] sm:$0xff]
        %v585 = vld [vmem:[#allocation5 + $0x6f0] sm:$0xff]
        %v586 = vld [vmem:[#allocation5 + $0x6f8] sm:$0xff]
        %v587 = vld [vmem:[#allocation5 + $0x700] sm:$0xff]
        %v588 = vld [vmem:[#allocation5 + $0x708] sm:$0xff]
        %v589 = vld [vmem:[#allocation5 + $0x710] sm:$0xff]
        %v590 = vld [vmem:[#allocation5 + $0x718] sm:$0xff]
        %v591 = vld [vmem:[#allocation5 + $0x720] sm:$0xff]
        %v592 = vld [vmem:[#allocation5 + $0x728] sm:$0xff]
        %v593 = vld [vmem:[#allocation5 + $0x730] sm:$0xff]
        %v594 = vld [vmem:[#allocation5 + $0x738] sm:$0xff]
        %v595 = vld [vmem:[#allocation5 + $0x740] sm:$0xff]
        %v596 = vld [vmem:[#allocation5 + $0x748] sm:$0xff]
        %v597 = vld [vmem:[#allocation5 + $0x750] sm:$0xff]
        %v598 = vld [vmem:[#allocation5 + $0x758] sm:$0xff]
        %v599 = vld [vmem:[#allocation5 + $0x760] sm:$0xff]
        %v600 = vld [vmem:[#allocation5 + $0x768] sm:$0xff]
        %v601 = vld [vmem:[#allocation5 + $0x770] sm:$0xff]
        %v602 = vld [vmem:[#allocation5 + $0x778] sm:$0xff]
        %v603 = vld [vmem:[#allocation5 + $0x780] sm:$0xff]
        %v604 = vld [vmem:[#allocation5 + $0x788] sm:$0xff]
        %v605 = vld [vmem:[#allocation5 + $0x790] sm:$0xff]
        %v606 = vld [vmem:[#allocation5 + $0x798] sm:$0xff]
        %v607 = vld [vmem:[#allocation5 + $0x7a0] sm:$0xff]
        %v608 = vld [vmem:[#allocation5 + $0x7a8] sm:$0xff]
        %v609 = vld [vmem:[#allocation5 + $0x7b0] sm:$0xff]
        %v610 = vld [vmem:[#allocation5 + $0x7b8] sm:$0xff]
        %v611 = vld [vmem:[#allocation5 + $0x7c0] sm:$0xff]
        %v612 = vld [vmem:[#allocation5 + $0x7c8] sm:$0xff]
        %v613 = vld [vmem:[#allocation5 + $0x7d0] sm:$0xff]
        %v614 = vld [vmem:[#allocation5 + $0x7d8] sm:$0xff]
        %v615 = vld [vmem:[#allocation5 + $0x7e0] sm:$0xff]
        %v616 = vld [vmem:[#allocation5 + $0x7e8] sm:$0xff]
        %v617 = vld [vmem:[#allocation5 + $0x7f0] sm:$0xff]
        %v618 = vld [vmem:[#allocation5 + $0x7f8] sm:$0xff]
        %v619 = vld [vmem:[#allocation5 + $0x800] sm:$0xff]
        %v620 = vld [vmem:[#allocation5 + $0x808] sm:$0xff]
        %v621 = vld [vmem:[#allocation5 + $0x810] sm:$0xff]
        %v622 = vld [vmem:[#allocation5 + $0x818] sm:$0xff]
        %v623 = vld [vmem:[#allocation5 + $0x820] sm:$0xff]
        %v624 = vld [vmem:[#allocation5 + $0x828] sm:$0xff]
        %v625 = vld [vmem:[#allocation5 + $0x830] sm:$0xff]
        %v626 = vld [vmem:[#allocation5 + $0x838] sm:$0xff]
        %v627 = vld [vmem:[#allocation5 + $0x840] sm:$0xff]
        %v628 = vld [vmem:[#allocation5 + $0x848] sm:$0xff]
        %v629 = vld [vmem:[#allocation5 + $0x850] sm:$0xff]
        %v630 = vld [vmem:[#allocation5 + $0x858] sm:$0xff]
        %v631 = vld [vmem:[#allocation5 + $0x860] sm:$0xff]
        %v632 = vld [vmem:[#allocation5 + $0x868] sm:$0xff]
        %v633 = vld [vmem:[#allocation5 + $0x870] sm:$0xff]
        %v634 = vld [vmem:[#allocation5 + $0x878] sm:$0xff]
        %v635 = vld [vmem:[#allocation5 + $0x880] sm:$0xff]
        %v636 = vld [vmem:[#allocation5 + $0x888] sm:$0xff]
        %v637 = vld [vmem:[#allocation5 + $0x890] sm:$0xff]
        %v638 = vld [vmem:[#allocation5 + $0x898] sm:$0xff]
        %v639 = vld [vmem:[#allocation5 + $0x8a0] sm:$0xff]
        %v640 = vld [vmem:[#allocation5 + $0x8a8] sm:$0xff]
        %v641 = vld [vmem:[#allocation5 + $0x8b0] sm:$0xff]
        %v642 = vld [vmem:[#allocation5 + $0x8b8] sm:$0xff]
        %v643 = vld [vmem:[#allocation5 + $0x8c0] sm:$0xff]
        %v644 = vld [vmem:[#allocation5 + $0x8c8] sm:$0xff]
        %v645 = vld [vmem:[#allocation5 + $0x8d0] sm:$0xff]
        %v646 = vld [vmem:[#allocation5 + $0x8d8] sm:$0xff]
        %v647 = vld [vmem:[#allocation5 + $0x8e0] sm:$0xff]
        %v648 = vld [vmem:[#allocation5 + $0x8e8] sm:$0xff]
        %v649 = vld [vmem:[#allocation5 + $0x8f0] sm:$0xff]
        %v650 = vld [vmem:[#allocation5 + $0x8f8] sm:$0xff]
        %v651 = vld [vmem:[#allocation5 + $0x900] sm:$0xff]
        %v652 = vld [vmem:[#allocation5 + $0x908] sm:$0xff]
        %v653 = vld [vmem:[#allocation5 + $0x910] sm:$0xff]
        %v654 = vld [vmem:[#allocation5 + $0x918] sm:$0xff]
        %v655 = vld [vmem:[#allocation5 + $0x920] sm:$0xff]
        %v656 = vld [vmem:[#allocation5 + $0x928] sm:$0xff]
        %v657 = vld [vmem:[#allocation5 + $0x930] sm:$0xff]
        %v658 = vld [vmem:[#allocation5 + $0x938] sm:$0xff]
        %v659 = vld [vmem:[#allocation5 + $0x940] sm:$0xff]
        %v660 = vld [vmem:[#allocation5 + $0x948] sm:$0xff]
        %v661 = vld [vmem:[#allocation5 + $0x950] sm:$0xff]
        %v662 = vld [vmem:[#allocation5 + $0x958] sm:$0xff]
        %v663 = vld [vmem:[#allocation5 + $0x960] sm:$0xff]
        %v664 = vld [vmem:[#allocation5 + $0x968] sm:$0xff]
        %v665 = vld [vmem:[#allocation5 + $0x970] sm:$0xff]
        %v666 = vld [vmem:[#allocation5 + $0x978] sm:$0xff]
        %v667 = vld [vmem:[#allocation5 + $0x980] sm:$0xff]
        %v668 = vld [vmem:[#allocation5 + $0x988] sm:$0xff]
        %v669 = vld [vmem:[#allocation5 + $0x990] sm:$0xff]
        %v670 = vld [vmem:[#allocation5 + $0x998] sm:$0xff]
        %v671 = vld [vmem:[#allocation5 + $0x9a0] sm:$0xff]
        %v672 = vld [vmem:[#allocation5 + $0x9a8] sm:$0xff]
        %v673 = vld [vmem:[#allocation5 + $0x9b0] sm:$0xff]
        %v674 = vld [vmem:[#allocation5 + $0x9b8] sm:$0xff]
        %v675 = vld [vmem:[#allocation5 + $0x9c0] sm:$0xff]
        %v676 = vld [vmem:[#allocation5 + $0x9c8] sm:$0xff]
        %v677 = vld [vmem:[#allocation5 + $0x9d0] sm:$0xff]
        %v678 = vld [vmem:[#allocation5 + $0x9d8] sm:$0xff]
        %v679 = vld [vmem:[#allocation5 + $0x9e0] sm:$0xff]
        %v680 = vld [vmem:[#allocation5 + $0x9e8] sm:$0xff]
        %v681 = vld [vmem:[#allocation5 + $0x9f0] sm:$0xff]
        %v682 = vld [vmem:[#allocation5 + $0x9f8] sm:$0xff]
        %v683 = vld [vmem:[#allocation5 + $0xa00] sm:$0xff]
        %v684 = vld [vmem:[#allocation5 + $0xa08] sm:$0xff]
        %v685 = vld [vmem:[#allocation5 + $0xa10] sm:$0xff]
        %v686 = vld [vmem:[#allocation5 + $0xa18] sm:$0xff]
        %v687 = vld [vmem:[#allocation5 + $0xa20] sm:$0xff]
        %v688 = vld [vmem:[#allocation5 + $0xa28] sm:$0xff]
        %v689 = vld [vmem:[#allocation5 + $0xa30] sm:$0xff]
        %v690 = vld [vmem:[#allocation5 + $0xa38] sm:$0xff]
        %v691 = vld [vmem:[#allocation5 + $0xa40] sm:$0xff]
        %v692 = vld [vmem:[#allocation5 + $0xa48] sm:$0xff]
        %v693 = vld [vmem:[#allocation5 + $0xa50] sm:$0xff]
        %v694 = vld [vmem:[#allocation5 + $0xa58] sm:$0xff]
        %v695 = vld [vmem:[#allocation5 + $0xa60] sm:$0xff]
        %v696 = vld [vmem:[#allocation5 + $0xa68] sm:$0xff]
        %v697 = vld [vmem:[#allocation5 + $0xa70] sm:$0xff]
        %v698 = vld [vmem:[#allocation5 + $0xa78] sm:$0xff]
        %v699 = vld [vmem:[#allocation5 + $0xa80] sm:$0xff]
        %v700 = vld [vmem:[#allocation5 + $0xa88] sm:$0xff]
        %v701 = vld [vmem:[#allocation5 + $0xa90] sm:$0xff]
        %v702 = vld [vmem:[#allocation5 + $0xa98] sm:$0xff]
        %v703 = vld [vmem:[#allocation5 + $0xaa0] sm:$0xff]
        %v704 = vld [vmem:[#allocation5 + $0xaa8] sm:$0xff]
        %v705 = vld [vmem:[#allocation5 + $0xab0] sm:$0xff]
        %v706 = vld [vmem:[#allocation5 + $0xab8] sm:$0xff]
        %v707 = vld [vmem:[#allocation5 + $0xac0] sm:$0xff]
        %v708 = vld [vmem:[#allocation5 + $0xac8] sm:$0xff]
        %v709 = vld [vmem:[#allocation5 + $0xad0] sm:$0xff]
        %v710 = vld [vmem:[#allocation5 + $0xad8] sm:$0xff]
        %v711 = vld [vmem:[#allocation5 + $0xae0] sm:$0xff]
        %v712 = vld [vmem:[#allocation5 + $0xae8] sm:$0xff]
        %v713 = vld [vmem:[#allocation5 + $0xaf0] sm:$0xff]
        %v714 = vld [vmem:[#allocation5 + $0xaf8] sm:$0xff]
        %v715 = vld [vmem:[#allocation5 + $0xb00] sm:$0xff]
        %v716 = vld [vmem:[#allocation5 + $0xb08] sm:$0xff]
        %v717 = vld [vmem:[#allocation5 + $0xb10] sm:$0xff]
        %v718 = vld [vmem:[#allocation5 + $0xb18] sm:$0xff]
        %v719 = vld [vmem:[#allocation5 + $0xb20] sm:$0xff]
        %v720 = vld [vmem:[#allocation5 + $0xb28] sm:$0xff]
        %v721 = vld [vmem:[#allocation5 + $0xb30] sm:$0xff]
        %v722 = vld [vmem:[#allocation5 + $0xb38] sm:$0xff]
        %v723 = vld [vmem:[#allocation5 + $0xb40] sm:$0xff]
        %v724 = vld [vmem:[#allocation5 + $0xb48] sm:$0xff]
        %v725 = vld [vmem:[#allocation5 + $0xb50] sm:$0xff]
        %v726 = vld [vmem:[#allocation5 + $0xb58] sm:$0xff]
        %v727 = vld [vmem:[#allocation5 + $0xb60] sm:$0xff]
        %v728 = vld [vmem:[#allocation5 + $0xb68] sm:$0xff]
        %v729 = vld [vmem:[#allocation5 + $0xb70] sm:$0xff]
        %v730 = vld [vmem:[#allocation5 + $0xb78] sm:$0xff]
        %v731 = vld [vmem:[#allocation5 + $0xb80] sm:$0xff]
        %v732 = vld [vmem:[#allocation5 + $0xb88] sm:$0xff]
        %v733 = vld [vmem:[#allocation5 + $0xb90] sm:$0xff]
        %v734 = vld [vmem:[#allocation5 + $0xb98] sm:$0xff]
        %v735 = vld [vmem:[#allocation5 + $0xba0] sm:$0xff]
        %v736 = vld [vmem:[#allocation5 + $0xba8] sm:$0xff]
        %v737 = vld [vmem:[#allocation5 + $0xbb0] sm:$0xff]
        %v738 = vld [vmem:[#allocation5 + $0xbb8] sm:$0xff]
        %v739 = vld [vmem:[#allocation5 + $0xbc0] sm:$0xff]
        %v740 = vld [vmem:[#allocation5 + $0xbc8] sm:$0xff]
        %v741 = vld [vmem:[#allocation5 + $0xbd0] sm:$0xff]
        %v742 = vld [vmem:[#allocation5 + $0xbd8] sm:$0xff]
        %v743 = vld [vmem:[#allocation5 + $0xbe0] sm:$0xff]
        %v744 = vld [vmem:[#allocation5 + $0xbe8] sm:$0xff]
        %v745 = vld [vmem:[#allocation5 + $0xbf0] sm:$0xff]
        %v746 = vld [vmem:[#allocation5 + $0xbf8] sm:$0xff]
        %v747 = vld [vmem:[#allocation5 + $0xc00] sm:$0xff]
        %v748 = vld [vmem:[#allocation5 + $0xc08] sm:$0xff]
        %v749 = vld [vmem:[#allocation5 + $0xc10] sm:$0xff]
        %v750 = vld [vmem:[#allocation5 + $0xc18] sm:$0xff]
        %v751 = vld [vmem:[#allocation5 + $0xc20] sm:$0xff]
        %v752 = vld [vmem:[#allocation5 + $0xc28] sm:$0xff]
        %v753 = vld [vmem:[#allocation5 + $0xc30] sm:$0xff]
        %v754 = vld [vmem:[#allocation5 + $0xc38] sm:$0xff]
        %v755 = vld [vmem:[#allocation5 + $0xc40] sm:$0xff]
        %v756 = vld [vmem:[#allocation5 + $0xc48] sm:$0xff]
        %v757 = vld [vmem:[#allocation5 + $0xc50] sm:$0xff]
        %v758 = vld [vmem:[#allocation5 + $0xc58] sm:$0xff]
        %v759 = vld [vmem:[#allocation5 + $0xc60] sm:$0xff]
        %v760 = vld [vmem:[#allocation5 + $0xc68] sm:$0xff]
        %v761 = vld [vmem:[#allocation5 + $0xc70] sm:$0xff]
        %v762 = vld [vmem:[#allocation5 + $0xc78] sm:$0xff]
        %v763 = vld [vmem:[#allocation5 + $0xc80] sm:$0xff]
        %v764 = vld [vmem:[#allocation5 + $0xc88] sm:$0xff]
        %v765 = vld [vmem:[#allocation5 + $0xc90] sm:$0xff]
        %v766 = vld [vmem:[#allocation5 + $0xc98] sm:$0xff]
        %v767 = vld [vmem:[#allocation5 + $0xca0] sm:$0xff]
        %v768 = vld [vmem:[#allocation5 + $0xca8] sm:$0xff]
        %v769 = vld [vmem:[#allocation5 + $0xcb0] sm:$0xff]
        %v770 = vld [vmem:[#allocation5 + $0xcb8] sm:$0xff]
        %v771 = vld [vmem:[#allocation5 + $0xcc0] sm:$0xff]
        %v772 = vld [vmem:[#allocation5 + $0xcc8] sm:$0xff]
        %v773 = vld [vmem:[#allocation5 + $0xcd0] sm:$0xff]
        %v774 = vld [vmem:[#allocation5 + $0xcd8] sm:$0xff]
        %v775 = vld [vmem:[#allocation5 + $0xce0] sm:$0xff]
        %v776 = vld [vmem:[#allocation5 + $0xce8] sm:$0xff]
        %v777 = vld [vmem:[#allocation5 + $0xcf0] sm:$0xff]
        %v778 = vld [vmem:[#allocation5 + $0xcf8] sm:$0xff]
        %v779 = vld [vmem:[#allocation5 + $0xd00] sm:$0xff]
        %v780 = vld [vmem:[#allocation5 + $0xd08] sm:$0xff]
        %v781 = vld [vmem:[#allocation5 + $0xd10] sm:$0xff]
        %v782 = vld [vmem:[#allocation5 + $0xd18] sm:$0xff]
        %v783 = vld [vmem:[#allocation5 + $0xd20] sm:$0xff]
        %v784 = vld [vmem:[#allocation5 + $0xd28] sm:$0xff]
        %v785 = vld [vmem:[#allocation5 + $0xd30] sm:$0xff]
        %v786 = vld [vmem:[#allocation5 + $0xd38] sm:$0xff]
        %v787 = vld [vmem:[#allocation5 + $0xd40] sm:$0xff]
        %v788 = vld [vmem:[#allocation5 + $0xd48] sm:$0xff]
        %v789 = vld [vmem:[#allocation5 + $0xd50] sm:$0xff]
        %v790 = vld [vmem:[#allocation5 + $0xd58] sm:$0xff]
        %v791 = vld [vmem:[#allocation5 + $0xd60] sm:$0xff]
        %v792 = vld [vmem:[#allocation5 + $0xd68] sm:$0xff]
        %v793 = vld [vmem:[#allocation5 + $0xd70] sm:$0xff]
        %v794 = vld [vmem:[#allocation5 + $0xd78] sm:$0xff]
        %v795 = vld [vmem:[#allocation5 + $0xd80] sm:$0xff]
        %v796 = vld [vmem:[#allocation5 + $0xd88] sm:$0xff]
        %v797 = vld [vmem:[#allocation5 + $0xd90] sm:$0xff]
        %v798 = vld [vmem:[#allocation5 + $0xd98] sm:$0xff]
        %v799 = vld [vmem:[#allocation5 + $0xda0] sm:$0xff]
        %v800 = vld [vmem:[#allocation5 + $0xda8] sm:$0xff]
        %v801 = vld [vmem:[#allocation5 + $0xdb0] sm:$0xff]
        %v802 = vld [vmem:[#allocation5 + $0xdb8] sm:$0xff]
        %v803 = vld [vmem:[#allocation5 + $0xdc0] sm:$0xff]
        %v804 = vld [vmem:[#allocation5 + $0xdc8] sm:$0xff]
        %v805 = vld [vmem:[#allocation5 + $0xdd0] sm:$0xff]
        %v806 = vld [vmem:[#allocation5 + $0xdd8] sm:$0xff]
        %v807 = vld [vmem:[#allocation5 + $0xde0] sm:$0xff]
        %v808 = vld [vmem:[#allocation5 + $0xde8] sm:$0xff]
        %v809 = vld [vmem:[#allocation5 + $0xdf0] sm:$0xff]
        %v810 = vld [vmem:[#allocation5 + $0xdf8] sm:$0xff]
        %v811 = vld [vmem:[#allocation5 + $0xe00] sm:$0xff]
        %v812 = vld [vmem:[#allocation5 + $0xe08] sm:$0xff]
        %v813 = vld [vmem:[#allocation5 + $0xe10] sm:$0xff]
        %v814 = vld [vmem:[#allocation5 + $0xe18] sm:$0xff]
        %v815 = vld [vmem:[#allocation5 + $0xe20] sm:$0xff]
        %v816 = vld [vmem:[#allocation5 + $0xe28] sm:$0xff]
        %v817 = vld [vmem:[#allocation5 + $0xe30] sm:$0xff]
        %v818 = vld [vmem:[#allocation5 + $0xe38] sm:$0xff]
        %v819 = vld [vmem:[#allocation5 + $0xe40] sm:$0xff]
        %v820 = vld [vmem:[#allocation5 + $0xe48] sm:$0xff]
        %v821 = vld [vmem:[#allocation5 + $0xe50] sm:$0xff]
        %v822 = vld [vmem:[#allocation5 + $0xe58] sm:$0xff]
        %v823 = vld [vmem:[#allocation5 + $0xe60] sm:$0xff]
        %v824 = vld [vmem:[#allocation5 + $0xe68] sm:$0xff]
        %v825 = vld [vmem:[#allocation5 + $0xe70] sm:$0xff]
        %v826 = vld [vmem:[#allocation5 + $0xe78] sm:$0xff]
        %v827 = vld [vmem:[#allocation5 + $0xe80] sm:$0xff]
        %v828 = vld [vmem:[#allocation5 + $0xe88] sm:$0xff]
        %v829 = vld [vmem:[#allocation5 + $0xe90] sm:$0xff]
        %v830 = vld [vmem:[#allocation5 + $0xe98] sm:$0xff]
        %v831 = vld [vmem:[#allocation5 + $0xea0] sm:$0xff]
        %v832 = vld [vmem:[#allocation5 + $0xea8] sm:$0xff]
        %v833 = vld [vmem:[#allocation5 + $0xeb0] sm:$0xff]
        %v834 = vld [vmem:[#allocation5 + $0xeb8] sm:$0xff]
        %v835 = vld [vmem:[#allocation5 + $0xec0] sm:$0xff]
        %v836 = vld [vmem:[#allocation5 + $0xec8] sm:$0xff]
        %v837 = vld [vmem:[#allocation5 + $0xed0] sm:$0xff]
        %v838 = vld [vmem:[#allocation5 + $0xed8] sm:$0xff]
        %v839 = vld [vmem:[#allocation5 + $0xee0] sm:$0xff]
        %v840 = vld [vmem:[#allocation5 + $0xee8] sm:$0xff]
        %v841 = vld [vmem:[#allocation5 + $0xef0] sm:$0xff]
        %v842 = vld [vmem:[#allocation5 + $0xef8] sm:$0xff]
        %v843 = vld [vmem:[#allocation5 + $0xf00] sm:$0xff]
        %v844 = vld [vmem:[#allocation5 + $0xf08] sm:$0xff]
        %v845 = vld [vmem:[#allocation5 + $0xf10] sm:$0xff]
        %v846 = vld [vmem:[#allocation5 + $0xf18] sm:$0xff]
        %v847 = vld [vmem:[#allocation5 + $0xf20] sm:$0xff]
        %v848 = vld [vmem:[#allocation5 + $0xf28] sm:$0xff]
        %v849 = vld [vmem:[#allocation5 + $0xf30] sm:$0xff]
        %v850 = vld [vmem:[#allocation5 + $0xf38] sm:$0xff]
        %v851 = vld [vmem:[#allocation5 + $0xf40] sm:$0xff]
        %v852 = vld [vmem:[#allocation5 + $0xf48] sm:$0xff]
        %v853 = vld [vmem:[#allocation5 + $0xf50] sm:$0xff]
        %v854 = vld [vmem:[#allocation5 + $0xf58] sm:$0xff]
        %v855 = vld [vmem:[#allocation5 + $0xf60] sm:$0xff]
        %v856 = vld [vmem:[#allocation5 + $0xf68] sm:$0xff]
        %v857 = vld [vmem:[#allocation5 + $0xf70] sm:$0xff]
        %v858 = vld [vmem:[#allocation5 + $0xf78] sm:$0xff]
        %v859 = vld [vmem:[#allocation5 + $0xf80] sm:$0xff]
        %v860 = vld [vmem:[#allocation5 + $0xf88] sm:$0xff]
        %v861 = vld [vmem:[#allocation5 + $0xf90] sm:$0xff]
        %v862 = vld [vmem:[#allocation5 + $0xf98] sm:$0xff]
        %v863 = vld [vmem:[#allocation5 + $0xfa0] sm:$0xff]
        %v864 = vld [vmem:[#allocation5 + $0xfa8] sm:$0xff]
        %v865 = vld [vmem:[#allocation5 + $0xfb0] sm:$0xff]
        %v866 = vld [vmem:[#allocation5 + $0xfb8] sm:$0xff]
        %v867 = vld [vmem:[#allocation5 + $0xfc0] sm:$0xff]
        %v868 = vld [vmem:[#allocation5 + $0xfc8] sm:$0xff]
        %v869 = vld [vmem:[#allocation5 + $0xfd0] sm:$0xff]
        %v870 = vld [vmem:[#allocation5 + $0xfd8] sm:$0xff]
        %v871 = vld [vmem:[#allocation5 + $0xfe0] sm:$0xff]
        %v872 = vld [vmem:[#allocation5 + $0xfe8] sm:$0xff]
        %v873 = vld [vmem:[#allocation5 + $0xff0] sm:$0xff]
        %v874 = vld [vmem:[#allocation5 + $0xff8] sm:$0xff]
        %v875 = vld [vmem:[#allocation7] sm:$0x3]
        %v877 = vlaneseq
        %v878 = vshrl.u32 %v877, 7
        %v879 = vsub.s32 0, %v878
        %v880 = vrot.slane %v875, %v879
        %v881 = vlaneseq
        %v882 = vshrl.u32 %v881, 7
        %v883 = vsub.s32 1, %v882
        %v884 = vrot.slane %v875, %v883
        %887 = vmatprep.subr.mxu0 %v394
        %888 = vmatpush1.msra.mxu0 %v393
        %889 = vmatprep.subr.mxu0 %v392
        %890 = vmatpush1.msra.mxu0 %v391
        %891 = vmatprep.subr.mxu0 %v390
        %892 = vmatpush1.msra.mxu0 %v389
        %893 = vmatprep.subr.mxu0 %v388
        %894 = vmatpush1.msra.mxu0 %v387
        %895 = vmatprep.subr.mxu0 %v386
        %896 = vmatpush1.msra.mxu0 %v385
        %897 = vmatprep.subr.mxu0 %v384
        %898 = vmatpush1.msra.mxu0 %v383
        %899 = vmatprep.subr.mxu0 %v382
        %900 = vmatpush1.msra.mxu0 %v381
        %901 = vmatprep.subr.mxu0 %v380
        %902 = vmatpush1.msra.mxu0 %v379
        %903 = vmatprep.subr.mxu0 %v378
        %904 = vmatpush1.msra.mxu0 %v377
        %905 = vmatprep.subr.mxu0 %v376
        %906 = vmatpush1.msra.mxu0 %v375
        %907 = vmatprep.subr.mxu0 %v374
        %908 = vmatpush1.msra.mxu0 %v373
        %909 = vmatprep.subr.mxu0 %v372
        %910 = vmatpush1.msra.mxu0 %v371
        %911 = vmatprep.subr.mxu0 %v370
        %912 = vmatpush1.msra.mxu0 %v369
        %913 = vmatprep.subr.mxu0 %v368
        %914 = vmatpush1.msra.mxu0 %v367
        %915 = vmatprep.subr.mxu0 %v366
        %916 = vmatpush1.msra.mxu0 %v365
        %917 = vmatprep.subr.mxu0 %v364
        %918 = vmatpush1.msra.mxu0 %v363
        %919 = vmatprep.subr.mxu0 %v426
        %920 = vmatpush2.msra.mxu0 %v425
        %921 = vmatprep.subr.mxu0 %v424
        %922 = vmatpush2.msra.mxu0 %v423
        %923 = vmatprep.subr.mxu0 %v422
        %924 = vmatpush2.msra.mxu0 %v421
        %925 = vmatprep.subr.mxu0 %v420
        %926 = vmatpush2.msra.mxu0 %v419
        %927 = vmatprep.subr.mxu0 %v418
        %928 = vmatpush2.msra.mxu0 %v417
        %929 = vmatprep.subr.mxu0 %v416
        %930 = vmatpush2.msra.mxu0 %v415
        %931 = vmatprep.subr.mxu0 %v414
        %932 = vmatpush2.msra.mxu0 %v413
        %933 = vmatprep.subr.mxu0 %v412
        %934 = vmatpush2.msra.mxu0 %v411
        %935 = vmatprep.subr.mxu0 %v410
        %936 = vmatpush2.msra.mxu0 %v409
        %937 = vmatprep.subr.mxu0 %v408
        %938 = vmatpush2.msra.mxu0 %v407
        %939 = vmatprep.subr.mxu0 %v406
        %940 = vmatpush2.msra.mxu0 %v405
        %941 = vmatprep.subr.mxu0 %v404
        %942 = vmatpush2.msra.mxu0 %v403
        %943 = vmatprep.subr.mxu0 %v402
        %944 = vmatpush2.msra.mxu0 %v401
        %945 = vmatprep.subr.mxu0 %v400
        %946 = vmatpush2.msra.mxu0 %v399
        %947 = vmatprep.subr.mxu0 %v398
        %948 = vmatpush2.msra.mxu0 %v397
        %949 = vmatprep.subr.mxu0 %v396
        %950 = vmatpush2.msra.mxu0 %v395
        %951 = vmatprep.mubr.f32.mxu0 %v300
        %952 = vmatmul.mubr.f32.gmra.mxu0 %v299
        %v953 = vpop.f32.mrf.mxu0
        %v954 = vadd.f32 %v880, %v953
        %v955 = vpop.f32.mrf.mxu0
        %v956 = vadd.f32 %v884, %v955
        %957 = vmatprep.mubr.f32.mxu0 %v316
        %958 = vmatmul.mubr.f32.gmra.mxu0 %v315
        %v959 = vpop.f32.mrf.mxu0
        %v960 = vadd.f32 %v880, %v959
        %v961 = vpop.f32.mrf.mxu0
        %v962 = vadd.f32 %v884, %v961
        %963 = vmatprep.mubr.f32.mxu0 %v332
        %964 = vmatmul.mubr.f32.gmra.mxu0 %v331
        %v965 = vpop.f32.mrf.mxu0
        %v966 = vadd.f32 %v880, %v965
        %v967 = vpop.f32.mrf.mxu0
        %v968 = vadd.f32 %v884, %v967
        %969 = vmatprep.mubr.f32.mxu0 %v348
        %970 = vmatmul.mubr.f32.gmra.mxu0 %v347
        %v971 = vpop.f32.mrf.mxu0
        %v972 = vadd.f32 %v880, %v971
        %v973 = vpop.f32.mrf.mxu0
        %v974 = vadd.f32 %v884, %v973
        %975 = vdwg.mxu0
        %976 = vmatprep.subr.mxu0 %v458
        %977 = vmatpush1.msra.mxu0 %v457
        %978 = vmatprep.subr.mxu0 %v456
        %979 = vmatpush1.msra.mxu0 %v455
        %980 = vmatprep.subr.mxu0 %v454
        %981 = vmatpush1.msra.mxu0 %v453
        %982 = vmatprep.subr.mxu0 %v452
        %983 = vmatpush1.msra.mxu0 %v451
        %984 = vmatprep.subr.mxu0 %v450
        %985 = vmatpush1.msra.mxu0 %v449
        %986 = vmatprep.subr.mxu0 %v448
        %987 = vmatpush1.msra.mxu0 %v447
        %988 = vmatprep.subr.mxu0 %v446
        %989 = vmatpush1.msra.mxu0 %v445
        %990 = vmatprep.subr.mxu0 %v444
        %991 = vmatpush1.msra.mxu0 %v443
        %992 = vmatprep.subr.mxu0 %v442
        %993 = vmatpush1.msra.mxu0 %v441
        %994 = vmatprep.subr.mxu0 %v440
        %995 = vmatpush1.msra.mxu0 %v439
        %996 = vmatprep.subr.mxu0 %v438
        %997 = vmatpush1.msra.mxu0 %v437
        %998 = vmatprep.subr.mxu0 %v436
        %999 = vmatpush1.msra.mxu0 %v435
        %1000 = vmatprep.subr.mxu0 %v434
        %1001 = vmatpush1.msra.mxu0 %v433
        %1002 = vmatprep.subr.mxu0 %v432
        %1003 = vmatpush1.msra.mxu0 %v431
        %1004 = vmatprep.subr.mxu0 %v430
        %1005 = vmatpush1.msra.mxu0 %v429
        %1006 = vmatprep.subr.mxu0 %v428
        %1007 = vmatpush1.msra.mxu0 %v427
        %1008 = vmatprep.subr.mxu0 %v490
        %1009 = vmatpush2.msra.mxu0 %v489
        %1010 = vmatprep.subr.mxu0 %v488
        %1011 = vmatpush2.msra.mxu0 %v487
        %1012 = vmatprep.subr.mxu0 %v486
        %1013 = vmatpush2.msra.mxu0 %v485
        %1014 = vmatprep.subr.mxu0 %v484
        %1015 = vmatpush2.msra.mxu0 %v483
        %1016 = vmatprep.subr.mxu0 %v482
        %1017 = vmatpush2.msra.mxu0 %v481
        %1018 = vmatprep.subr.mxu0 %v480
        %1019 = vmatpush2.msra.mxu0 %v479
        %1020 = vmatprep.subr.mxu0 %v478
        %1021 = vmatpush2.msra.mxu0 %v477
        %1022 = vmatprep.subr.mxu0 %v476
        %1023 = vmatpush2.msra.mxu0 %v475
        %1024 = vmatprep.subr.mxu0 %v474
        %1025 = vmatpush2.msra.mxu0 %v473
        %1026 = vmatprep.subr.mxu0 %v472
        %1027 = vmatpush2.msra.mxu0 %v471
        %1028 = vmatprep.subr.mxu0 %v470
        %1029 = vmatpush2.msra.mxu0 %v469
        %1030 = vmatprep.subr.mxu0 %v468
        %1031 = vmatpush2.msra.mxu0 %v467
        %1032 = vmatprep.subr.mxu0 %v466
        %1033 = vmatpush2.msra.mxu0 %v465
        %1034 = vmatprep.subr.mxu0 %v464
        %1035 = vmatpush2.msra.mxu0 %v463
        %1036 = vmatprep.subr.mxu0 %v462
        %1037 = vmatpush2.msra.mxu0 %v461
        %1038 = vmatprep.subr.mxu0 %v460
        %1039 = vmatpush2.msra.mxu0 %v459
        %1040 = vmatprep.mubr.f32.mxu0 %v302
        %1041 = vmatmul.mubr.f32.gmra.mxu0 %v301
        %v1042 = vpop.f32.mrf.mxu0
        %v1043 = vadd.f32 %v954, %v1042
        %v1044 = vpop.f32.mrf.mxu0
        %v1045 = vadd.f32 %v956, %v1044
        %1046 = vmatprep.mubr.f32.mxu0 %v318
        %1047 = vmatmul.mubr.f32.gmra.mxu0 %v317
        %v1048 = vpop.f32.mrf.mxu0
        %v1049 = vadd.f32 %v960, %v1048
        %v1050 = vpop.f32.mrf.mxu0
        %v1051 = vadd.f32 %v962, %v1050
        %1052 = vmatprep.mubr.f32.mxu0 %v334
        %1053 = vmatmul.mubr.f32.gmra.mxu0 %v333
        %v1054 = vpop.f32.mrf.mxu0
        %v1055 = vadd.f32 %v966, %v1054
        %v1056 = vpop.f32.mrf.mxu0
        %v1057 = vadd.f32 %v968, %v1056
        %1058 = vmatprep.mubr.f32.mxu0 %v350
        %1059 = vmatmul.mubr.f32.gmra.mxu0 %v349
        %v1060 = vpop.f32.mrf.mxu0
        %v1061 = vadd.f32 %v972, %v1060
        %v1062 = vpop.f32.mrf.mxu0
        %v1063 = vadd.f32 %v974, %v1062
        %1064 = vdwg.mxu0
        %1065 = vmatprep.subr.mxu0 %v522
        %1066 = vmatpush1.msra.mxu0 %v521
        %1067 = vmatprep.subr.mxu0 %v520
        %1068 = vmatpush1.msra.mxu0 %v519
        %1069 = vmatprep.subr.mxu0 %v518
        %1070 = vmatpush1.msra.mxu0 %v517
        %1071 = vmatprep.subr.mxu0 %v516
        %1072 = vmatpush1.msra.mxu0 %v515
        %1073 = vmatprep.subr.mxu0 %v514
        %1074 = vmatpush1.msra.mxu0 %v513
        %1075 = vmatprep.subr.mxu0 %v512
        %1076 = vmatpush1.msra.mxu0 %v511
        %1077 = vmatprep.subr.mxu0 %v510
        %1078 = vmatpush1.msra.mxu0 %v509
        %1079 = vmatprep.subr.mxu0 %v508
        %1080 = vmatpush1.msra.mxu0 %v507
        %1081 = vmatprep.subr.mxu0 %v506
        %1082 = vmatpush1.msra.mxu0 %v505
        %1083 = vmatprep.subr.mxu0 %v504
        %1084 = vmatpush1.msra.mxu0 %v503
        %1085 = vmatprep.subr.mxu0 %v502
        %1086 = vmatpush1.msra.mxu0 %v501
        %1087 = vmatprep.subr.mxu0 %v500
        %1088 = vmatpush1.msra.mxu0 %v499
        %1089 = vmatprep.subr.mxu0 %v498
        %1090 = vmatpush1.msra.mxu0 %v497
        %1091 = vmatprep.subr.mxu0 %v496
        %1092 = vmatpush1.msra.mxu0 %v495
        %1093 = vmatprep.subr.mxu0 %v494
        %1094 = vmatpush1.msra.mxu0 %v493
        %1095 = vmatprep.subr.mxu0 %v492
        %1096 = vmatpush1.msra.mxu0 %v491
        %1097 = vmatprep.subr.mxu0 %v554
        %1098 = vmatpush2.msra.mxu0 %v553
        %1099 = vmatprep.subr.mxu0 %v552
        %1100 = vmatpush2.msra.mxu0 %v551
        %1101 = vmatprep.subr.mxu0 %v550
        %1102 = vmatpush2.msra.mxu0 %v549
        %1103 = vmatprep.subr.mxu0 %v548
        %1104 = vmatpush2.msra.mxu0 %v547
        %1105 = vmatprep.subr.mxu0 %v546
        %1106 = vmatpush2.msra.mxu0 %v545
        %1107 = vmatprep.subr.mxu0 %v544
        %1108 = vmatpush2.msra.mxu0 %v543
        %1109 = vmatprep.subr.mxu0 %v542
        %1110 = vmatpush2.msra.mxu0 %v541
        %1111 = vmatprep.subr.mxu0 %v540
        %1112 = vmatpush2.msra.mxu0 %v539
        %1113 = vmatprep.subr.mxu0 %v538
        %1114 = vmatpush2.msra.mxu0 %v537
        %1115 = vmatprep.subr.mxu0 %v536
        %1116 = vmatpush2.msra.mxu0 %v535
        %1117 = vmatprep.subr.mxu0 %v534
        %1118 = vmatpush2.msra.mxu0 %v533
        %1119 = vmatprep.subr.mxu0 %v532
        %1120 = vmatpush2.msra.mxu0 %v531
        %1121 = vmatprep.subr.mxu0 %v530
        %1122 = vmatpush2.msra.mxu0 %v529
        %1123 = vmatprep.subr.mxu0 %v528
        %1124 = vmatpush2.msra.mxu0 %v527
        %1125 = vmatprep.subr.mxu0 %v526
        %1126 = vmatpush2.msra.mxu0 %v525
        %1127 = vmatprep.subr.mxu0 %v524
        %1128 = vmatpush2.msra.mxu0 %v523
        %1129 = vmatprep.mubr.f32.mxu0 %v304
        %1130 = vmatmul.mubr.f32.gmra.mxu0 %v303
        %v1131 = vpop.f32.mrf.mxu0
        %v1132 = vadd.f32 %v1043, %v1131
        %v1133 = vpop.f32.mrf.mxu0
        %v1134 = vadd.f32 %v1045, %v1133
        %1135 = vmatprep.mubr.f32.mxu0 %v320
        %1136 = vmatmul.mubr.f32.gmra.mxu0 %v319
        %v1137 = vpop.f32.mrf.mxu0
        %v1138 = vadd.f32 %v1049, %v1137
        %v1139 = vpop.f32.mrf.mxu0
        %v1140 = vadd.f32 %v1051, %v1139
        %1141 = vmatprep.mubr.f32.mxu0 %v336
        %1142 = vmatmul.mubr.f32.gmra.mxu0 %v335
        %v1143 = vpop.f32.mrf.mxu0
        %v1144 = vadd.f32 %v1055, %v1143
        %v1145 = vpop.f32.mrf.mxu0
        %v1146 = vadd.f32 %v1057, %v1145
        %1147 = vmatprep.mubr.f32.mxu0 %v352
        %1148 = vmatmul.mubr.f32.gmra.mxu0 %v351
        %v1149 = vpop.f32.mrf.mxu0
        %v1150 = vadd.f32 %v1061, %v1149
        %v1151 = vpop.f32.mrf.mxu0
        %v1152 = vadd.f32 %v1063, %v1151
        %1153 = vdwg.mxu0
        %1154 = vmatprep.subr.mxu0 %v586
        %1155 = vmatpush1.msra.mxu0 %v585
        %1156 = vmatprep.subr.mxu0 %v584
        %1157 = vmatpush1.msra.mxu0 %v583
        %1158 = vmatprep.subr.mxu0 %v582
        %1159 = vmatpush1.msra.mxu0 %v581
        %1160 = vmatprep.subr.mxu0 %v580
        %1161 = vmatpush1.msra.mxu0 %v579
        %1162 = vmatprep.subr.mxu0 %v578
        %1163 = vmatpush1.msra.mxu0 %v577
        %1164 = vmatprep.subr.mxu0 %v576
        %1165 = vmatpush1.msra.mxu0 %v575
        %1166 = vmatprep.subr.mxu0 %v574
        %1167 = vmatpush1.msra.mxu0 %v573
        %1168 = vmatprep.subr.mxu0 %v572
        %1169 = vmatpush1.msra.mxu0 %v571
        %1170 = vmatprep.subr.mxu0 %v570
        %1171 = vmatpush1.msra.mxu0 %v569
        %1172 = vmatprep.subr.mxu0 %v568
        %1173 = vmatpush1.msra.mxu0 %v567
        %1174 = vmatprep.subr.mxu0 %v566
        %1175 = vmatpush1.msra.mxu0 %v565
        %1176 = vmatprep.subr.mxu0 %v564
        %1177 = vmatpush1.msra.mxu0 %v563
        %1178 = vmatprep.subr.mxu0 %v562
        %1179 = vmatpush1.msra.mxu0 %v561
        %1180 = vmatprep.subr.mxu0 %v560
        %1181 = vmatpush1.msra.mxu0 %v559
        %1182 = vmatprep.subr.mxu0 %v558
        %1183 = vmatpush1.msra.mxu0 %v557
        %1184 = vmatprep.subr.mxu0 %v556
        %1185 = vmatpush1.msra.mxu0 %v555
        %1186 = vmatprep.subr.mxu0 %v618
        %1187 = vmatpush2.msra.mxu0 %v617
        %1188 = vmatprep.subr.mxu0 %v616
        %1189 = vmatpush2.msra.mxu0 %v615
        %1190 = vmatprep.subr.mxu0 %v614
        %1191 = vmatpush2.msra.mxu0 %v613
        %1192 = vmatprep.subr.mxu0 %v612
        %1193 = vmatpush2.msra.mxu0 %v611
        %1194 = vmatprep.subr.mxu0 %v610
        %1195 = vmatpush2.msra.mxu0 %v609
        %1196 = vmatprep.subr.mxu0 %v608
        %1197 = vmatpush2.msra.mxu0 %v607
        %1198 = vmatprep.subr.mxu0 %v606
        %1199 = vmatpush2.msra.mxu0 %v605
        %1200 = vmatprep.subr.mxu0 %v604
        %1201 = vmatpush2.msra.mxu0 %v603
        %1202 = vmatprep.subr.mxu0 %v602
        %1203 = vmatpush2.msra.mxu0 %v601
        %1204 = vmatprep.subr.mxu0 %v600
        %1205 = vmatpush2.msra.mxu0 %v599
        %1206 = vmatprep.subr.mxu0 %v598
        %1207 = vmatpush2.msra.mxu0 %v597
        %1208 = vmatprep.subr.mxu0 %v596
        %1209 = vmatpush2.msra.mxu0 %v595
        %1210 = vmatprep.subr.mxu0 %v594
        %1211 = vmatpush2.msra.mxu0 %v593
        %1212 = vmatprep.subr.mxu0 %v592
        %1213 = vmatpush2.msra.mxu0 %v591
        %1214 = vmatprep.subr.mxu0 %v590
        %1215 = vmatpush2.msra.mxu0 %v589
        %1216 = vmatprep.subr.mxu0 %v588
        %1217 = vmatpush2.msra.mxu0 %v587
        %1218 = vmatprep.mubr.f32.mxu0 %v306
        %1219 = vmatmul.mubr.f32.gmra.mxu0 %v305
        %v1220 = vpop.f32.mrf.mxu0
        %v1221 = vadd.f32 %v1132, %v1220
        %v1222 = vpop.f32.mrf.mxu0
        %v1223 = vadd.f32 %v1134, %v1222
        %1224 = vmatprep.mubr.f32.mxu0 %v322
        %1225 = vmatmul.mubr.f32.gmra.mxu0 %v321
        %v1226 = vpop.f32.mrf.mxu0
        %v1227 = vadd.f32 %v1138, %v1226
        %v1228 = vpop.f32.mrf.mxu0
        %v1229 = vadd.f32 %v1140, %v1228
        %1230 = vmatprep.mubr.f32.mxu0 %v338
        %1231 = vmatmul.mubr.f32.gmra.mxu0 %v337
        %v1232 = vpop.f32.mrf.mxu0
        %v1233 = vadd.f32 %v1144, %v1232
        %v1234 = vpop.f32.mrf.mxu0
        %v1235 = vadd.f32 %v1146, %v1234
        %1236 = vmatprep.mubr.f32.mxu0 %v354
        %1237 = vmatmul.mubr.f32.gmra.mxu0 %v353
        %v1238 = vpop.f32.mrf.mxu0
        %v1239 = vadd.f32 %v1150, %v1238
        %v1240 = vpop.f32.mrf.mxu0
        %v1241 = vadd.f32 %v1152, %v1240
        %1242 = vdwg.mxu0
        %1243 = vmatprep.subr.mxu0 %v650
        %1244 = vmatpush1.msra.mxu0 %v649
        %1245 = vmatprep.subr.mxu0 %v648
        %1246 = vmatpush1.msra.mxu0 %v647
        %1247 = vmatprep.subr.mxu0 %v646
        %1248 = vmatpush1.msra.mxu0 %v645
        %1249 = vmatprep.subr.mxu0 %v644
        %1250 = vmatpush1.msra.mxu0 %v643
        %1251 = vmatprep.subr.mxu0 %v642
        %1252 = vmatpush1.msra.mxu0 %v641
        %1253 = vmatprep.subr.mxu0 %v640
        %1254 = vmatpush1.msra.mxu0 %v639
        %1255 = vmatprep.subr.mxu0 %v638
        %1256 = vmatpush1.msra.mxu0 %v637
        %1257 = vmatprep.subr.mxu0 %v636
        %1258 = vmatpush1.msra.mxu0 %v635
        %1259 = vmatprep.subr.mxu0 %v634
        %1260 = vmatpush1.msra.mxu0 %v633
        %1261 = vmatprep.subr.mxu0 %v632
        %1262 = vmatpush1.msra.mxu0 %v631
        %1263 = vmatprep.subr.mxu0 %v630
        %1264 = vmatpush1.msra.mxu0 %v629
        %1265 = vmatprep.subr.mxu0 %v628
        %1266 = vmatpush1.msra.mxu0 %v627
        %1267 = vmatprep.subr.mxu0 %v626
        %1268 = vmatpush1.msra.mxu0 %v625
        %1269 = vmatprep.subr.mxu0 %v624
        %1270 = vmatpush1.msra.mxu0 %v623
        %1271 = vmatprep.subr.mxu0 %v622
        %1272 = vmatpush1.msra.mxu0 %v621
        %1273 = vmatprep.subr.mxu0 %v620
        %1274 = vmatpush1.msra.mxu0 %v619
        %1275 = vmatprep.subr.mxu0 %v682
        %1276 = vmatpush2.msra.mxu0 %v681
        %1277 = vmatprep.subr.mxu0 %v680
        %1278 = vmatpush2.msra.mxu0 %v679
        %1279 = vmatprep.subr.mxu0 %v678
        %1280 = vmatpush2.msra.mxu0 %v677
        %1281 = vmatprep.subr.mxu0 %v676
        %1282 = vmatpush2.msra.mxu0 %v675
        %1283 = vmatprep.subr.mxu0 %v674
        %1284 = vmatpush2.msra.mxu0 %v673
        %1285 = vmatprep.subr.mxu0 %v672
        %1286 = vmatpush2.msra.mxu0 %v671
        %1287 = vmatprep.subr.mxu0 %v670
        %1288 = vmatpush2.msra.mxu0 %v669
        %1289 = vmatprep.subr.mxu0 %v668
        %1290 = vmatpush2.msra.mxu0 %v667
        %1291 = vmatprep.subr.mxu0 %v666
        %1292 = vmatpush2.msra.mxu0 %v665
        %1293 = vmatprep.subr.mxu0 %v664
        %1294 = vmatpush2.msra.mxu0 %v663
        %1295 = vmatprep.subr.mxu0 %v662
        %1296 = vmatpush2.msra.mxu0 %v661
        %1297 = vmatprep.subr.mxu0 %v660
        %1298 = vmatpush2.msra.mxu0 %v659
        %1299 = vmatprep.subr.mxu0 %v658
        %1300 = vmatpush2.msra.mxu0 %v657
        %1301 = vmatprep.subr.mxu0 %v656
        %1302 = vmatpush2.msra.mxu0 %v655
        %1303 = vmatprep.subr.mxu0 %v654
        %1304 = vmatpush2.msra.mxu0 %v653
        %1305 = vmatprep.subr.mxu0 %v652
        %1306 = vmatpush2.msra.mxu0 %v651
        %1307 = vmatprep.mubr.f32.mxu0 %v308
        %1308 = vmatmul.mubr.f32.gmra.mxu0 %v307
        %v1309 = vpop.f32.mrf.mxu0
        %v1310 = vadd.f32 %v1221, %v1309
        %v1311 = vpop.f32.mrf.mxu0
        %v1312 = vadd.f32 %v1223, %v1311
        %1313 = vmatprep.mubr.f32.mxu0 %v324
        %1314 = vmatmul.mubr.f32.gmra.mxu0 %v323
        %v1315 = vpop.f32.mrf.mxu0
        %v1316 = vadd.f32 %v1227, %v1315
        %v1317 = vpop.f32.mrf.mxu0
        %v1318 = vadd.f32 %v1229, %v1317
        %1319 = vmatprep.mubr.f32.mxu0 %v340
        %1320 = vmatmul.mubr.f32.gmra.mxu0 %v339
        %v1321 = vpop.f32.mrf.mxu0
        %v1322 = vadd.f32 %v1233, %v1321
        %v1323 = vpop.f32.mrf.mxu0
        %v1324 = vadd.f32 %v1235, %v1323
        %1325 = vmatprep.mubr.f32.mxu0 %v356
        %1326 = vmatmul.mubr.f32.gmra.mxu0 %v355
        %v1327 = vpop.f32.mrf.mxu0
        %v1328 = vadd.f32 %v1239, %v1327
        %v1329 = vpop.f32.mrf.mxu0
        %v1330 = vadd.f32 %v1241, %v1329
        %1331 = vdwg.mxu0
        %1332 = vmatprep.subr.mxu0 %v714
        %1333 = vmatpush1.msra.mxu0 %v713
        %1334 = vmatprep.subr.mxu0 %v712
        %1335 = vmatpush1.msra.mxu0 %v711
        %1336 = vmatprep.subr.mxu0 %v710
        %1337 = vmatpush1.msra.mxu0 %v709
        %1338 = vmatprep.subr.mxu0 %v708
        %1339 = vmatpush1.msra.mxu0 %v707
        %1340 = vmatprep.subr.mxu0 %v706
        %1341 = vmatpush1.msra.mxu0 %v705
        %1342 = vmatprep.subr.mxu0 %v704
        %1343 = vmatpush1.msra.mxu0 %v703
        %1344 = vmatprep.subr.mxu0 %v702
        %1345 = vmatpush1.msra.mxu0 %v701
        %1346 = vmatprep.subr.mxu0 %v700
        %1347 = vmatpush1.msra.mxu0 %v699
        %1348 = vmatprep.subr.mxu0 %v698
        %1349 = vmatpush1.msra.mxu0 %v697
        %1350 = vmatprep.subr.mxu0 %v696
        %1351 = vmatpush1.msra.mxu0 %v695
        %1352 = vmatprep.subr.mxu0 %v694
        %1353 = vmatpush1.msra.mxu0 %v693
        %1354 = vmatprep.subr.mxu0 %v692
        %1355 = vmatpush1.msra.mxu0 %v691
        %1356 = vmatprep.subr.mxu0 %v690
        %1357 = vmatpush1.msra.mxu0 %v689
        %1358 = vmatprep.subr.mxu0 %v688
        %1359 = vmatpush1.msra.mxu0 %v687
        %1360 = vmatprep.subr.mxu0 %v686
        %1361 = vmatpush1.msra.mxu0 %v685
        %1362 = vmatprep.subr.mxu0 %v684
        %1363 = vmatpush1.msra.mxu0 %v683
        %1364 = vmatprep.subr.mxu0 %v746
        %1365 = vmatpush2.msra.mxu0 %v745
        %1366 = vmatprep.subr.mxu0 %v744
        %1367 = vmatpush2.msra.mxu0 %v743
        %1368 = vmatprep.subr.mxu0 %v742
        %1369 = vmatpush2.msra.mxu0 %v741
        %1370 = vmatprep.subr.mxu0 %v740
        %1371 = vmatpush2.msra.mxu0 %v739
        %1372 = vmatprep.subr.mxu0 %v738
        %1373 = vmatpush2.msra.mxu0 %v737
        %1374 = vmatprep.subr.mxu0 %v736
        %1375 = vmatpush2.msra.mxu0 %v735
        %1376 = vmatprep.subr.mxu0 %v734
        %1377 = vmatpush2.msra.mxu0 %v733
        %1378 = vmatprep.subr.mxu0 %v732
        %1379 = vmatpush2.msra.mxu0 %v731
        %1380 = vmatprep.subr.mxu0 %v730
        %1381 = vmatpush2.msra.mxu0 %v729
        %1382 = vmatprep.subr.mxu0 %v728
        %1383 = vmatpush2.msra.mxu0 %v727
        %1384 = vmatprep.subr.mxu0 %v726
        %1385 = vmatpush2.msra.mxu0 %v725
        %1386 = vmatprep.subr.mxu0 %v724
        %1387 = vmatpush2.msra.mxu0 %v723
        %1388 = vmatprep.subr.mxu0 %v722
        %1389 = vmatpush2.msra.mxu0 %v721
        %1390 = vmatprep.subr.mxu0 %v720
        %1391 = vmatpush2.msra.mxu0 %v719
        %1392 = vmatprep.subr.mxu0 %v718
        %1393 = vmatpush2.msra.mxu0 %v717
        %1394 = vmatprep.subr.mxu0 %v716
        %1395 = vmatpush2.msra.mxu0 %v715
        %1396 = vmatprep.mubr.f32.mxu0 %v310
        %1397 = vmatmul.mubr.f32.gmra.mxu0 %v309
        %v1398 = vpop.f32.mrf.mxu0
        %v1399 = vadd.f32 %v1310, %v1398
        %v1400 = vpop.f32.mrf.mxu0
        %v1401 = vadd.f32 %v1312, %v1400
        %1402 = vmatprep.mubr.f32.mxu0 %v326
        %1403 = vmatmul.mubr.f32.gmra.mxu0 %v325
        %v1404 = vpop.f32.mrf.mxu0
        %v1405 = vadd.f32 %v1316, %v1404
        %v1406 = vpop.f32.mrf.mxu0
        %v1407 = vadd.f32 %v1318, %v1406
        %1408 = vmatprep.mubr.f32.mxu0 %v342
        %1409 = vmatmul.mubr.f32.gmra.mxu0 %v341
        %v1410 = vpop.f32.mrf.mxu0
        %v1411 = vadd.f32 %v1322, %v1410
        %v1412 = vpop.f32.mrf.mxu0
        %v1413 = vadd.f32 %v1324, %v1412
        %1414 = vmatprep.mubr.f32.mxu0 %v358
        %1415 = vmatmul.mubr.f32.gmra.mxu0 %v357
        %v1416 = vpop.f32.mrf.mxu0
        %v1417 = vadd.f32 %v1328, %v1416
        %v1418 = vpop.f32.mrf.mxu0
        %v1419 = vadd.f32 %v1330, %v1418
        %1420 = vdwg.mxu0
        %1421 = vmatprep.subr.mxu0 %v778
        %1422 = vmatpush1.msra.mxu0 %v777
        %1423 = vmatprep.subr.mxu0 %v776
        %1424 = vmatpush1.msra.mxu0 %v775
        %1425 = vmatprep.subr.mxu0 %v774
        %1426 = vmatpush1.msra.mxu0 %v773
        %1427 = vmatprep.subr.mxu0 %v772
        %1428 = vmatpush1.msra.mxu0 %v771
        %1429 = vmatprep.subr.mxu0 %v770
        %1430 = vmatpush1.msra.mxu0 %v769
        %1431 = vmatprep.subr.mxu0 %v768
        %1432 = vmatpush1.msra.mxu0 %v767
        %1433 = vmatprep.subr.mxu0 %v766
        %1434 = vmatpush1.msra.mxu0 %v765
        %1435 = vmatprep.subr.mxu0 %v764
        %1436 = vmatpush1.msra.mxu0 %v763
        %1437 = vmatprep.subr.mxu0 %v762
        %1438 = vmatpush1.msra.mxu0 %v761
        %1439 = vmatprep.subr.mxu0 %v760
        %1440 = vmatpush1.msra.mxu0 %v759
        %1441 = vmatprep.subr.mxu0 %v758
        %1442 = vmatpush1.msra.mxu0 %v757
        %1443 = vmatprep.subr.mxu0 %v756
        %1444 = vmatpush1.msra.mxu0 %v755
        %1445 = vmatprep.subr.mxu0 %v754
        %1446 = vmatpush1.msra.mxu0 %v753
        %1447 = vmatprep.subr.mxu0 %v752
        %1448 = vmatpush1.msra.mxu0 %v751
        %1449 = vmatprep.subr.mxu0 %v750
        %1450 = vmatpush1.msra.mxu0 %v749
        %1451 = vmatprep.subr.mxu0 %v748
        %1452 = vmatpush1.msra.mxu0 %v747
        %1453 = vmatprep.subr.mxu0 %v810
        %1454 = vmatpush2.msra.mxu0 %v809
        %1455 = vmatprep.subr.mxu0 %v808
        %1456 = vmatpush2.msra.mxu0 %v807
        %1457 = vmatprep.subr.mxu0 %v806
        %1458 = vmatpush2.msra.mxu0 %v805
        %1459 = vmatprep.subr.mxu0 %v804
        %1460 = vmatpush2.msra.mxu0 %v803
        %1461 = vmatprep.subr.mxu0 %v802
        %1462 = vmatpush2.msra.mxu0 %v801
        %1463 = vmatprep.subr.mxu0 %v800
        %1464 = vmatpush2.msra.mxu0 %v799
        %1465 = vmatprep.subr.mxu0 %v798
        %1466 = vmatpush2.msra.mxu0 %v797
        %1467 = vmatprep.subr.mxu0 %v796
        %1468 = vmatpush2.msra.mxu0 %v795
        %1469 = vmatprep.subr.mxu0 %v794
        %1470 = vmatpush2.msra.mxu0 %v793
        %1471 = vmatprep.subr.mxu0 %v792
        %1472 = vmatpush2.msra.mxu0 %v791
        %1473 = vmatprep.subr.mxu0 %v790
        %1474 = vmatpush2.msra.mxu0 %v789
        %1475 = vmatprep.subr.mxu0 %v788
        %1476 = vmatpush2.msra.mxu0 %v787
        %1477 = vmatprep.subr.mxu0 %v786
        %1478 = vmatpush2.msra.mxu0 %v785
        %1479 = vmatprep.subr.mxu0 %v784
        %1480 = vmatpush2.msra.mxu0 %v783
        %1481 = vmatprep.subr.mxu0 %v782
        %1482 = vmatpush2.msra.mxu0 %v781
        %1483 = vmatprep.subr.mxu0 %v780
        %1484 = vmatpush2.msra.mxu0 %v779
        %1485 = vmatprep.mubr.f32.mxu0 %v312
        %1486 = vmatmul.mubr.f32.gmra.mxu0 %v311
        %v1487 = vpop.f32.mrf.mxu0
        %v1488 = vadd.f32 %v1399, %v1487
        %v1489 = vpop.f32.mrf.mxu0
        %v1490 = vadd.f32 %v1401, %v1489
        %1491 = vmatprep.mubr.f32.mxu0 %v328
        %1492 = vmatmul.mubr.f32.gmra.mxu0 %v327
        %v1493 = vpop.f32.mrf.mxu0
        %v1494 = vadd.f32 %v1405, %v1493
        %v1495 = vpop.f32.mrf.mxu0
        %v1496 = vadd.f32 %v1407, %v1495
        %1497 = vmatprep.mubr.f32.mxu0 %v344
        %1498 = vmatmul.mubr.f32.gmra.mxu0 %v343
        %v1499 = vpop.f32.mrf.mxu0
        %v1500 = vadd.f32 %v1411, %v1499
        %v1501 = vpop.f32.mrf.mxu0
        %v1502 = vadd.f32 %v1413, %v1501
        %1503 = vmatprep.mubr.f32.mxu0 %v360
        %1504 = vmatmul.mubr.f32.gmra.mxu0 %v359
        %v1505 = vpop.f32.mrf.mxu0
        %v1506 = vadd.f32 %v1417, %v1505
        %v1507 = vpop.f32.mrf.mxu0
        %v1508 = vadd.f32 %v1419, %v1507
        %1509 = vdwg.mxu0
        %1510 = vmatprep.subr.mxu0 %v842
        %1511 = vmatpush1.msra.mxu0 %v841
        %1512 = vmatprep.subr.mxu0 %v840
        %1513 = vmatpush1.msra.mxu0 %v839
        %1514 = vmatprep.subr.mxu0 %v838
        %1515 = vmatpush1.msra.mxu0 %v837
        %1516 = vmatprep.subr.mxu0 %v836
        %1517 = vmatpush1.msra.mxu0 %v835
        %1518 = vmatprep.subr.mxu0 %v834
        %1519 = vmatpush1.msra.mxu0 %v833
        %1520 = vmatprep.subr.mxu0 %v832
        %1521 = vmatpush1.msra.mxu0 %v831
        %1522 = vmatprep.subr.mxu0 %v830
        %1523 = vmatpush1.msra.mxu0 %v829
        %1524 = vmatprep.subr.mxu0 %v828
        %1525 = vmatpush1.msra.mxu0 %v827
        %1526 = vmatprep.subr.mxu0 %v826
        %1527 = vmatpush1.msra.mxu0 %v825
        %1528 = vmatprep.subr.mxu0 %v824
        %1529 = vmatpush1.msra.mxu0 %v823
        %1530 = vmatprep.subr.mxu0 %v822
        %1531 = vmatpush1.msra.mxu0 %v821
        %1532 = vmatprep.subr.mxu0 %v820
        %1533 = vmatpush1.msra.mxu0 %v819
        %1534 = vmatprep.subr.mxu0 %v818
        %1535 = vmatpush1.msra.mxu0 %v817
        %1536 = vmatprep.subr.mxu0 %v816
        %1537 = vmatpush1.msra.mxu0 %v815
        %1538 = vmatprep.subr.mxu0 %v814
        %1539 = vmatpush1.msra.mxu0 %v813
        %1540 = vmatprep.subr.mxu0 %v812
        %1541 = vmatpush1.msra.mxu0 %v811
        %1542 = vmatprep.subr.mxu0 %v874
        %1543 = vmatpush2.msra.mxu0 %v873
        %1544 = vmatprep.subr.mxu0 %v872
        %1545 = vmatpush2.msra.mxu0 %v871
        %1546 = vmatprep.subr.mxu0 %v870
        %1547 = vmatpush2.msra.mxu0 %v869
        %1548 = vmatprep.subr.mxu0 %v868
        %1549 = vmatpush2.msra.mxu0 %v867
        %1550 = vmatprep.subr.mxu0 %v866
        %1551 = vmatpush2.msra.mxu0 %v865
        %1552 = vmatprep.subr.mxu0 %v864
        %1553 = vmatpush2.msra.mxu0 %v863
        %1554 = vmatprep.subr.mxu0 %v862
        %1555 = vmatpush2.msra.mxu0 %v861
        %1556 = vmatprep.subr.mxu0 %v860
        %1557 = vmatpush2.msra.mxu0 %v859
        %1558 = vmatprep.subr.mxu0 %v858
        %1559 = vmatpush2.msra.mxu0 %v857
        %1560 = vmatprep.subr.mxu0 %v856
        %1561 = vmatpush2.msra.mxu0 %v855
        %1562 = vmatprep.subr.mxu0 %v854
        %1563 = vmatpush2.msra.mxu0 %v853
        %1564 = vmatprep.subr.mxu0 %v852
        %1565 = vmatpush2.msra.mxu0 %v851
        %1566 = vmatprep.subr.mxu0 %v850
        %1567 = vmatpush2.msra.mxu0 %v849
        %1568 = vmatprep.subr.mxu0 %v848
        %1569 = vmatpush2.msra.mxu0 %v847
        %1570 = vmatprep.subr.mxu0 %v846
        %1571 = vmatpush2.msra.mxu0 %v845
        %1572 = vmatprep.subr.mxu0 %v844
        %1573 = vmatpush2.msra.mxu0 %v843
        %1574 = vmatprep.mubr.f32.mxu0 %v314
        %1575 = vmatmul.mubr.f32.gmra.mxu0 %v313
        %v1576 = vpop.f32.mrf.mxu0
        %v1577 = vadd.f32 %v1488, %v1576
        %v1578 = vpop.f32.mrf.mxu0
        %v1579 = vadd.f32 %v1490, %v1578
        %1580 = vmatprep.mubr.f32.mxu0 %v330
        %1581 = vmatmul.mubr.f32.gmra.mxu0 %v329
        %v1582 = vpop.f32.mrf.mxu0
        %v1583 = vadd.f32 %v1494, %v1582
        %v1584 = vpop.f32.mrf.mxu0
        %v1585 = vadd.f32 %v1496, %v1584
        %1586 = vmatprep.mubr.f32.mxu0 %v346
        %1587 = vmatmul.mubr.f32.gmra.mxu0 %v345
        %v1588 = vpop.f32.mrf.mxu0
        %v1589 = vadd.f32 %v1500, %v1588
        %v1590 = vpop.f32.mrf.mxu0
        %v1591 = vadd.f32 %v1502, %v1590
        %1592 = vmatprep.mubr.f32.mxu0 %v362
        %1593 = vmatmul.mubr.f32.gmra.mxu0 %v361
        %v1594 = vpop.f32.mrf.mxu0
        %v1595 = vadd.f32 %v1506, %v1594
        %v1596 = vpop.f32.mrf.mxu0
        %v1597 = vadd.f32 %v1508, %v1596
        %1598 = vdwg.mxu0
        %v1599 = vmax.f32 %v1577, 0.0
        %v1600 = vmax.f32 %v1579, 0.0
        %v1601 = vmax.f32 %v1583, 0.0
        %v1602 = vmax.f32 %v1585, 0.0
        %v1603 = vmax.f32 %v1589, 0.0
        %v1604 = vmax.f32 %v1591, 0.0
        %v1605 = vmax.f32 %v1595, 0.0
        %v1606 = vmax.f32 %v1597, 0.0
        %v1607 = vld [vmem:[#allocation8] sm:$0x3]
        %v1609 = vlaneseq
        %v1610 = vshrl.u32 %v1609, 7
        %v1611 = vsub.s32 0, %v1610
        %v1612 = vrot.slane %v1607, %v1611
        %v1613 = vlaneseq
        %v1614 = vshrl.u32 %v1613, 7
        %v1615 = vsub.s32 1, %v1614
        %v1616 = vrot.slane %v1607, %v1615
        %v1619 = vmul.f32 %v1599, %v1612
        %v1620 = vmul.f32 %v1600, %v1616
        %v1621 = vmul.f32 %v1601, %v1612
        %v1622 = vmul.f32 %v1602, %v1616
        %v1623 = vmul.f32 %v1603, %v1612
        %v1624 = vmul.f32 %v1604, %v1616
        %v1625 = vmul.f32 %v1605, %v1612
        %v1626 = vmul.f32 %v1606, %v1616
        %v1627 = vadd.f32 %v1619, %v1620
        %1628 = vadd.xlane.f32.xlu0 %v1627
        %v1629 = vpop.xlane.xlu0 %1628
        %v1630 = vadd.f32 %v1621, %v1622
        %1631 = vadd.xlane.f32.xlu0 %v1630
        %v1632 = vpop.xlane.xlu0 %1631
        %v1633 = vadd.f32 %v1623, %v1624
        %1634 = vadd.xlane.f32.xlu0 %v1633
        %v1635 = vpop.xlane.xlu0 %1634
        %v1636 = vadd.f32 %v1625, %v1626
        %1637 = vadd.xlane.f32.xlu0 %v1636
        %v1638 = vpop.xlane.xlu0 %1637
        %s1639 = sld [smem:[#allocation2]]
        %v1640 = vstv %s1639
        %v1641 = vadd.f32 %v1629, %v1640
        %v1642 = vadd.f32 %v1632, %v1640
        %v1643 = vadd.f32 %v1635, %v1640
        %v1644 = vadd.f32 %v1638, %v1640
        %v1645 = vsub.f32 0.0, %v1641
        %v1646 = vsub.f32 0.0, %v1642
        %v1647 = vsub.f32 0.0, %v1643
        %v1648 = vsub.f32 0.0, %v1644
        %v1649 = vmul.f32 %v1645, 1.442695
        %v1650 = vpow.pop %v1649
        %v1651 = vmul.f32 %v1646, 1.442695
        %v1652 = vpow.pop %v1651
        %v1653 = vmul.f32 %v1647, 1.442695
        %v1654 = vpow.pop %v1653
        %v1655 = vmul.f32 %v1648, 1.442695
        %v1656 = vpow.pop %v1655
        %v1657 = vadd.f32 %v1650, 1.0
        %v1658 = vadd.f32 %v1652, 1.0
        %v1659 = vadd.f32 %v1654, 1.0
        %v1660 = vadd.f32 %v1656, 1.0
        %v1661 = vrcp.pop %v1657
        %v1662 = vmul.f32 1.0, %v1661
        %v1663 = vrcp.pop %v1658
        %v1664 = vmul.f32 1.0, %v1663
        %v1665 = vrcp.pop %v1659
        %v1666 = vmul.f32 1.0, %v1665
        %v1667 = vrcp.pop %v1660
        %v1668 = vmul.f32 1.0, %v1667
        %v1669 = vmul.f32 %v1662, 46.0
        %v1670 = vmul.f32 %v1664, 46.0
        %v1671 = vmul.f32 %v1666, 46.0
        %v1672 = vmul.f32 %v1668, 46.0
        %v1673 = vadd.f32 %v1669, 0.0
        %v1674 = vadd.f32 %v1670, 0.0
        %v1675 = vadd.f32 %v1671, 0.0
        %v1676 = vadd.f32 %v1672, 0.0
        %vm1677 = vcmask 7168
        %1678 = vst.msk [vmem:[%s287] sm:$0xff] %vm1677, %v1673
        %1679 = vst.msk [vmem:[%s287 + $0x8] sm:$0xff] %vm1677, %v1674
        %1680 = vst.msk [vmem:[%s287 + $0x10] sm:$0xff] %vm1677, %v1675
        %1681 = vst.msk [vmem:[%s287 + $0x18] sm:$0xff] %vm1677, %v1676
        %s1682 = sand.u32 %s140, 1
        %s1683 = sand.u32 %s140, 1
        %s1684 = smul.addr %s1683, 32
        %s1685 = scalar_lea.vmem [#allocation10], %s1684
        // Predicated region
        $region57: #{tpu_custom_call.1} parent=39 // pred_check
          %p1686 = pneg %p150
        $region58: #{tpu_custom_call.1} parent=39 // pred_check_branch
          %1688 = sbr.rel (%p1686) target = $region60
        $region59: #{tpu_custom_call.1} parent=39 // pred_region
          %s1689 = smul.u32 4, %s22
          %s1690 = ssub.s32 13, %s1689
          %p1691 = scmp.lt.s32.totalorder %s1690, 4
          %s1692 = scalar_select %p1691, %s1690, 4
          %s1693 = smul.u32 128, %s1692
          %p1694 = scmp.ne.s32.totalorder 0, %s1693
          %s1695 = smul.addr %s1689, 8
          %s1696 = scalar_lea.vmem %s5, %s1695
          // Predicated region
          $region61: #{tpu_custom_call.1} parent=59 // pred_check
            %p1697 = pneg %p1694
          $region62: #{tpu_custom_call.1} parent=59 // pred_check_branch
            %1699 = sbr.rel (%p1697) target = $region64
          $region63: #{tpu_custom_call.1} parent=59 // pred_region
            // Predicated region
            $region65: #{tpu_custom_call.1} parent=63 // pred_check
              _
            $region66: #{tpu_custom_call.1} parent=63 // pred_check_branch
              %1701 = sbr.rel (0) target = $region68
            $region67: #{tpu_custom_call.1} parent=63 // pred_region
              // Predicated region
              $region87: #{tpu_custom_call.1} parent=67 // pred_check
                _
              $region88: #{tpu_custom_call.1} parent=67 // pred_check_branch
                %1757 = sbr.rel (0) target = $region90
              $region89: #{tpu_custom_call.1} parent=67 // pred_region
                %s1758 = sshrl.u32 %s1692, 2
                // While loop
                $region91: #{tpu_custom_call.1} parent=89 // loop_pre_header
                  _
                $region92: #{tpu_custom_call.1} parent=89 // loop_header
                  %s1760 = sphi 0, %s1762
                  %p1761 = scmp.ge.s32.totalorder %s1760, %s1758
                  %s1765 = sphi 0, %s1778
                  %s1766 = sphi %s1685, %s1781
                  %s1767 = sphi %s1696, %s1782
                $region93: #{tpu_custom_call.1} parent=89 // loop_header_branch
                  %1764 = sbr.rel (%p1761) target = $region97
                $region94: #{tpu_custom_call.1} parent=89 // loop_body
                  %v1768 = vld [vmem:[%s1766] sm:$0xff]
                  %1769 = vst [vmem:[%s1767] sm:$0xff] %v1768
                  %v1770 = vld [vmem:[%s1766 + $0x8] sm:$0xff]
                  %1771 = vst [vmem:[%s1767 + $0x8] sm:$0xff] %v1770
                  %v1772 = vld [vmem:[%s1766 + $0x10] sm:$0xff]
                  %1773 = vst [vmem:[%s1767 + $0x10] sm:$0xff] %v1772
                  %v1774 = vld [vmem:[%s1766 + $0x18] sm:$0xff]
                  %1775 = vst [vmem:[%s1767 + $0x18] sm:$0xff] %v1774
                  %s1776 = sadd.s32 1, %s1765
                  %p1777 = scmp.ge.s32.totalorder %s1776, %s1758
                  %s1778 = scalar_select %p1777, 0, %s1776
                  %s1779 = smul.u32 %s1778, 32
                  %s1780 = smul.u32 %s1778, 32
                  %s1781 = scalar_lea.vmem %s1685, %s1779 [#allocation10]
                  %s1782 = scalar_lea.vmem %s1696, %s1780
                $region95: #{tpu_custom_call.1} parent=89 // loop_footer
                  %s1762 = sadd.s32 %s1760, 1
                $region96: #{tpu_custom_call.1} parent=89 // loop_footer_branch
                  %1759 = sbr.rel target = $region92
                $region97: #{tpu_custom_call.1} parent=89 // loop_exit
                  _
                %s1783 = sshrl.u32 %s1692, 2
                %s1784 = sand.u32 %s1692, 3
                %s1785 = smul.u32 %s1783, 4
                %s1786 = smul.u32 8, %s1785
                %s1787 = scalar_lea.vmem %s1685, %s1786 [#allocation10]
                %s1788 = smul.u32 8, %s1785
                %s1789 = scalar_lea.vmem %s1696, %s1788
                // While loop
                $region98: #{tpu_custom_call.1} parent=89 // loop_pre_header
                  _
                $region99: #{tpu_custom_call.1} parent=89 // loop_header
                  %s1791 = sphi 0, %s1793
                  %p1792 = scmp.ge.s32.totalorder %s1791, %s1784
                  %s1796 = sphi 0, %s1803
                  %s1797 = sphi %s1787, %s1806
                  %s1798 = sphi %s1789, %s1807
                $region100: #{tpu_custom_call.1} parent=89 // loop_header_branch
                  %1795 = sbr.rel (%p1792) target = $region104
                $region101: #{tpu_custom_call.1} parent=89 // loop_body
                  %v1799 = vld [vmem:[%s1797] sm:$0xff]
                  %1800 = vst [vmem:[%s1798] sm:$0xff] %v1799
                  %s1801 = sadd.s32 1, %s1796
                  %p1802 = scmp.ge.s32.totalorder %s1801, %s1784
                  %s1803 = scalar_select %p1802, 0, %s1801
                  %s1804 = smul.u32 %s1803, 8
                  %s1805 = smul.u32 %s1803, 8
                  %s1806 = scalar_lea.vmem %s1787, %s1804 [#allocation10]
                  %s1807 = scalar_lea.vmem %s1789, %s1805
                $region102: #{tpu_custom_call.1} parent=89 // loop_footer
                  %s1793 = sadd.s32 %s1791, 1
                $region103: #{tpu_custom_call.1} parent=89 // loop_footer_branch
                  %1790 = sbr.rel target = $region99
                $region104: #{tpu_custom_call.1} parent=89 // loop_exit
                  _
              $region90: #{tpu_custom_call.1} parent=67 // pred_fallthru
                _
              // Predicated region
              $region105: #{tpu_custom_call.1} parent=67 // pred_check
                _
              $region106: #{tpu_custom_call.1} parent=67 // pred_check_branch
                %1809 = sbr.rel target = $region108
              $region107: #{tpu_custom_call.1} parent=67 // pred_region
                _
              $region108: #{tpu_custom_call.1} parent=67 // pred_fallthru
                _
            $region68: #{tpu_custom_call.1} parent=63 // pred_fallthru
              _
            // Predicated region
            $region69: #{tpu_custom_call.1} parent=63 // pred_check
              _
            $region70: #{tpu_custom_call.1} parent=63 // pred_check_branch
              %1703 = sbr.rel target = $region72
            $region71: #{tpu_custom_call.1} parent=63 // pred_region
              %s1705 = ssub.s32 256, 1
              %s1706 = sshrl.u32 %s1692, 2
              // While loop
              $region73: #{tpu_custom_call.1} parent=71 // loop_pre_header
                _
              $region74: #{tpu_custom_call.1} parent=71 // loop_header
                %s1708 = sphi 0, %s1710
                %p1709 = scmp.ge.s32.totalorder %s1708, %s1706
                %s1713 = sphi 0, %s1726
                %s1714 = sphi %s1685, %s1729
                %s1715 = sphi %s1696, %s1730
              $region75: #{tpu_custom_call.1} parent=71 // loop_header_branch
                %1712 = sbr.rel (%p1709) target = $region79
              $region76: #{tpu_custom_call.1} parent=71 // loop_body
                %v1716 = vld [vmem:[%s1714] sm:%s1705]
                %1717 = vst [vmem:[%s1715] sm:%s1705] %v1716
                %v1718 = vld [vmem:[%s1714 + $0x8] sm:%s1705]
                %1719 = vst [vmem:[%s1715 + $0x8] sm:%s1705] %v1718
                %v1720 = vld [vmem:[%s1714 + $0x10] sm:%s1705]
                %1721 = vst [vmem:[%s1715 + $0x10] sm:%s1705] %v1720
                %v1722 = vld [vmem:[%s1714 + $0x18] sm:%s1705]
                %1723 = vst [vmem:[%s1715 + $0x18] sm:%s1705] %v1722
                %s1724 = sadd.s32 1, %s1713
                %p1725 = scmp.ge.s32.totalorder %s1724, %s1706
                %s1726 = scalar_select %p1725, 0, %s1724
                %s1727 = smul.u32 %s1726, 32
                %s1728 = smul.u32 %s1726, 32
                %s1729 = scalar_lea.vmem %s1685, %s1727 [#allocation10]
                %s1730 = scalar_lea.vmem %s1696, %s1728
              $region77: #{tpu_custom_call.1} parent=71 // loop_footer
                %s1710 = sadd.s32 %s1708, 1
              $region78: #{tpu_custom_call.1} parent=71 // loop_footer_branch
                %1707 = sbr.rel target = $region74
              $region79: #{tpu_custom_call.1} parent=71 // loop_exit
                _
              %s1731 = sshrl.u32 %s1692, 2
              %s1732 = sand.u32 %s1692, 3
              %s1733 = smul.u32 %s1731, 4
              %s1734 = smul.u32 8, %s1733
              %s1735 = scalar_lea.vmem %s1685, %s1734 [#allocation10]
              %s1736 = smul.u32 8, %s1733
              %s1737 = scalar_lea.vmem %s1696, %s1736
              // While loop
              $region80: #{tpu_custom_call.1} parent=71 // loop_pre_header
                _
              $region81: #{tpu_custom_call.1} parent=71 // loop_header
                %s1739 = sphi 0, %s1741
                %p1740 = scmp.ge.s32.totalorder %s1739, %s1732
                %s1744 = sphi 0, %s1751
                %s1745 = sphi %s1735, %s1754
                %s1746 = sphi %s1737, %s1755
              $region82: #{tpu_custom_call.1} parent=71 // loop_header_branch
                %1743 = sbr.rel (%p1740) target = $region86
              $region83: #{tpu_custom_call.1} parent=71 // loop_body
                %v1747 = vld [vmem:[%s1745] sm:%s1705]
                %1748 = vst [vmem:[%s1746] sm:%s1705] %v1747
                %s1749 = sadd.s32 1, %s1744
                %p1750 = scmp.ge.s32.totalorder %s1749, %s1732
                %s1751 = scalar_select %p1750, 0, %s1749
                %s1752 = smul.u32 %s1751, 8
                %s1753 = smul.u32 %s1751, 8
                %s1754 = scalar_lea.vmem %s1735, %s1752 [#allocation10]
                %s1755 = scalar_lea.vmem %s1737, %s1753
              $region84: #{tpu_custom_call.1} parent=71 // loop_footer
                %s1741 = sadd.s32 %s1739, 1
              $region85: #{tpu_custom_call.1} parent=71 // loop_footer_branch
                %1738 = sbr.rel target = $region81
              $region86: #{tpu_custom_call.1} parent=71 // loop_exit
                _
            $region72: #{tpu_custom_call.1} parent=63 // pred_fallthru
              _
          $region64: #{tpu_custom_call.1} parent=59 // pred_fallthru
            _
          %1810 = vnop
        $region60: #{tpu_custom_call.1} parent=39 // pred_fallthru
          _
      $region40: #{tpu_custom_call.1} parent=5 // pred_fallthru
        _
      %p1811 = scmp.le.s32.totalorder 2, %s17
      // Predicated region
      $region109: #{tpu_custom_call.1} parent=5 // pred_check
        %p1812 = pneg %p1811
      $region110: #{tpu_custom_call.1} parent=5 // pred_check_branch
        %1814 = sbr.rel (%p1812) target = $region112
      $region111: #{tpu_custom_call.1} parent=5 // pred_region
        %s1815 = ssub.s32 %s17, 2
        // Predicated region
        $region113: #{tpu_custom_call.1} parent=111 // pred_check
          %p1816 = pneg %p156
        $region114: #{tpu_custom_call.1} parent=111 // pred_check_branch
          %1818 = sbr.rel (%p1816) target = $region116
        $region115: #{tpu_custom_call.1} parent=111 // pred_region
          %s1819 = sand.u32 %s141, 1
          %s1820 = sand.u32 %s141, 1
          %s1821 = smul.addr %s1820, 32
          %s1822 = scalar_lea.vmem [#allocation10], %s1821
        $region116: #{tpu_custom_call.1} parent=111 // pred_fallthru
          _
      $region112: #{tpu_custom_call.1} parent=5 // pred_fallthru
        _
    $region6: #{tpu_custom_call.1} parent=1 // loop_footer
      %s21 = sadd.s32 1, %s17
    $region7: #{tpu_custom_call.1} parent=1 // loop_footer_branch
      %16 = sbr.rel target = $region3
    $region8: #{tpu_custom_call.1} parent=1 // loop_exit
      _
    %1823 = vsyncpa [#allocation4], 1
    %s1824 = scalar_lea.sflag [#allocation4], 1
    %1825 = vsyncpa %s1824, 1
    %1826 = vsyncpa [#allocation6], 1
    %1827 = vsyncpa [#allocation9], 1

</llo_original>
